<compile_context>
chip_gen: v6e
topology: v6e:2x2x1
jax: 0.10.0
libtpu: 0.0.40
codegen_flags: <defaults>
</compile_context>

<pallas_src>
import functools

import jax
import jax.numpy as jnp
import numpy as np
from jax import lax
from jax.experimental import pallas as pl
from jax.experimental.pallas import tpu as pltpu

LANE = 128
NEG_BIG = -1e30  # bias for padded output lanes -> exp() underflows to 0


def _round_up(n, m):
    return ((n + m - 1) // m) * m


# ---------------------------------------------------------------------------
# Kernel: whole sequence, hidden state resident in VMEM scratch.
# ---------------------------------------------------------------------------
def gru_seq_kernel(x_ref, h0_ref, wih_t_ref, whh_t_ref, bih_ref, bhh_ref,
                   wl_t_ref, bl_ref, logp_ref, hn_ref, h_scr, gi_scr):
    T, B, Ip = x_ref.shape
    Hp = h0_ref.shape[-1]

    # ---- hoisted input projection: one (T*B, Ip) x (Ip, 3Hp) MXU matmul ----
    x = x_ref[...].reshape(T * B, Ip)
    gi_all = jnp.dot(x, wih_t_ref[...],
                     preferred_element_type=jnp.float32) + bih_ref[...]
    gi_scr[...] = gi_all.reshape(T, B, 3 * Hp)

    # Weights stay resident in VMEM for the whole sequence; read into vregs once.
    whh_t = whh_t_ref[...]        # (Hp, 3Hp)
    bhh = bhh_ref[...]            # (1, 3Hp)
    wl_t = wl_t_ref[...]          # (Hp, Op)
    bl = bl_ref[...]              # (1, Op)  (padded lanes = NEG_BIG)

    h_scr[...] = h0_ref[...]

    @pl.loop(0, T, unroll=True)
    def _(t):
        gi = gi_scr[t]            # (B, 3Hp) -- precomputed input projection
        h = h_scr[...]            # (B, Hp)

        gh = jnp.dot(h, whh_t, preferred_element_type=jnp.float32) + bhh

        # Gate slices are 128-lane aligned (each gate owns one Hp=128 slot).
        r = jax.nn.sigmoid(gi[:, 0:Hp] + gh[:, 0:Hp])
        z = jax.nn.sigmoid(gi[:, Hp:2 * Hp] + gh[:, Hp:2 * Hp])
        n = jnp.tanh(gi[:, 2 * Hp:3 * Hp] + r * gh[:, 2 * Hp:3 * Hp])
        hn = (1.0 - z) * n + z * h          # padded lanes stay exactly 0
        h_scr[...] = hn

        # Linear + LogSoftmax over the (lane-padded) class axis.
        y = jnp.dot(hn, wl_t, preferred_element_type=jnp.float32) + bl
        m = jnp.max(y, axis=-1, keepdims=True)
        s = y - m
        lse = jnp.log(jnp.sum(jnp.exp(s), axis=-1, keepdims=True))
        logp_ref[t] = (s - lse).astype(logp_ref.dtype)

    hn_ref[...] = h_scr[...].astype(hn_ref.dtype)


# ---------------------------------------------------------------------------
# One-time parameter preparation (transpose + pad) -- outside the hot path.
# ---------------------------------------------------------------------------
def prepare_params(params, input_size, hidden_size, output_size):
    Ip = _round_up(input_size, LANE)
    Hp = _round_up(hidden_size, LANE)
    Op = _round_up(output_size, LANE)
    H = hidden_size

    def pad_gate_weight(w_t, in_dim, in_pad):
        # w_t: (in_dim, 3H) -> (in_pad, 3Hp), each gate in its own 128-lane slot.
        out = jnp.zeros((in_pad, 3 * Hp), jnp.float32)
        for g in range(3):
            out = out.at[:in_dim, g * Hp:g * Hp + H].set(w_t[:, g * H:(g + 1) * H])
        return out

    def pad_gate_bias(b):
        out = jnp.zeros((1, 3 * Hp), jnp.float32)
        for g in range(3):
            out = out.at[0, g * Hp:g * Hp + H].set(b[g * H:(g + 1) * H])
        return out

    wih_t = pad_gate_weight(jnp.transpose(params["w_ih"]), input_size, Ip)
    whh_t = pad_gate_weight(jnp.transpose(params["w_hh"]), hidden_size, Hp)
    bih = pad_gate_bias(params["b_ih"])
    bhh = pad_gate_bias(params["b_hh"])

    wl_t = (jnp.zeros((Hp, Op), jnp.float32)
            .at[:hidden_size, :output_size].set(jnp.transpose(params["w_lin"])))
    bl = (jnp.full((1, Op), NEG_BIG, jnp.float32)
          .at[0, :output_size].set(params["b_lin"]))

    return {"wih_t": wih_t, "whh_t": whh_t, "bih": bih, "bhh": bhh,
            "wl_t": wl_t, "bl": bl}


# ---------------------------------------------------------------------------
# Forward wrapper (sequence version; the module's forward is the T=1 case).
# ---------------------------------------------------------------------------
@functools.partial(jax.jit, static_argnames=("hidden_size", "output_size"))
def gru_forward(x_seq, hidden, prepared, *, hidden_size, output_size):
    """x_seq: (T, B, input_size); hidden: (num_layers=1, B, hidden_size).

    Returns (log_probs (T, B, output_size), hn (1, B, hidden_size)) — i.e.
    softmax(linear(rr)) and hn from the PyTorch module, for every timestep.
    """
    T, B, I = x_seq.shape
    Ip = prepared["wih_t"].shape[0]
    Hp = prepared["whh_t"].shape[0]
    Op = prepared["wl_t"].shape[1]

    x_pad = jnp.zeros((T, B, Ip), jnp.float32).at[:, :, :I].set(x_seq)
    h0_pad = (jnp.zeros((B, Hp), jnp.float32)
              .at[:, :hidden_size].set(hidden.reshape(B, hidden_size)))

    vmem = pl.BlockSpec(memory_space=pltpu.MemorySpace.VMEM)
    logp_pad, hn_pad = pl.pallas_call(
        gru_seq_kernel,
        out_shape=(
            jax.ShapeDtypeStruct((T, B, Op), jnp.float32),
            jax.ShapeDtypeStruct((B, Hp), jnp.float32),
        ),
        in_specs=[vmem] * 8,
        out_specs=(vmem, vmem),
        scratch_shapes=[
            pltpu.VMEM((B, Hp), jnp.float32),        # carried hidden state
            pltpu.VMEM((T, B, 3 * Hp), jnp.float32),  # staged input projection
        ],
    )(x_pad, h0_pad, prepared["wih_t"], prepared["whh_t"],
      prepared["bih"], prepared["bhh"], prepared["wl_t"], prepared["bl"])

    logp = logp_pad[:, :, :output_size]
    hn = hn_pad[:, :hidden_size].reshape(1, B, hidden_size)
    return logp, hn


# ---------------------------------------------------------------------------
# Pure-JAX reference (matches PyTorch nn.GRU + Linear + LogSoftmax).
# ---------------------------------------------------------------------------
def gru_forward_ref(x_seq, hidden, params):
    w_ih, w_hh, b_ih, b_hh, w_lin, b_lin = (
        params["w_ih"], params["w_hh"], params["b_ih"],
        params["b_hh"], params["w_lin"], params["b_lin"])
    H = w_hh.shape[1]

    def step(h, x):
        gi = x @ w_ih.T + b_ih
        gh = h @ w_hh.T + b_hh
        r = jax.nn.sigmoid(gi[:, :H] + gh[:, :H])
        z = jax.nn.sigmoid(gi[:, H:2 * H] + gh[:, H:2 * H])
        n = jnp.tanh(gi[:, 2 * H:] + r * gh[:, 2 * H:])
        hn = (1.0 - z) * n + z * h
        return hn, hn

    h_final, hs = lax.scan(step, hidden[0], x_seq)
    y = hs @ w_lin.T + b_lin
    logp = jax.nn.log_softmax(y, axis=-1)
    return logp, h_final[None]


if __name__ == "__main__":
    # Shapes implied by the name-classifier: one-hot letters over a line.
    n_letters = 57           # len(string.ascii_letters + " .,;'")
    input_size = n_letters
    hidden_size = 32
    output_size = 8          # n_categories (synthetic; original list was empty)
    T = 8                    # line length (timesteps)
    B = 8                    # batch of independent names

    key = jax.random.PRNGKey(0)
    k = jax.random.split(key, 8)
    bound = 1.0 / np.sqrt(hidden_size)

    params = {
        "w_ih": jax.random.uniform(k[0], (3 * hidden_size, input_size),
                                   jnp.float32, -bound, bound),
        "w_hh": jax.random.uniform(k[1], (3 * hidden_size, hidden_size),
                                   jnp.float32, -bound, bound),
        "b_ih": jax.random.uniform(k[2], (3 * hidden_size,),
                                   jnp.float32, -bound, bound),
        "b_hh": jax.random.uniform(k[3], (3 * hidden_size,),
                                   jnp.float32, -bound, bound),
        "w_lin": jax.random.uniform(k[4], (output_size, hidden_size),
                                    jnp.float32, -bound, bound),
        "b_lin": jax.random.uniform(k[5], (output_size,),
                                    jnp.float32, -bound, bound),
    }

    # One-time weight prep (transpose + lane-pad), kept out of the hot path.
    prepared = prepare_params(params, input_size, hidden_size, output_size)

    # Dense stand-in for the one-hot line tensor; zero initial hidden.
    # TODO(synk): if inputs are guaranteed one-hot, replace the x@W_ih matmul
    # with a scalar-prefetched row gather of wih_t.
    x_seq = jax.random.uniform(k[6], (T, B, input_size), jnp.float32)
    hidden = jnp.zeros((1, B, hidden_size), jnp.float32)   # GRU.initHidden()

    logp, hn = gru_forward(x_seq, hidden, prepared,
                           hidden_size=hidden_size, output_size=output_size)
    jax.block_until_ready((logp, hn))

    logp_ref, hn_ref = gru_forward_ref(x_seq, hidden, params)
    np.testing.assert_allclose(np.asarray(logp), np.asarray(logp_ref),
                               rtol=1e-5, atol=1e-5)
    np.testing.assert_allclose(np.asarray(hn), np.asarray(hn_ref),
                               rtol=1e-5, atol=1e-5)

    print("KERNEL_OK")
</pallas_src>

<mosaic_0001>
module attributes {stable_mosaic.version = 11 : i64} {
  func.func @gru_seq_kernel(%arg0: memref<8x8x128xf32, #tpu.memory_space<vmem>>, %arg1: memref<8x128xf32, #tpu.memory_space<vmem>>, %arg2: memref<128x384xf32, #tpu.memory_space<vmem>>, %arg3: memref<128x384xf32, #tpu.memory_space<vmem>>, %arg4: memref<1x384xf32, #tpu.memory_space<vmem>>, %arg5: memref<1x384xf32, #tpu.memory_space<vmem>>, %arg6: memref<128x128xf32, #tpu.memory_space<vmem>>, %arg7: memref<1x128xf32, #tpu.memory_space<vmem>>, %arg8: memref<8x8x128xf32, #tpu.memory_space<vmem>>, %arg9: memref<8x128xf32, #tpu.memory_space<vmem>>, %arg10: memref<8x128xf32, #tpu.memory_space<vmem>>, %arg11: memref<8x8x384xf32, #tpu.memory_space<vmem>>) attributes {dimension_semantics = [], scalar_prefetch = 0 : i64, scratch_operands = 2 : i64, tpu.core_type = #tpu.core_type<tc>} {
    %c0 = arith.constant 0 : index
    %c0_0 = arith.constant 0 : index
    %c0_1 = arith.constant 0 : index
    %0 = vector.load %arg0[%c0, %c0_0, %c0_1] : memref<8x8x128xf32, #tpu.memory_space<vmem>>, vector<8x8x128xf32>
    %1 = vector.shape_cast %0 : vector<8x8x128xf32> to vector<64x128xf32>
    %c0_2 = arith.constant 0 : index
    %c0_3 = arith.constant 0 : index
    %2 = vector.load %arg2[%c0_2, %c0_3] : memref<128x384xf32, #tpu.memory_space<vmem>>, vector<128x384xf32>
    %cst = arith.constant dense<0.000000e+00> : vector<64x384xf32>
    %3 = tpu.matmul %1, %2, %cst {dimension_numbers = #tpu.dot_dimension_numbers<[1], [0], [0], [1], [0, 0, 1, 1], [], []>} : vector<64x128xf32>, vector<128x384xf32>, vector<64x384xf32> -> vector<64x384xf32>
    %c0_4 = arith.constant 0 : index
    %c0_5 = arith.constant 0 : index
    %4 = vector.load %arg4[%c0_4, %c0_5] : memref<1x384xf32, #tpu.memory_space<vmem>>, vector<1x384xf32>
    %5 = vector.broadcast %4 : vector<1x384xf32> to vector<64x384xf32>
    %6 = arith.addf %3, %5 : vector<64x384xf32>
    %7 = vector.shape_cast %6 : vector<64x384xf32> to vector<8x8x384xf32>
    %c0_6 = arith.constant 0 : index
    %c0_7 = arith.constant 0 : index
    %c0_8 = arith.constant 0 : index
    %8 = vector.load %arg11[%c0_6, %c0_7, %c0_8] : memref<8x8x384xf32, #tpu.memory_space<vmem>>, vector<8x8x384xf32>
    tpu.vector_store %arg11[%c0_6, %c0_7, %c0_8], %7 {strides = array<i32>} : memref<8x8x384xf32, #tpu.memory_space<vmem>>, vector<8x8x384xf32>,
    %c0_9 = arith.constant 0 : index
    %c0_10 = arith.constant 0 : index
    %9 = vector.load %arg3[%c0_9, %c0_10] : memref<128x384xf32, #tpu.memory_space<vmem>>, vector<128x384xf32>
    %c0_11 = arith.constant 0 : index
    %c0_12 = arith.constant 0 : index
    %10 = vector.load %arg5[%c0_11, %c0_12] : memref<1x384xf32, #tpu.memory_space<vmem>>, vector<1x384xf32>
    %c0_13 = arith.constant 0 : index
    %c0_14 = arith.constant 0 : index
    %11 = vector.load %arg6[%c0_13, %c0_14] : memref<128x128xf32, #tpu.memory_space<vmem>>, vector<128x128xf32>
    %c0_15 = arith.constant 0 : index
    %c0_16 = arith.constant 0 : index
    %12 = vector.load %arg7[%c0_15, %c0_16] : memref<1x128xf32, #tpu.memory_space<vmem>>, vector<1x128xf32>
    %c0_17 = arith.constant 0 : index
    %c0_18 = arith.constant 0 : index
    %13 = vector.load %arg1[%c0_17, %c0_18] : memref<8x128xf32, #tpu.memory_space<vmem>>, vector<8x128xf32>
    %c0_19 = arith.constant 0 : index
    %c0_20 = arith.constant 0 : index
    %14 = vector.load %arg10[%c0_19, %c0_20] : memref<8x128xf32, #tpu.memory_space<vmem>>, vector<8x128xf32>
    tpu.vector_store %arg10[%c0_19, %c0_20], %13 {strides = array<i32>} : memref<8x128xf32, #tpu.memory_space<vmem>>, vector<8x128xf32>,
    %c0_i32 = arith.constant 0 : i32
    %c1_i32 = arith.constant 1 : i32
    %15 = arith.muli %c0_i32, %c1_i32 : i32
    %c0_i32_21 = arith.constant 0 : i32
    %16 = arith.addi %c0_i32_21, %15 : i32
    %17 = arith.index_cast %16 : i32 to index
    %c0_22 = arith.constant 0 : index
    %c0_23 = arith.constant 0 : index
    %18 = vector.load %arg11[%17, %c0_22, %c0_23] : memref<8x8x384xf32, #tpu.memory_space<vmem>>, vector<1x8x384xf32>
    %19 = vector.shape_cast %18 : vector<1x8x384xf32> to vector<8x384xf32>
    %c0_24 = arith.constant 0 : index
    %c0_25 = arith.constant 0 : index
    %20 = vector.load %arg10[%c0_24, %c0_25] : memref<8x128xf32, #tpu.memory_space<vmem>>, vector<8x128xf32>
    %cst_26 = arith.constant dense<0.000000e+00> : vector<8x384xf32>
    %21 = tpu.matmul %20, %9, %cst_26 {dimension_numbers = #tpu.dot_dimension_numbers<[1], [0], [0], [1], [0, 0, 1, 1], [], []>} : vector<8x128xf32>, vector<128x384xf32>, vector<8x384xf32> -> vector<8x384xf32>
    %22 = vector.broadcast %10 : vector<1x384xf32> to vector<8x384xf32>
    %23 = arith.addf %21, %22 : vector<8x384xf32>
    %24 = vector.extract_strided_slice %19 {offsets = [0, 0], sizes = [8, 128], strides = [1, 1]} : vector<8x384xf32> to vector<8x128xf32>
    %25 = vector.extract_strided_slice %23 {offsets = [0, 0], sizes = [8, 128], strides = [1, 1]} : vector<8x384xf32> to vector<8x128xf32>
    %26 = arith.addf %24, %25 : vector<8x128xf32>
    %27 = arith.negf %26 : vector<8x128xf32>
    %28 = math.exp %27 : vector<8x128xf32>
    %cst_27 = arith.constant 1.000000e+00 : f32
    %29 = vector.broadcast %cst_27 : f32 to vector<8x128xf32>
    %30 = arith.addf %29, %28 : vector<8x128xf32>
    %31 = arith.divf %29, %30 : vector<8x128xf32>
    %32 = vector.extract_strided_slice %19 {offsets = [0, 128], sizes = [8, 128], strides = [1, 1]} : vector<8x384xf32> to vector<8x128xf32>
    %33 = vector.extract_strided_slice %23 {offsets = [0, 128], sizes = [8, 128], strides = [1, 1]} : vector<8x384xf32> to vector<8x128xf32>
    %34 = arith.addf %32, %33 : vector<8x128xf32>
    %35 = arith.negf %34 : vector<8x128xf32>
    %36 = math.exp %35 : vector<8x128xf32>
    %cst_28 = arith.constant 1.000000e+00 : f32
    %37 = vector.broadcast %cst_28 : f32 to vector<8x128xf32>
    %38 = arith.addf %37, %36 : vector<8x128xf32>
    %39 = arith.divf %37, %38 : vector<8x128xf32>
    %40 = vector.extract_strided_slice %19 {offsets = [0, 256], sizes = [8, 128], strides = [1, 1]} : vector<8x384xf32> to vector<8x128xf32>
    %41 = vector.extract_strided_slice %23 {offsets = [0, 256], sizes = [8, 128], strides = [1, 1]} : vector<8x384xf32> to vector<8x128xf32>
    %42 = arith.mulf %31, %41 : vector<8x128xf32>
    %43 = arith.addf %40, %42 : vector<8x128xf32>
    %44 = math.tanh %43 : vector<8x128xf32>
    %cst_29 = arith.constant 1.000000e+00 : f32
    %45 = vector.broadcast %cst_29 : f32 to vector<8x128xf32>
    %46 = arith.subf %45, %39 : vector<8x128xf32>
    %47 = arith.mulf %46, %44 : vector<8x128xf32>
    %48 = arith.mulf %39, %20 : vector<8x128xf32>
    %49 = arith.addf %47, %48 : vector<8x128xf32>
    %c0_30 = arith.constant 0 : index
    %c0_31 = arith.constant 0 : index
    %50 = vector.load %arg10[%c0_30, %c0_31] : memref<8x128xf32, #tpu.memory_space<vmem>>, vector<8x128xf32>
    tpu.vector_store %arg10[%c0_30, %c0_31], %49 {strides = array<i32>} : memref<8x128xf32, #tpu.memory_space<vmem>>, vector<8x128xf32>,
    %cst_32 = arith.constant dense<0.000000e+00> : vector<8x128xf32>
    %51 = tpu.matmul %49, %11, %cst_32 {dimension_numbers = #tpu.dot_dimension_numbers<[1], [0], [0], [1], [0, 0, 1, 1], [], []>} : vector<8x128xf32>, vector<128x128xf32>, vector<8x128xf32> -> vector<8x128xf32>
    %52 = vector.broadcast %12 : vector<1x128xf32> to vector<8x128xf32>
    %53 = arith.addf %51, %52 : vector<8x128xf32>
    %cst_33 = arith.constant dense<0xFF800000> : vector<8xf32>
    %54 = vector.multi_reduction <maximumf>, %53, %cst_33 [1] : vector<8x128xf32> to vector<8xf32>
    %55 = vector.shape_cast %54 : vector<8xf32> to vector<8x1xf32>
    %56 = vector.broadcast %55 : vector<8x1xf32> to vector<8x128xf32>
    %57 = arith.subf %53, %56 : vector<8x128xf32>
    %58 = math.exp %57 : vector<8x128xf32>
    %cst_34 = arith.constant dense<0.000000e+00> : vector<8xf32>
    %59 = vector.multi_reduction <add>, %58, %cst_34 [1] : vector<8x128xf32> to vector<8xf32>
    %60 = vector.shape_cast %59 : vector<8xf32> to vector<8x1xf32>
    %61 = math.log %60 : vector<8x1xf32>
    %62 = vector.broadcast %61 : vector<8x1xf32> to vector<8x128xf32>
    %63 = arith.subf %57, %62 : vector<8x128xf32>
    %64 = arith.index_cast %16 : i32 to index
    %c0_35 = arith.constant 0 : index
    %c0_36 = arith.constant 0 : index
    %65 = vector.load %arg8[%64, %c0_35, %c0_36] : memref<8x8x128xf32, #tpu.memory_space<vmem>>, vector<1x8x128xf32>
    %66 = vector.shape_cast %65 : vector<1x8x128xf32> to vector<8x128xf32>
    %67 = vector.shape_cast %63 : vector<8x128xf32> to vector<1x8x128xf32>
    tpu.vector_store %arg8[%64, %c0_35, %c0_36], %67 {strides = array<i32>} : memref<8x8x128xf32, #tpu.memory_space<vmem>>, vector<1x8x128xf32>,
    %c1_i32_37 = arith.constant 1 : i32
    %c1_i32_38 = arith.constant 1 : i32
    %68 = arith.muli %c1_i32_37, %c1_i32_38 : i32
    %c0_i32_39 = arith.constant 0 : i32
    %69 = arith.addi %c0_i32_39, %68 : i32
    %70 = arith.index_cast %69 : i32 to index
    %c0_40 = arith.constant 0 : index
    %c0_41 = arith.constant 0 : index
    %71 = vector.load %arg11[%70, %c0_40, %c0_41] : memref<8x8x384xf32, #tpu.memory_space<vmem>>, vector<1x8x384xf32>
    %72 = vector.shape_cast %71 : vector<1x8x384xf32> to vector<8x384xf32>
    %c0_42 = arith.constant 0 : index
    %c0_43 = arith.constant 0 : index
    %73 = vector.load %arg10[%c0_42, %c0_43] : memref<8x128xf32, #tpu.memory_space<vmem>>, vector<8x128xf32>
    %cst_44 = arith.constant dense<0.000000e+00> : vector<8x384xf32>
    %74 = tpu.matmul %73, %9, %cst_44 {dimension_numbers = #tpu.dot_dimension_numbers<[1], [0], [0], [1], [0, 0, 1, 1], [], []>} : vector<8x128xf32>, vector<128x384xf32>, vector<8x384xf32> -> vector<8x384xf32>
    %75 = vector.broadcast %10 : vector<1x384xf32> to vector<8x384xf32>
    %76 = arith.addf %74, %75 : vector<8x384xf32>
    %77 = vector.extract_strided_slice %72 {offsets = [0, 0], sizes = [8, 128], strides = [1, 1]} : vector<8x384xf32> to vector<8x128xf32>
    %78 = vector.extract_strided_slice %76 {offsets = [0, 0], sizes = [8, 128], strides = [1, 1]} : vector<8x384xf32> to vector<8x128xf32>
    %79 = arith.addf %77, %78 : vector<8x128xf32>
    %80 = arith.negf %79 : vector<8x128xf32>
    %81 = math.exp %80 : vector<8x128xf32>
    %cst_45 = arith.constant 1.000000e+00 : f32
    %82 = vector.broadcast %cst_45 : f32 to vector<8x128xf32>
    %83 = arith.addf %82, %81 : vector<8x128xf32>
    %84 = arith.divf %82, %83 : vector<8x128xf32>
    %85 = vector.extract_strided_slice %72 {offsets = [0, 128], sizes = [8, 128], strides = [1, 1]} : vector<8x384xf32> to vector<8x128xf32>
    %86 = vector.extract_strided_slice %76 {offsets = [0, 128], sizes = [8, 128], strides = [1, 1]} : vector<8x384xf32> to vector<8x128xf32>
    %87 = arith.addf %85, %86 : vector<8x128xf32>
    %88 = arith.negf %87 : vector<8x128xf32>
    %89 = math.exp %88 : vector<8x128xf32>
    %cst_46 = arith.constant 1.000000e+00 : f32
    %90 = vector.broadcast %cst_46 : f32 to vector<8x128xf32>
    %91 = arith.addf %90, %89 : vector<8x128xf32>
    %92 = arith.divf %90, %91 : vector<8x128xf32>
    %93 = vector.extract_strided_slice %72 {offsets = [0, 256], sizes = [8, 128], strides = [1, 1]} : vector<8x384xf32> to vector<8x128xf32>
    %94 = vector.extract_strided_slice %76 {offsets = [0, 256], sizes = [8, 128], strides = [1, 1]} : vector<8x384xf32> to vector<8x128xf32>
    %95 = arith.mulf %84, %94 : vector<8x128xf32>
    %96 = arith.addf %93, %95 : vector<8x128xf32>
    %97 = math.tanh %96 : vector<8x128xf32>
    %cst_47 = arith.constant 1.000000e+00 : f32
    %98 = vector.broadcast %cst_47 : f32 to vector<8x128xf32>
    %99 = arith.subf %98, %92 : vector<8x128xf32>
    %100 = arith.mulf %99, %97 : vector<8x128xf32>
    %101 = arith.mulf %92, %73 : vector<8x128xf32>
    %102 = arith.addf %100, %101 : vector<8x128xf32>
    %c0_48 = arith.constant 0 : index
    %c0_49 = arith.constant 0 : index
    %103 = vector.load %arg10[%c0_48, %c0_49] : memref<8x128xf32, #tpu.memory_space<vmem>>, vector<8x128xf32>
    tpu.vector_store %arg10[%c0_48, %c0_49], %102 {strides = array<i32>} : memref<8x128xf32, #tpu.memory_space<vmem>>, vector<8x128xf32>,
    %cst_50 = arith.constant dense<0.000000e+00> : vector<8x128xf32>
    %104 = tpu.matmul %102, %11, %cst_50 {dimension_numbers = #tpu.dot_dimension_numbers<[1], [0], [0], [1], [0, 0, 1, 1], [], []>} : vector<8x128xf32>, vector<128x128xf32>, vector<8x128xf32> -> vector<8x128xf32>
    %105 = vector.broadcast %12 : vector<1x128xf32> to vector<8x128xf32>
    %106 = arith.addf %104, %105 : vector<8x128xf32>
    %cst_51 = arith.constant dense<0xFF800000> : vector<8xf32>
    %107 = vector.multi_reduction <maximumf>, %106, %cst_51 [1] : vector<8x128xf32> to vector<8xf32>
    %108 = vector.shape_cast %107 : vector<8xf32> to vector<8x1xf32>
    %109 = vector.broadcast %108 : vector<8x1xf32> to vector<8x128xf32>
    %110 = arith.subf %106, %109 : vector<8x128xf32>
    %111 = math.exp %110 : vector<8x128xf32>
    %cst_52 = arith.constant dense<0.000000e+00> : vector<8xf32>
    %112 = vector.multi_reduction <add>, %111, %cst_52 [1] : vector<8x128xf32> to vector<8xf32>
    %113 = vector.shape_cast %112 : vector<8xf32> to vector<8x1xf32>
    %114 = math.log %113 : vector<8x1xf32>
    %115 = vector.broadcast %114 : vector<8x1xf32> to vector<8x128xf32>
    %116 = arith.subf %110, %115 : vector<8x128xf32>
    %117 = arith.index_cast %69 : i32 to index
    %c0_53 = arith.constant 0 : index
    %c0_54 = arith.constant 0 : index
    %118 = vector.load %arg8[%117, %c0_53, %c0_54] : memref<8x8x128xf32, #tpu.memory_space<vmem>>, vector<1x8x128xf32>
    %119 = vector.shape_cast %118 : vector<1x8x128xf32> to vector<8x128xf32>
    %120 = vector.shape_cast %116 : vector<8x128xf32> to vector<1x8x128xf32>
    tpu.vector_store %arg8[%117, %c0_53, %c0_54], %120 {strides = array<i32>} : memref<8x8x128xf32, #tpu.memory_space<vmem>>, vector<1x8x128xf32>,
    %c2_i32 = arith.constant 2 : i32
    %c1_i32_55 = arith.constant 1 : i32
    %121 = arith.muli %c2_i32, %c1_i32_55 : i32
    %c0_i32_56 = arith.constant 0 : i32
    %122 = arith.addi %c0_i32_56, %121 : i32
    %123 = arith.index_cast %122 : i32 to index
    %c0_57 = arith.constant 0 : index
    %c0_58 = arith.constant 0 : index
    %124 = vector.load %arg11[%123, %c0_57, %c0_58] : memref<8x8x384xf32, #tpu.memory_space<vmem>>, vector<1x8x384xf32>
    %125 = vector.shape_cast %124 : vector<1x8x384xf32> to vector<8x384xf32>
    %c0_59 = arith.constant 0 : index
    %c0_60 = arith.constant 0 : index
    %126 = vector.load %arg10[%c0_59, %c0_60] : memref<8x128xf32, #tpu.memory_space<vmem>>, vector<8x128xf32>
    %cst_61 = arith.constant dense<0.000000e+00> : vector<8x384xf32>
    %127 = tpu.matmul %126, %9, %cst_61 {dimension_numbers = #tpu.dot_dimension_numbers<[1], [0], [0], [1], [0, 0, 1, 1], [], []>} : vector<8x128xf32>, vector<128x384xf32>, vector<8x384xf32> -> vector<8x384xf32>
    %128 = vector.broadcast %10 : vector<1x384xf32> to vector<8x384xf32>
    %129 = arith.addf %127, %128 : vector<8x384xf32>
    %130 = vector.extract_strided_slice %125 {offsets = [0, 0], sizes = [8, 128], strides = [1, 1]} : vector<8x384xf32> to vector<8x128xf32>
    %131 = vector.extract_strided_slice %129 {offsets = [0, 0], sizes = [8, 128], strides = [1, 1]} : vector<8x384xf32> to vector<8x128xf32>
    %132 = arith.addf %130, %131 : vector<8x128xf32>
    %133 = arith.negf %132 : vector<8x128xf32>
    %134 = math.exp %133 : vector<8x128xf32>
    %cst_62 = arith.constant 1.000000e+00 : f32
    %135 = vector.broadcast %cst_62 : f32 to vector<8x128xf32>
    %136 = arith.addf %135, %134 : vector<8x128xf32>
    %137 = arith.divf %135, %136 : vector<8x128xf32>
    %138 = vector.extract_strided_slice %125 {offsets = [0, 128], sizes = [8, 128], strides = [1, 1]} : vector<8x384xf32> to vector<8x128xf32>
    %139 = vector.extract_strided_slice %129 {offsets = [0, 128], sizes = [8, 128], strides = [1, 1]} : vector<8x384xf32> to vector<8x128xf32>
    %140 = arith.addf %138, %139 : vector<8x128xf32>
    %141 = arith.negf %140 : vector<8x128xf32>
    %142 = math.exp %141 : vector<8x128xf32>
    %cst_63 = arith.constant 1.000000e+00 : f32
    %143 = vector.broadcast %cst_63 : f32 to vector<8x128xf32>
    %144 = arith.addf %143, %142 : vector<8x128xf32>
    %145 = arith.divf %143, %144 : vector<8x128xf32>
    %146 = vector.extract_strided_slice %125 {offsets = [0, 256], sizes = [8, 128], strides = [1, 1]} : vector<8x384xf32> to vector<8x128xf32>
    %147 = vector.extract_strided_slice %129 {offsets = [0, 256], sizes = [8, 128], strides = [1, 1]} : vector<8x384xf32> to vector<8x128xf32>
    %148 = arith.mulf %137, %147 : vector<8x128xf32>
    %149 = arith.addf %146, %148 : vector<8x128xf32>
    %150 = math.tanh %149 : vector<8x128xf32>
    %cst_64 = arith.constant 1.000000e+00 : f32
    %151 = vector.broadcast %cst_64 : f32 to vector<8x128xf32>
    %152 = arith.subf %151, %145 : vector<8x128xf32>
    %153 = arith.mulf %152, %150 : vector<8x128xf32>
    %154 = arith.mulf %145, %126 : vector<8x128xf32>
    %155 = arith.addf %153, %154 : vector<8x128xf32>
    %c0_65 = arith.constant 0 : index
    %c0_66 = arith.constant 0 : index
    %156 = vector.load %arg10[%c0_65, %c0_66] : memref<8x128xf32, #tpu.memory_space<vmem>>, vector<8x128xf32>
    tpu.vector_store %arg10[%c0_65, %c0_66], %155 {strides = array<i32>} : memref<8x128xf32, #tpu.memory_space<vmem>>, vector<8x128xf32>,
    %cst_67 = arith.constant dense<0.000000e+00> : vector<8x128xf32>
    %157 = tpu.matmul %155, %11, %cst_67 {dimension_numbers = #tpu.dot_dimension_numbers<[1], [0], [0], [1], [0, 0, 1, 1], [], []>} : vector<8x128xf32>, vector<128x128xf32>, vector<8x128xf32> -> vector<8x128xf32>
    %158 = vector.broadcast %12 : vector<1x128xf32> to vector<8x128xf32>
    %159 = arith.addf %157, %158 : vector<8x128xf32>
    %cst_68 = arith.constant dense<0xFF800000> : vector<8xf32>
    %160 = vector.multi_reduction <maximumf>, %159, %cst_68 [1] : vector<8x128xf32> to vector<8xf32>
    %161 = vector.shape_cast %160 : vector<8xf32> to vector<8x1xf32>
    %162 = vector.broadcast %161 : vector<8x1xf32> to vector<8x128xf32>
    %163 = arith.subf %159, %162 : vector<8x128xf32>
    %164 = math.exp %163 : vector<8x128xf32>
    %cst_69 = arith.constant dense<0.000000e+00> : vector<8xf32>
    %165 = vector.multi_reduction <add>, %164, %cst_69 [1] : vector<8x128xf32> to vector<8xf32>
    %166 = vector.shape_cast %165 : vector<8xf32> to vector<8x1xf32>
    %167 = math.log %166 : vector<8x1xf32>
    %168 = vector.broadcast %167 : vector<8x1xf32> to vector<8x128xf32>
    %169 = arith.subf %163, %168 : vector<8x128xf32>
    %170 = arith.index_cast %122 : i32 to index
    %c0_70 = arith.constant 0 : index
    %c0_71 = arith.constant 0 : index
    %171 = vector.load %arg8[%170, %c0_70, %c0_71] : memref<8x8x128xf32, #tpu.memory_space<vmem>>, vector<1x8x128xf32>
    %172 = vector.shape_cast %171 : vector<1x8x128xf32> to vector<8x128xf32>
    %173 = vector.shape_cast %169 : vector<8x128xf32> to vector<1x8x128xf32>
    tpu.vector_store %arg8[%170, %c0_70, %c0_71], %173 {strides = array<i32>} : memref<8x8x128xf32, #tpu.memory_space<vmem>>, vector<1x8x128xf32>,
    %c3_i32 = arith.constant 3 : i32
    %c1_i32_72 = arith.constant 1 : i32
    %174 = arith.muli %c3_i32, %c1_i32_72 : i32
    %c0_i32_73 = arith.constant 0 : i32
    %175 = arith.addi %c0_i32_73, %174 : i32
    %176 = arith.index_cast %175 : i32 to index
    %c0_74 = arith.constant 0 : index
    %c0_75 = arith.constant 0 : index
    %177 = vector.load %arg11[%176, %c0_74, %c0_75] : memref<8x8x384xf32, #tpu.memory_space<vmem>>, vector<1x8x384xf32>
    %178 = vector.shape_cast %177 : vector<1x8x384xf32> to vector<8x384xf32>
    %c0_76 = arith.constant 0 : index
    %c0_77 = arith.constant 0 : index
    %179 = vector.load %arg10[%c0_76, %c0_77] : memref<8x128xf32, #tpu.memory_space<vmem>>, vector<8x128xf32>
    %cst_78 = arith.constant dense<0.000000e+00> : vector<8x384xf32>
    %180 = tpu.matmul %179, %9, %cst_78 {dimension_numbers = #tpu.dot_dimension_numbers<[1], [0], [0], [1], [0, 0, 1, 1], [], []>} : vector<8x128xf32>, vector<128x384xf32>, vector<8x384xf32> -> vector<8x384xf32>
    %181 = vector.broadcast %10 : vector<1x384xf32> to vector<8x384xf32>
    %182 = arith.addf %180, %181 : vector<8x384xf32>
    %183 = vector.extract_strided_slice %178 {offsets = [0, 0], sizes = [8, 128], strides = [1, 1]} : vector<8x384xf32> to vector<8x128xf32>
    %184 = vector.extract_strided_slice %182 {offsets = [0, 0], sizes = [8, 128], strides = [1, 1]} : vector<8x384xf32> to vector<8x128xf32>
    %185 = arith.addf %183, %184 : vector<8x128xf32>
    %186 = arith.negf %185 : vector<8x128xf32>
    %187 = math.exp %186 : vector<8x128xf32>
    %cst_79 = arith.constant 1.000000e+00 : f32
    %188 = vector.broadcast %cst_79 : f32 to vector<8x128xf32>
    %189 = arith.addf %188, %187 : vector<8x128xf32>
    %190 = arith.divf %188, %189 : vector<8x128xf32>
    %191 = vector.extract_strided_slice %178 {offsets = [0, 128], sizes = [8, 128], strides = [1, 1]} : vector<8x384xf32> to vector<8x128xf32>
    %192 = vector.extract_strided_slice %182 {offsets = [0, 128], sizes = [8, 128], strides = [1, 1]} : vector<8x384xf32> to vector<8x128xf32>
    %193 = arith.addf %191, %192 : vector<8x128xf32>
    %194 = arith.negf %193 : vector<8x128xf32>
    %195 = math.exp %194 : vector<8x128xf32>
    %cst_80 = arith.constant 1.000000e+00 : f32
    %196 = vector.broadcast %cst_80 : f32 to vector<8x128xf32>
    %197 = arith.addf %196, %195 : vector<8x128xf32>
    %198 = arith.divf %196, %197 : vector<8x128xf32>
    %199 = vector.extract_strided_slice %178 {offsets = [0, 256], sizes = [8, 128], strides = [1, 1]} : vector<8x384xf32> to vector<8x128xf32>
    %200 = vector.extract_strided_slice %182 {offsets = [0, 256], sizes = [8, 128], strides = [1, 1]} : vector<8x384xf32> to vector<8x128xf32>
    %201 = arith.mulf %190, %200 : vector<8x128xf32>
    %202 = arith.addf %199, %201 : vector<8x128xf32>
    %203 = math.tanh %202 : vector<8x128xf32>
    %cst_81 = arith.constant 1.000000e+00 : f32
    %204 = vector.broadcast %cst_81 : f32 to vector<8x128xf32>
    %205 = arith.subf %204, %198 : vector<8x128xf32>
    %206 = arith.mulf %205, %203 : vector<8x128xf32>
    %207 = arith.mulf %198, %179 : vector<8x128xf32>
    %208 = arith.addf %206, %207 : vector<8x128xf32>
    %c0_82 = arith.constant 0 : index
    %c0_83 = arith.constant 0 : index
    %209 = vector.load %arg10[%c0_82, %c0_83] : memref<8x128xf32, #tpu.memory_space<vmem>>, vector<8x128xf32>
    tpu.vector_store %arg10[%c0_82, %c0_83], %208 {strides = array<i32>} : memref<8x128xf32, #tpu.memory_space<vmem>>, vector<8x128xf32>,
    %cst_84 = arith.constant dense<0.000000e+00> : vector<8x128xf32>
    %210 = tpu.matmul %208, %11, %cst_84 {dimension_numbers = #tpu.dot_dimension_numbers<[1], [0], [0], [1], [0, 0, 1, 1], [], []>} : vector<8x128xf32>, vector<128x128xf32>, vector<8x128xf32> -> vector<8x128xf32>
    %211 = vector.broadcast %12 : vector<1x128xf32> to vector<8x128xf32>
    %212 = arith.addf %210, %211 : vector<8x128xf32>
    %cst_85 = arith.constant dense<0xFF800000> : vector<8xf32>
    %213 = vector.multi_reduction <maximumf>, %212, %cst_85 [1] : vector<8x128xf32> to vector<8xf32>
    %214 = vector.shape_cast %213 : vector<8xf32> to vector<8x1xf32>
    %215 = vector.broadcast %214 : vector<8x1xf32> to vector<8x128xf32>
    %216 = arith.subf %212, %215 : vector<8x128xf32>
    %217 = math.exp %216 : vector<8x128xf32>
    %cst_86 = arith.constant dense<0.000000e+00> : vector<8xf32>
    %218 = vector.multi_reduction <add>, %217, %cst_86 [1] : vector<8x128xf32> to vector<8xf32>
    %219 = vector.shape_cast %218 : vector<8xf32> to vector<8x1xf32>
    %220 = math.log %219 : vector<8x1xf32>
    %221 = vector.broadcast %220 : vector<8x1xf32> to vector<8x128xf32>
    %222 = arith.subf %216, %221 : vector<8x128xf32>
    %223 = arith.index_cast %175 : i32 to index
    %c0_87 = arith.constant 0 : index
    %c0_88 = arith.constant 0 : index
    %224 = vector.load %arg8[%223, %c0_87, %c0_88] : memref<8x8x128xf32, #tpu.memory_space<vmem>>, vector<1x8x128xf32>
    %225 = vector.shape_cast %224 : vector<1x8x128xf32> to vector<8x128xf32>
    %226 = vector.shape_cast %222 : vector<8x128xf32> to vector<1x8x128xf32>
    tpu.vector_store %arg8[%223, %c0_87, %c0_88], %226 {strides = array<i32>} : memref<8x8x128xf32, #tpu.memory_space<vmem>>, vector<1x8x128xf32>,
    %c4_i32 = arith.constant 4 : i32
    %c1_i32_89 = arith.constant 1 : i32
    %227 = arith.muli %c4_i32, %c1_i32_89 : i32
    %c0_i32_90 = arith.constant 0 : i32
    %228 = arith.addi %c0_i32_90, %227 : i32
    %229 = arith.index_cast %228 : i32 to index
    %c0_91 = arith.constant 0 : index
    %c0_92 = arith.constant 0 : index
    %230 = vector.load %arg11[%229, %c0_91, %c0_92] : memref<8x8x384xf32, #tpu.memory_space<vmem>>, vector<1x8x384xf32>
    %231 = vector.shape_cast %230 : vector<1x8x384xf32> to vector<8x384xf32>
    %c0_93 = arith.constant 0 : index
    %c0_94 = arith.constant 0 : index
    %232 = vector.load %arg10[%c0_93, %c0_94] : memref<8x128xf32, #tpu.memory_space<vmem>>, vector<8x128xf32>
    %cst_95 = arith.constant dense<0.000000e+00> : vector<8x384xf32>
    %233 = tpu.matmul %232, %9, %cst_95 {dimension_numbers = #tpu.dot_dimension_numbers<[1], [0], [0], [1], [0, 0, 1, 1], [], []>} : vector<8x128xf32>, vector<128x384xf32>, vector<8x384xf32> -> vector<8x384xf32>
    %234 = vector.broadcast %10 : vector<1x384xf32> to vector<8x384xf32>
    %235 = arith.addf %233, %234 : vector<8x384xf32>
    %236 = vector.extract_strided_slice %231 {offsets = [0, 0], sizes = [8, 128], strides = [1, 1]} : vector<8x384xf32> to vector<8x128xf32>
    %237 = vector.extract_strided_slice %235 {offsets = [0, 0], sizes = [8, 128], strides = [1, 1]} : vector<8x384xf32> to vector<8x128xf32>
    %238 = arith.addf %236, %237 : vector<8x128xf32>
    %239 = arith.negf %238 : vector<8x128xf32>
    %240 = math.exp %239 : vector<8x128xf32>
    %cst_96 = arith.constant 1.000000e+00 : f32
    %241 = vector.broadcast %cst_96 : f32 to vector<8x128xf32>
    %242 = arith.addf %241, %240 : vector<8x128xf32>
    %243 = arith.divf %241, %242 : vector<8x128xf32>
    %244 = vector.extract_strided_slice %231 {offsets = [0, 128], sizes = [8, 128], strides = [1, 1]} : vector<8x384xf32> to vector<8x128xf32>
    %245 = vector.extract_strided_slice %235 {offsets = [0, 128], sizes = [8, 128], strides = [1, 1]} : vector<8x384xf32> to vector<8x128xf32>
    %246 = arith.addf %244, %245 : vector<8x128xf32>
    %247 = arith.negf %246 : vector<8x128xf32>
    %248 = math.exp %247 : vector<8x128xf32>
    %cst_97 = arith.constant 1.000000e+00 : f32
    %249 = vector.broadcast %cst_97 : f32 to vector<8x128xf32>
    %250 = arith.addf %249, %248 : vector<8x128xf32>
    %251 = arith.divf %249, %250 : vector<8x128xf32>
    %252 = vector.extract_strided_slice %231 {offsets = [0, 256], sizes = [8, 128], strides = [1, 1]} : vector<8x384xf32> to vector<8x128xf32>
    %253 = vector.extract_strided_slice %235 {offsets = [0, 256], sizes = [8, 128], strides = [1, 1]} : vector<8x384xf32> to vector<8x128xf32>
    %254 = arith.mulf %243, %253 : vector<8x128xf32>
    %255 = arith.addf %252, %254 : vector<8x128xf32>
    %256 = math.tanh %255 : vector<8x128xf32>
    %cst_98 = arith.constant 1.000000e+00 : f32
    %257 = vector.broadcast %cst_98 : f32 to vector<8x128xf32>
    %258 = arith.subf %257, %251 : vector<8x128xf32>
    %259 = arith.mulf %258, %256 : vector<8x128xf32>
    %260 = arith.mulf %251, %232 : vector<8x128xf32>
    %261 = arith.addf %259, %260 : vector<8x128xf32>
    %c0_99 = arith.constant 0 : index
    %c0_100 = arith.constant 0 : index
    %262 = vector.load %arg10[%c0_99, %c0_100] : memref<8x128xf32, #tpu.memory_space<vmem>>, vector<8x128xf32>
    tpu.vector_store %arg10[%c0_99, %c0_100], %261 {strides = array<i32>} : memref<8x128xf32, #tpu.memory_space<vmem>>, vector<8x128xf32>,
    %cst_101 = arith.constant dense<0.000000e+00> : vector<8x128xf32>
    %263 = tpu.matmul %261, %11, %cst_101 {dimension_numbers = #tpu.dot_dimension_numbers<[1], [0], [0], [1], [0, 0, 1, 1], [], []>} : vector<8x128xf32>, vector<128x128xf32>, vector<8x128xf32> -> vector<8x128xf32>
    %264 = vector.broadcast %12 : vector<1x128xf32> to vector<8x128xf32>
    %265 = arith.addf %263, %264 : vector<8x128xf32>
    %cst_102 = arith.constant dense<0xFF800000> : vector<8xf32>
    %266 = vector.multi_reduction <maximumf>, %265, %cst_102 [1] : vector<8x128xf32> to vector<8xf32>
    %267 = vector.shape_cast %266 : vector<8xf32> to vector<8x1xf32>
    %268 = vector.broadcast %267 : vector<8x1xf32> to vector<8x128xf32>
    %269 = arith.subf %265, %268 : vector<8x128xf32>
    %270 = math.exp %269 : vector<8x128xf32>
    %cst_103 = arith.constant dense<0.000000e+00> : vector<8xf32>
    %271 = vector.multi_reduction <add>, %270, %cst_103 [1] : vector<8x128xf32> to vector<8xf32>
    %272 = vector.shape_cast %271 : vector<8xf32> to vector<8x1xf32>
    %273 = math.log %272 : vector<8x1xf32>
    %274 = vector.broadcast %273 : vector<8x1xf32> to vector<8x128xf32>
    %275 = arith.subf %269, %274 : vector<8x128xf32>
    %276 = arith.index_cast %228 : i32 to index
    %c0_104 = arith.constant 0 : index
    %c0_105 = arith.constant 0 : index
    %277 = vector.load %arg8[%276, %c0_104, %c0_105] : memref<8x8x128xf32, #tpu.memory_space<vmem>>, vector<1x8x128xf32>
    %278 = vector.shape_cast %277 : vector<1x8x128xf32> to vector<8x128xf32>
    %279 = vector.shape_cast %275 : vector<8x128xf32> to vector<1x8x128xf32>
    tpu.vector_store %arg8[%276, %c0_104, %c0_105], %279 {strides = array<i32>} : memref<8x8x128xf32, #tpu.memory_space<vmem>>, vector<1x8x128xf32>,
    %c5_i32 = arith.constant 5 : i32
    %c1_i32_106 = arith.constant 1 : i32
    %280 = arith.muli %c5_i32, %c1_i32_106 : i32
    %c0_i32_107 = arith.constant 0 : i32
    %281 = arith.addi %c0_i32_107, %280 : i32
    %282 = arith.index_cast %281 : i32 to index
    %c0_108 = arith.constant 0 : index
    %c0_109 = arith.constant 0 : index
    %283 = vector.load %arg11[%282, %c0_108, %c0_109] : memref<8x8x384xf32, #tpu.memory_space<vmem>>, vector<1x8x384xf32>
    %284 = vector.shape_cast %283 : vector<1x8x384xf32> to vector<8x384xf32>
    %c0_110 = arith.constant 0 : index
    %c0_111 = arith.constant 0 : index
    %285 = vector.load %arg10[%c0_110, %c0_111] : memref<8x128xf32, #tpu.memory_space<vmem>>, vector<8x128xf32>
    %cst_112 = arith.constant dense<0.000000e+00> : vector<8x384xf32>
    %286 = tpu.matmul %285, %9, %cst_112 {dimension_numbers = #tpu.dot_dimension_numbers<[1], [0], [0], [1], [0, 0, 1, 1], [], []>} : vector<8x128xf32>, vector<128x384xf32>, vector<8x384xf32> -> vector<8x384xf32>
    %287 = vector.broadcast %10 : vector<1x384xf32> to vector<8x384xf32>
    %288 = arith.addf %286, %287 : vector<8x384xf32>
    %289 = vector.extract_strided_slice %284 {offsets = [0, 0], sizes = [8, 128], strides = [1, 1]} : vector<8x384xf32> to vector<8x128xf32>
    %290 = vector.extract_strided_slice %288 {offsets = [0, 0], sizes = [8, 128], strides = [1, 1]} : vector<8x384xf32> to vector<8x128xf32>
    %291 = arith.addf %289, %290 : vector<8x128xf32>
    %292 = arith.negf %291 : vector<8x128xf32>
    %293 = math.exp %292 : vector<8x128xf32>
    %cst_113 = arith.constant 1.000000e+00 : f32
    %294 = vector.broadcast %cst_113 : f32 to vector<8x128xf32>
    %295 = arith.addf %294, %293 : vector<8x128xf32>
    %296 = arith.divf %294, %295 : vector<8x128xf32>
    %297 = vector.extract_strided_slice %284 {offsets = [0, 128], sizes = [8, 128], strides = [1, 1]} : vector<8x384xf32> to vector<8x128xf32>
    %298 = vector.extract_strided_slice %288 {offsets = [0, 128], sizes = [8, 128], strides = [1, 1]} : vector<8x384xf32> to vector<8x128xf32>
    %299 = arith.addf %297, %298 : vector<8x128xf32>
    %300 = arith.negf %299 : vector<8x128xf32>
    %301 = math.exp %300 : vector<8x128xf32>
    %cst_114 = arith.constant 1.000000e+00 : f32
    %302 = vector.broadcast %cst_114 : f32 to vector<8x128xf32>
    %303 = arith.addf %302, %301 : vector<8x128xf32>
    %304 = arith.divf %302, %303 : vector<8x128xf32>
    %305 = vector.extract_strided_slice %284 {offsets = [0, 256], sizes = [8, 128], strides = [1, 1]} : vector<8x384xf32> to vector<8x128xf32>
    %306 = vector.extract_strided_slice %288 {offsets = [0, 256], sizes = [8, 128], strides = [1, 1]} : vector<8x384xf32> to vector<8x128xf32>
    %307 = arith.mulf %296, %306 : vector<8x128xf32>
    %308 = arith.addf %305, %307 : vector<8x128xf32>
    %309 = math.tanh %308 : vector<8x128xf32>
    %cst_115 = arith.constant 1.000000e+00 : f32
    %310 = vector.broadcast %cst_115 : f32 to vector<8x128xf32>
    %311 = arith.subf %310, %304 : vector<8x128xf32>
    %312 = arith.mulf %311, %309 : vector<8x128xf32>
    %313 = arith.mulf %304, %285 : vector<8x128xf32>
    %314 = arith.addf %312, %313 : vector<8x128xf32>
    %c0_116 = arith.constant 0 : index
    %c0_117 = arith.constant 0 : index
    %315 = vector.load %arg10[%c0_116, %c0_117] : memref<8x128xf32, #tpu.memory_space<vmem>>, vector<8x128xf32>
    tpu.vector_store %arg10[%c0_116, %c0_117], %314 {strides = array<i32>} : memref<8x128xf32, #tpu.memory_space<vmem>>, vector<8x128xf32>,
    %cst_118 = arith.constant dense<0.000000e+00> : vector<8x128xf32>
    %316 = tpu.matmul %314, %11, %cst_118 {dimension_numbers = #tpu.dot_dimension_numbers<[1], [0], [0], [1], [0, 0, 1, 1], [], []>} : vector<8x128xf32>, vector<128x128xf32>, vector<8x128xf32> -> vector<8x128xf32>
    %317 = vector.broadcast %12 : vector<1x128xf32> to vector<8x128xf32>
    %318 = arith.addf %316, %317 : vector<8x128xf32>
    %cst_119 = arith.constant dense<0xFF800000> : vector<8xf32>
    %319 = vector.multi_reduction <maximumf>, %318, %cst_119 [1] : vector<8x128xf32> to vector<8xf32>
    %320 = vector.shape_cast %319 : vector<8xf32> to vector<8x1xf32>
    %321 = vector.broadcast %320 : vector<8x1xf32> to vector<8x128xf32>
    %322 = arith.subf %318, %321 : vector<8x128xf32>
    %323 = math.exp %322 : vector<8x128xf32>
    %cst_120 = arith.constant dense<0.000000e+00> : vector<8xf32>
    %324 = vector.multi_reduction <add>, %323, %cst_120 [1] : vector<8x128xf32> to vector<8xf32>
    %325 = vector.shape_cast %324 : vector<8xf32> to vector<8x1xf32>
    %326 = math.log %325 : vector<8x1xf32>
    %327 = vector.broadcast %326 : vector<8x1xf32> to vector<8x128xf32>
    %328 = arith.subf %322, %327 : vector<8x128xf32>
    %329 = arith.index_cast %281 : i32 to index
    %c0_121 = arith.constant 0 : index
    %c0_122 = arith.constant 0 : index
    %330 = vector.load %arg8[%329, %c0_121, %c0_122] : memref<8x8x128xf32, #tpu.memory_space<vmem>>, vector<1x8x128xf32>
    %331 = vector.shape_cast %330 : vector<1x8x128xf32> to vector<8x128xf32>
    %332 = vector.shape_cast %328 : vector<8x128xf32> to vector<1x8x128xf32>
    tpu.vector_store %arg8[%329, %c0_121, %c0_122], %332 {strides = array<i32>} : memref<8x8x128xf32, #tpu.memory_space<vmem>>, vector<1x8x128xf32>,
    %c6_i32 = arith.constant 6 : i32
    %c1_i32_123 = arith.constant 1 : i32
    %333 = arith.muli %c6_i32, %c1_i32_123 : i32
    %c0_i32_124 = arith.constant 0 : i32
    %334 = arith.addi %c0_i32_124, %333 : i32
    %335 = arith.index_cast %334 : i32 to index
    %c0_125 = arith.constant 0 : index
    %c0_126 = arith.constant 0 : index
    %336 = vector.load %arg11[%335, %c0_125, %c0_126] : memref<8x8x384xf32, #tpu.memory_space<vmem>>, vector<1x8x384xf32>
    %337 = vector.shape_cast %336 : vector<1x8x384xf32> to vector<8x384xf32>
    %c0_127 = arith.constant 0 : index
    %c0_128 = arith.constant 0 : index
    %338 = vector.load %arg10[%c0_127, %c0_128] : memref<8x128xf32, #tpu.memory_space<vmem>>, vector<8x128xf32>
    %cst_129 = arith.constant dense<0.000000e+00> : vector<8x384xf32>
    %339 = tpu.matmul %338, %9, %cst_129 {dimension_numbers = #tpu.dot_dimension_numbers<[1], [0], [0], [1], [0, 0, 1, 1], [], []>} : vector<8x128xf32>, vector<128x384xf32>, vector<8x384xf32> -> vector<8x384xf32>
    %340 = vector.broadcast %10 : vector<1x384xf32> to vector<8x384xf32>
    %341 = arith.addf %339, %340 : vector<8x384xf32>
    %342 = vector.extract_strided_slice %337 {offsets = [0, 0], sizes = [8, 128], strides = [1, 1]} : vector<8x384xf32> to vector<8x128xf32>
    %343 = vector.extract_strided_slice %341 {offsets = [0, 0], sizes = [8, 128], strides = [1, 1]} : vector<8x384xf32> to vector<8x128xf32>
    %344 = arith.addf %342, %343 : vector<8x128xf32>
    %345 = arith.negf %344 : vector<8x128xf32>
    %346 = math.exp %345 : vector<8x128xf32>
    %cst_130 = arith.constant 1.000000e+00 : f32
    %347 = vector.broadcast %cst_130 : f32 to vector<8x128xf32>
    %348 = arith.addf %347, %346 : vector<8x128xf32>
    %349 = arith.divf %347, %348 : vector<8x128xf32>
    %350 = vector.extract_strided_slice %337 {offsets = [0, 128], sizes = [8, 128], strides = [1, 1]} : vector<8x384xf32> to vector<8x128xf32>
    %351 = vector.extract_strided_slice %341 {offsets = [0, 128], sizes = [8, 128], strides = [1, 1]} : vector<8x384xf32> to vector<8x128xf32>
    %352 = arith.addf %350, %351 : vector<8x128xf32>
    %353 = arith.negf %352 : vector<8x128xf32>
    %354 = math.exp %353 : vector<8x128xf32>
    %cst_131 = arith.constant 1.000000e+00 : f32
    %355 = vector.broadcast %cst_131 : f32 to vector<8x128xf32>
    %356 = arith.addf %355, %354 : vector<8x128xf32>
    %357 = arith.divf %355, %356 : vector<8x128xf32>
    %358 = vector.extract_strided_slice %337 {offsets = [0, 256], sizes = [8, 128], strides = [1, 1]} : vector<8x384xf32> to vector<8x128xf32>
    %359 = vector.extract_strided_slice %341 {offsets = [0, 256], sizes = [8, 128], strides = [1, 1]} : vector<8x384xf32> to vector<8x128xf32>
    %360 = arith.mulf %349, %359 : vector<8x128xf32>
    %361 = arith.addf %358, %360 : vector<8x128xf32>
    %362 = math.tanh %361 : vector<8x128xf32>
    %cst_132 = arith.constant 1.000000e+00 : f32
    %363 = vector.broadcast %cst_132 : f32 to vector<8x128xf32>
    %364 = arith.subf %363, %357 : vector<8x128xf32>
    %365 = arith.mulf %364, %362 : vector<8x128xf32>
    %366 = arith.mulf %357, %338 : vector<8x128xf32>
    %367 = arith.addf %365, %366 : vector<8x128xf32>
    %c0_133 = arith.constant 0 : index
    %c0_134 = arith.constant 0 : index
    %368 = vector.load %arg10[%c0_133, %c0_134] : memref<8x128xf32, #tpu.memory_space<vmem>>, vector<8x128xf32>
    tpu.vector_store %arg10[%c0_133, %c0_134], %367 {strides = array<i32>} : memref<8x128xf32, #tpu.memory_space<vmem>>, vector<8x128xf32>,
    %cst_135 = arith.constant dense<0.000000e+00> : vector<8x128xf32>
    %369 = tpu.matmul %367, %11, %cst_135 {dimension_numbers = #tpu.dot_dimension_numbers<[1], [0], [0], [1], [0, 0, 1, 1], [], []>} : vector<8x128xf32>, vector<128x128xf32>, vector<8x128xf32> -> vector<8x128xf32>
    %370 = vector.broadcast %12 : vector<1x128xf32> to vector<8x128xf32>
    %371 = arith.addf %369, %370 : vector<8x128xf32>
    %cst_136 = arith.constant dense<0xFF800000> : vector<8xf32>
    %372 = vector.multi_reduction <maximumf>, %371, %cst_136 [1] : vector<8x128xf32> to vector<8xf32>
    %373 = vector.shape_cast %372 : vector<8xf32> to vector<8x1xf32>
    %374 = vector.broadcast %373 : vector<8x1xf32> to vector<8x128xf32>
    %375 = arith.subf %371, %374 : vector<8x128xf32>
    %376 = math.exp %375 : vector<8x128xf32>
    %cst_137 = arith.constant dense<0.000000e+00> : vector<8xf32>
    %377 = vector.multi_reduction <add>, %376, %cst_137 [1] : vector<8x128xf32> to vector<8xf32>
    %378 = vector.shape_cast %377 : vector<8xf32> to vector<8x1xf32>
    %379 = math.log %378 : vector<8x1xf32>
    %380 = vector.broadcast %379 : vector<8x1xf32> to vector<8x128xf32>
    %381 = arith.subf %375, %380 : vector<8x128xf32>
    %382 = arith.index_cast %334 : i32 to index
    %c0_138 = arith.constant 0 : index
    %c0_139 = arith.constant 0 : index
    %383 = vector.load %arg8[%382, %c0_138, %c0_139] : memref<8x8x128xf32, #tpu.memory_space<vmem>>, vector<1x8x128xf32>
    %384 = vector.shape_cast %383 : vector<1x8x128xf32> to vector<8x128xf32>
    %385 = vector.shape_cast %381 : vector<8x128xf32> to vector<1x8x128xf32>
    tpu.vector_store %arg8[%382, %c0_138, %c0_139], %385 {strides = array<i32>} : memref<8x8x128xf32, #tpu.memory_space<vmem>>, vector<1x8x128xf32>,
    %c7_i32 = arith.constant 7 : i32
    %c1_i32_140 = arith.constant 1 : i32
    %386 = arith.muli %c7_i32, %c1_i32_140 : i32
    %c0_i32_141 = arith.constant 0 : i32
    %387 = arith.addi %c0_i32_141, %386 : i32
    %388 = arith.index_cast %387 : i32 to index
    %c0_142 = arith.constant 0 : index
    %c0_143 = arith.constant 0 : index
    %389 = vector.load %arg11[%388, %c0_142, %c0_143] : memref<8x8x384xf32, #tpu.memory_space<vmem>>, vector<1x8x384xf32>
    %390 = vector.shape_cast %389 : vector<1x8x384xf32> to vector<8x384xf32>
    %c0_144 = arith.constant 0 : index
    %c0_145 = arith.constant 0 : index
    %391 = vector.load %arg10[%c0_144, %c0_145] : memref<8x128xf32, #tpu.memory_space<vmem>>, vector<8x128xf32>
    %cst_146 = arith.constant dense<0.000000e+00> : vector<8x384xf32>
    %392 = tpu.matmul %391, %9, %cst_146 {dimension_numbers = #tpu.dot_dimension_numbers<[1], [0], [0], [1], [0, 0, 1, 1], [], []>} : vector<8x128xf32>, vector<128x384xf32>, vector<8x384xf32> -> vector<8x384xf32>
    %393 = vector.broadcast %10 : vector<1x384xf32> to vector<8x384xf32>
    %394 = arith.addf %392, %393 : vector<8x384xf32>
    %395 = vector.extract_strided_slice %390 {offsets = [0, 0], sizes = [8, 128], strides = [1, 1]} : vector<8x384xf32> to vector<8x128xf32>
    %396 = vector.extract_strided_slice %394 {offsets = [0, 0], sizes = [8, 128], strides = [1, 1]} : vector<8x384xf32> to vector<8x128xf32>
    %397 = arith.addf %395, %396 : vector<8x128xf32>
    %398 = arith.negf %397 : vector<8x128xf32>
    %399 = math.exp %398 : vector<8x128xf32>
    %cst_147 = arith.constant 1.000000e+00 : f32
    %400 = vector.broadcast %cst_147 : f32 to vector<8x128xf32>
    %401 = arith.addf %400, %399 : vector<8x128xf32>
    %402 = arith.divf %400, %401 : vector<8x128xf32>
    %403 = vector.extract_strided_slice %390 {offsets = [0, 128], sizes = [8, 128], strides = [1, 1]} : vector<8x384xf32> to vector<8x128xf32>
    %404 = vector.extract_strided_slice %394 {offsets = [0, 128], sizes = [8, 128], strides = [1, 1]} : vector<8x384xf32> to vector<8x128xf32>
    %405 = arith.addf %403, %404 : vector<8x128xf32>
    %406 = arith.negf %405 : vector<8x128xf32>
    %407 = math.exp %406 : vector<8x128xf32>
    %cst_148 = arith.constant 1.000000e+00 : f32
    %408 = vector.broadcast %cst_148 : f32 to vector<8x128xf32>
    %409 = arith.addf %408, %407 : vector<8x128xf32>
    %410 = arith.divf %408, %409 : vector<8x128xf32>
    %411 = vector.extract_strided_slice %390 {offsets = [0, 256], sizes = [8, 128], strides = [1, 1]} : vector<8x384xf32> to vector<8x128xf32>
    %412 = vector.extract_strided_slice %394 {offsets = [0, 256], sizes = [8, 128], strides = [1, 1]} : vector<8x384xf32> to vector<8x128xf32>
    %413 = arith.mulf %402, %412 : vector<8x128xf32>
    %414 = arith.addf %411, %413 : vector<8x128xf32>
    %415 = math.tanh %414 : vector<8x128xf32>
    %cst_149 = arith.constant 1.000000e+00 : f32
    %416 = vector.broadcast %cst_149 : f32 to vector<8x128xf32>
    %417 = arith.subf %416, %410 : vector<8x128xf32>
    %418 = arith.mulf %417, %415 : vector<8x128xf32>
    %419 = arith.mulf %410, %391 : vector<8x128xf32>
    %420 = arith.addf %418, %419 : vector<8x128xf32>
    %c0_150 = arith.constant 0 : index
    %c0_151 = arith.constant 0 : index
    %421 = vector.load %arg10[%c0_150, %c0_151] : memref<8x128xf32, #tpu.memory_space<vmem>>, vector<8x128xf32>
    tpu.vector_store %arg10[%c0_150, %c0_151], %420 {strides = array<i32>} : memref<8x128xf32, #tpu.memory_space<vmem>>, vector<8x128xf32>,
    %cst_152 = arith.constant dense<0.000000e+00> : vector<8x128xf32>
    %422 = tpu.matmul %420, %11, %cst_152 {dimension_numbers = #tpu.dot_dimension_numbers<[1], [0], [0], [1], [0, 0, 1, 1], [], []>} : vector<8x128xf32>, vector<128x128xf32>, vector<8x128xf32> -> vector<8x128xf32>
    %423 = vector.broadcast %12 : vector<1x128xf32> to vector<8x128xf32>
    %424 = arith.addf %422, %423 : vector<8x128xf32>
    %cst_153 = arith.constant dense<0xFF800000> : vector<8xf32>
    %425 = vector.multi_reduction <maximumf>, %424, %cst_153 [1] : vector<8x128xf32> to vector<8xf32>
    %426 = vector.shape_cast %425 : vector<8xf32> to vector<8x1xf32>
    %427 = vector.broadcast %426 : vector<8x1xf32> to vector<8x128xf32>
    %428 = arith.subf %424, %427 : vector<8x128xf32>
    %429 = math.exp %428 : vector<8x128xf32>
    %cst_154 = arith.constant dense<0.000000e+00> : vector<8xf32>
    %430 = vector.multi_reduction <add>, %429, %cst_154 [1] : vector<8x128xf32> to vector<8xf32>
    %431 = vector.shape_cast %430 : vector<8xf32> to vector<8x1xf32>
    %432 = math.log %431 : vector<8x1xf32>
    %433 = vector.broadcast %432 : vector<8x1xf32> to vector<8x128xf32>
    %434 = arith.subf %428, %433 : vector<8x128xf32>
    %435 = arith.index_cast %387 : i32 to index
    %c0_155 = arith.constant 0 : index
    %c0_156 = arith.constant 0 : index
    %436 = vector.load %arg8[%435, %c0_155, %c0_156] : memref<8x8x128xf32, #tpu.memory_space<vmem>>, vector<1x8x128xf32>
    %437 = vector.shape_cast %436 : vector<1x8x128xf32> to vector<8x128xf32>
    %438 = vector.shape_cast %434 : vector<8x128xf32> to vector<1x8x128xf32>
    tpu.vector_store %arg8[%435, %c0_155, %c0_156], %438 {strides = array<i32>} : memref<8x8x128xf32, #tpu.memory_space<vmem>>, vector<1x8x128xf32>,
    %c8_i32 = arith.constant 8 : i32
    %c0_157 = arith.constant 0 : index
    %c0_158 = arith.constant 0 : index
    %439 = vector.load %arg10[%c0_157, %c0_158] : memref<8x128xf32, #tpu.memory_space<vmem>>, vector<8x128xf32>
    %c0_159 = arith.constant 0 : index
    %c0_160 = arith.constant 0 : index
    %440 = vector.load %arg9[%c0_159, %c0_160] : memref<8x128xf32, #tpu.memory_space<vmem>>, vector<8x128xf32>
    tpu.vector_store %arg9[%c0_159, %c0_160], %439 {strides = array<i32>} : memref<8x128xf32, #tpu.memory_space<vmem>>, vector<8x128xf32>,
    return
  }
}

</mosaic_0001>

<llo_original>
// kernel: gru_forward.1
$region0: #{gru_forward.1}
  #allocation0 [shape = 'u32[]', space=smem, size = 0x4, offset = 0x4, fixed_abs, tag = 'smem constant byte address 0x4 - core index']
  #allocation1 [shape = 'u32[144,128]{1,0:T(1,128)}', space=vmem, size = 0x12000, scoped, tag = 'internal scratch']
  #allocation2 [shape = 'f32[8,128]{1,0:T(8,128)}', space=vmem, size = 0x1000, scoped, tag = 'scratch operand']
  #allocation3 [shape = 'f32[8,8,384]{2,1,0:T(8,128)}', space=vmem, size = 0x18000, scoped, tag = 'scratch operand']
  %s0 = inlined_call_operand.vmem [shape: f32[8,8,128], index: 0, kind: input, shape index: {}]
  %s1 = inlined_call_operand.vmem [shape: f32[8,128], index: 1, kind: input, shape index: {}]
  %s2 = inlined_call_operand.hbm [shape: f32[128,384], index: 2, kind: input, shape index: {}]
  %s3 = inlined_call_operand.hbm [shape: f32[128,384], index: 3, kind: input, shape index: {}]
  %s4 = inlined_call_operand.vmem [shape: f32[1,384], index: 4, kind: input, shape index: {}]
  %s5 = inlined_call_operand.vmem [shape: f32[1,384], index: 5, kind: input, shape index: {}]
  %s6 = inlined_call_operand.vmem [shape: f32[128,128], index: 6, kind: input, shape index: {}]
  %s7 = inlined_call_operand.vmem [shape: f32[1,128], index: 7, kind: input, shape index: {}]
  %s8 = inlined_call_operand.hbm [shape: f32[8,8,128], index: 8, kind: output, shape index: {0}]
  %s9 = inlined_call_operand.vmem [shape: f32[8,128], index: 9, kind: output, shape index: {1}]
  %10 = xla_tuple %s8, %s9
  %s11 = sld [smem:[#allocation0]]
  $region58: #{gru_forward.1} parent=0
    _
  %s13 = ssub.s32 1, %s11
  %s14 = scalar_select 0, %s13, %s11
  $region1: #{gru_forward.1} parent=0
    #allocation4 [shape = 'u8[196608]{0}', space=vmem, size = 0x30000, scoped, tag = 'input window, operand 2, single buffered']
    #allocation5 [shape = 's32[1]{0}', space=sflag, size = 0x4, scoped, tag = 'scoped memory for gru_forward.1']
    #allocation6 [shape = 's32[1]{0}', space=sflag, size = 0x4, scoped, tag = 'scoped memory for gru_forward.1']
    #allocation7 [shape = 'u8[196608]{0}', space=vmem, size = 0x30000, scoped, tag = 'input window, operand 3, single buffered']
    #allocation8 [shape = 's32[1]{0}', space=sflag, size = 0x4, scoped, tag = 'scoped memory for gru_forward.1']
    #allocation9 [shape = 'u8[32768]{0}', space=vmem, size = 0x8000, scoped, tag = 'output window, operand 0, single buffered']
    %15 = vsyncpa [#allocation5], 0
    %16 = vsyncpa [#allocation8], 0
    %17 = vsyncpa [#allocation6], 0
    // Predicated region
    $region2: #{gru_forward.1} parent=1 // pred_check
      _
    $region3: #{gru_forward.1} parent=1 // pred_check_branch
      %19 = sbr.rel (0) target = $region5
    $region4: #{gru_forward.1} parent=1 // pred_region
      _
    $region5: #{gru_forward.1} parent=1 // pred_fallthru
      _
    // Predicated region
    $region6: #{gru_forward.1} parent=1 // pred_check
      _
    $region7: #{gru_forward.1} parent=1 // pred_check_branch
      %21 = sbr.rel (0) target = $region9
    $region8: #{gru_forward.1} parent=1 // pred_region
      _
    $region9: #{gru_forward.1} parent=1 // pred_fallthru
      _
    // Predicated region
    $region10: #{gru_forward.1} parent=1 // pred_check
      _
    $region11: #{gru_forward.1} parent=1 // pred_check_branch
      %23 = sbr.rel (0) target = $region13
    $region12: #{gru_forward.1} parent=1 // pred_region
      %s25 = ssub.s32 6144, 6144
      %26 = vsyncadd [#allocation5], %s25
      %s27 = sshll.u32 [#allocation4], 4
      %s28 = int_to_ptr.vmem [resolvable:$true] %s27
      %33 = dma.hbm_to_vmem [thread:$0]  %s2, 6144, %s28, [#allocation5], 384, 384, 24
    $region13: #{gru_forward.1} parent=1 // pred_fallthru
      _
    // Predicated region
    $region14: #{gru_forward.1} parent=1 // pred_check
      _
    $region15: #{gru_forward.1} parent=1 // pred_check_branch
      %35 = sbr.rel (0) target = $region17
    $region16: #{gru_forward.1} parent=1 // pred_region
      %s37 = ssub.s32 6144, 6144
      %38 = vsyncadd [#allocation8], %s37
      %s39 = sshll.u32 [#allocation7], 4
      %s40 = int_to_ptr.vmem [resolvable:$true] %s39
      %45 = dma.hbm_to_vmem [thread:$0]  %s3, 6144, %s40, [#allocation8], 384, 384, 24
    $region17: #{gru_forward.1} parent=1 // pred_fallthru
      _
    // Predicated region
    $region18: #{gru_forward.1} parent=1 // pred_check
      _
    $region19: #{gru_forward.1} parent=1 // pred_check_branch
      %47 = sbr.rel (0) target = $region21
    $region20: #{gru_forward.1} parent=1 // pred_region
      _
    $region21: #{gru_forward.1} parent=1 // pred_fallthru
      _
    // Predicated region
    $region22: #{gru_forward.1} parent=1 // pred_check
      _
    $region23: #{gru_forward.1} parent=1 // pred_check_branch
      %49 = sbr.rel (0) target = $region25
    $region24: #{gru_forward.1} parent=1 // pred_region
      _
    $region25: #{gru_forward.1} parent=1 // pred_fallthru
      _
    // Predicated region
    $region26: #{gru_forward.1} parent=1 // pred_check
      _
    $region27: #{gru_forward.1} parent=1 // pred_check_branch
      %51 = sbr.rel (0) target = $region29
    $region28: #{gru_forward.1} parent=1 // pred_region
      _
    $region29: #{gru_forward.1} parent=1 // pred_fallthru
      _
    // Predicated region
    $region30: #{gru_forward.1} parent=1 // pred_check
      _
    $region31: #{gru_forward.1} parent=1 // pred_check_branch
      %53 = sbr.rel (0) target = $region33
    $region32: #{gru_forward.1} parent=1 // pred_region
      _
    $region33: #{gru_forward.1} parent=1 // pred_fallthru
      _
    // Predicated region
    $region34: #{gru_forward.1} parent=1 // pred_check
      _
    $region35: #{gru_forward.1} parent=1 // pred_check_branch
      %55 = sbr.rel (0) target = $region37
    $region36: #{gru_forward.1} parent=1 // pred_region
      %56 = dma.done [#allocation5], 6144
    $region37: #{gru_forward.1} parent=1 // pred_fallthru
      _
    // Predicated region
    $region38: #{gru_forward.1} parent=1 // pred_check
      _
    $region39: #{gru_forward.1} parent=1 // pred_check_branch
      %58 = sbr.rel (0) target = $region41
    $region40: #{gru_forward.1} parent=1 // pred_region
      %59 = dma.done [#allocation8], 6144
    $region41: #{gru_forward.1} parent=1 // pred_fallthru
      _
    %v60 = vld [vmem:[%s0] sm:$0xff]
    %v61 = vld [vmem:[%s0 + $0x8] sm:$0xff]
    %v62 = vld [vmem:[%s0 + $0x10] sm:$0xff]
    %v63 = vld [vmem:[%s0 + $0x18] sm:$0xff]
    %v64 = vld [vmem:[%s0 + $0x20] sm:$0xff]
    %v65 = vld [vmem:[%s0 + $0x28] sm:$0xff]
    %v66 = vld [vmem:[%s0 + $0x30] sm:$0xff]
    %v67 = vld [vmem:[%s0 + $0x38] sm:$0xff]
    %v68 = vld [vmem:[#allocation4] sm:$0xff]
    %v69 = vld [vmem:[#allocation4 + $0x8] sm:$0xff]
    %v70 = vld [vmem:[#allocation4 + $0x10] sm:$0xff]
    %v71 = vld [vmem:[#allocation4 + $0x18] sm:$0xff]
    %v72 = vld [vmem:[#allocation4 + $0x20] sm:$0xff]
    %v73 = vld [vmem:[#allocation4 + $0x28] sm:$0xff]
    %v74 = vld [vmem:[#allocation4 + $0x30] sm:$0xff]
    %v75 = vld [vmem:[#allocation4 + $0x38] sm:$0xff]
    %v76 = vld [vmem:[#allocation4 + $0x40] sm:$0xff]
    %v77 = vld [vmem:[#allocation4 + $0x48] sm:$0xff]
    %v78 = vld [vmem:[#allocation4 + $0x50] sm:$0xff]
    %v79 = vld [vmem:[#allocation4 + $0x58] sm:$0xff]
    %v80 = vld [vmem:[#allocation4 + $0x60] sm:$0xff]
    %v81 = vld [vmem:[#allocation4 + $0x68] sm:$0xff]
    %v82 = vld [vmem:[#allocation4 + $0x70] sm:$0xff]
    %v83 = vld [vmem:[#allocation4 + $0x78] sm:$0xff]
    %v84 = vld [vmem:[#allocation4 + $0x80] sm:$0xff]
    %v85 = vld [vmem:[#allocation4 + $0x88] sm:$0xff]
    %v86 = vld [vmem:[#allocation4 + $0x90] sm:$0xff]
    %v87 = vld [vmem:[#allocation4 + $0x98] sm:$0xff]
    %v88 = vld [vmem:[#allocation4 + $0xa0] sm:$0xff]
    %v89 = vld [vmem:[#allocation4 + $0xa8] sm:$0xff]
    %v90 = vld [vmem:[#allocation4 + $0xb0] sm:$0xff]
    %v91 = vld [vmem:[#allocation4 + $0xb8] sm:$0xff]
    %v92 = vld [vmem:[#allocation4 + $0xc0] sm:$0xff]
    %v93 = vld [vmem:[#allocation4 + $0xc8] sm:$0xff]
    %v94 = vld [vmem:[#allocation4 + $0xd0] sm:$0xff]
    %v95 = vld [vmem:[#allocation4 + $0xd8] sm:$0xff]
    %v96 = vld [vmem:[#allocation4 + $0xe0] sm:$0xff]
    %v97 = vld [vmem:[#allocation4 + $0xe8] sm:$0xff]
    %v98 = vld [vmem:[#allocation4 + $0xf0] sm:$0xff]
    %v99 = vld [vmem:[#allocation4 + $0xf8] sm:$0xff]
    %v100 = vld [vmem:[#allocation4 + $0x100] sm:$0xff]
    %v101 = vld [vmem:[#allocation4 + $0x108] sm:$0xff]
    %v102 = vld [vmem:[#allocation4 + $0x110] sm:$0xff]
    %v103 = vld [vmem:[#allocation4 + $0x118] sm:$0xff]
    %v104 = vld [vmem:[#allocation4 + $0x120] sm:$0xff]
    %v105 = vld [vmem:[#allocation4 + $0x128] sm:$0xff]
    %v106 = vld [vmem:[#allocation4 + $0x130] sm:$0xff]
    %v107 = vld [vmem:[#allocation4 + $0x138] sm:$0xff]
    %v108 = vld [vmem:[#allocation4 + $0x140] sm:$0xff]
    %v109 = vld [vmem:[#allocation4 + $0x148] sm:$0xff]
    %v110 = vld [vmem:[#allocation4 + $0x150] sm:$0xff]
    %v111 = vld [vmem:[#allocation4 + $0x158] sm:$0xff]
    %v112 = vld [vmem:[#allocation4 + $0x160] sm:$0xff]
    %v113 = vld [vmem:[#allocation4 + $0x168] sm:$0xff]
    %v114 = vld [vmem:[#allocation4 + $0x170] sm:$0xff]
    %v115 = vld [vmem:[#allocation4 + $0x178] sm:$0xff]
    %v116 = vld [vmem:[%s4] sm:$0x7]
    %v118 = vlaneseq
    %v119 = vshrl.u32 %v118, 7
    %v120 = vsub.s32 0, %v119
    %v121 = vrot.slane %v116, %v120
    %v122 = vlaneseq
    %v123 = vshrl.u32 %v122, 7
    %v124 = vsub.s32 1, %v123
    %v125 = vrot.slane %v116, %v124
    %v126 = vlaneseq
    %v127 = vshrl.u32 %v126, 7
    %v128 = vsub.s32 2, %v127
    %v129 = vrot.slane %v116, %v128
    %133 = vmatprep.subr.mxu0 %v114
    %134 = vmatpush1.msra.mxu0 %v113
    %135 = vmatprep.subr.mxu0 %v111
    %136 = vmatpush1.msra.mxu0 %v110
    %137 = vmatprep.subr.mxu0 %v108
    %138 = vmatpush1.msra.mxu0 %v107
    %139 = vmatprep.subr.mxu0 %v105
    %140 = vmatpush1.msra.mxu0 %v104
    %141 = vmatprep.subr.mxu0 %v102
    %142 = vmatpush1.msra.mxu0 %v101
    %143 = vmatprep.subr.mxu0 %v99
    %144 = vmatpush1.msra.mxu0 %v98
    %145 = vmatprep.subr.mxu0 %v96
    %146 = vmatpush1.msra.mxu0 %v95
    %147 = vmatprep.subr.mxu0 %v93
    %148 = vmatpush1.msra.mxu0 %v92
    %149 = vmatprep.subr.mxu0 %v90
    %150 = vmatpush1.msra.mxu0 %v89
    %151 = vmatprep.subr.mxu0 %v87
    %152 = vmatpush1.msra.mxu0 %v86
    %153 = vmatprep.subr.mxu0 %v84
    %154 = vmatpush1.msra.mxu0 %v83
    %155 = vmatprep.subr.mxu0 %v81
    %156 = vmatpush1.msra.mxu0 %v80
    %157 = vmatprep.subr.mxu0 %v78
    %158 = vmatpush1.msra.mxu0 %v77
    %159 = vmatprep.subr.mxu0 %v75
    %160 = vmatpush1.msra.mxu0 %v74
    %161 = vmatprep.subr.mxu0 %v72
    %162 = vmatpush1.msra.mxu0 %v71
    %163 = vmatprep.subr.mxu0 %v69
    %164 = vmatpush1.msra.mxu0 %v68
    %165 = vmatprep.subr.mxu0 0.0
    %166 = vmatpush2.msra.mxu0 0.0
    %167 = vmatprep.subr.mxu0 0.0
    %168 = vmatpush2.msra.mxu0 0.0
    %169 = vmatprep.subr.mxu0 0.0
    %170 = vmatpush2.msra.mxu0 0.0
    %171 = vmatprep.subr.mxu0 0.0
    %172 = vmatpush2.msra.mxu0 0.0
    %173 = vmatprep.subr.mxu0 0.0
    %174 = vmatpush2.msra.mxu0 0.0
    %175 = vmatprep.subr.mxu0 0.0
    %176 = vmatpush2.msra.mxu0 0.0
    %177 = vmatprep.subr.mxu0 0.0
    %178 = vmatpush2.msra.mxu0 0.0
    %179 = vmatprep.subr.mxu0 0.0
    %180 = vmatpush2.msra.mxu0 0.0
    %181 = vmatprep.subr.mxu0 0.0
    %182 = vmatpush2.msra.mxu0 0.0
    %183 = vmatprep.subr.mxu0 0.0
    %184 = vmatpush2.msra.mxu0 0.0
    %185 = vmatprep.subr.mxu0 0.0
    %186 = vmatpush2.msra.mxu0 0.0
    %187 = vmatprep.subr.mxu0 0.0
    %188 = vmatpush2.msra.mxu0 0.0
    %189 = vmatprep.subr.mxu0 0.0
    %190 = vmatpush2.msra.mxu0 0.0
    %191 = vmatprep.subr.mxu0 0.0
    %192 = vmatpush2.msra.mxu0 0.0
    %193 = vmatprep.subr.mxu0 0.0
    %194 = vmatpush2.msra.mxu0 0.0
    %195 = vmatprep.subr.mxu0 0.0
    %196 = vmatpush2.msra.mxu0 0.0
    %197 = vmatprep.mubr.f32.mxu0 0.0
    %198 = vmatmul.mubr.f32.gmra.mxu0 %v60
    %v199 = vpop.f32.mrf.mxu0
    %v200 = vadd.f32 %v121, %v199
    %v201 = vpop.f32.mrf.mxu0
    %v202 = vadd.f32 %v125, %v201
    %203 = vmatprep.mubr.f32.mxu0 0.0
    %204 = vmatmul.mubr.f32.gmra.mxu0 %v61
    %v205 = vpop.f32.mrf.mxu0
    %v206 = vadd.f32 %v121, %v205
    %v207 = vpop.f32.mrf.mxu0
    %v208 = vadd.f32 %v125, %v207
    %209 = vmatprep.mubr.f32.mxu0 0.0
    %210 = vmatmul.mubr.f32.gmra.mxu0 %v62
    %v211 = vpop.f32.mrf.mxu0
    %v212 = vadd.f32 %v121, %v211
    %v213 = vpop.f32.mrf.mxu0
    %v214 = vadd.f32 %v125, %v213
    %215 = vmatprep.mubr.f32.mxu0 0.0
    %216 = vmatmul.mubr.f32.gmra.mxu0 %v63
    %v217 = vpop.f32.mrf.mxu0
    %v218 = vadd.f32 %v121, %v217
    %v219 = vpop.f32.mrf.mxu0
    %v220 = vadd.f32 %v125, %v219
    %221 = vmatprep.mubr.f32.mxu0 0.0
    %222 = vmatmul.mubr.f32.gmra.mxu0 %v64
    %v223 = vpop.f32.mrf.mxu0
    %v224 = vadd.f32 %v121, %v223
    %v225 = vpop.f32.mrf.mxu0
    %v226 = vadd.f32 %v125, %v225
    %227 = vmatprep.mubr.f32.mxu0 0.0
    %228 = vmatmul.mubr.f32.gmra.mxu0 %v65
    %v229 = vpop.f32.mrf.mxu0
    %v230 = vadd.f32 %v121, %v229
    %v231 = vpop.f32.mrf.mxu0
    %v232 = vadd.f32 %v125, %v231
    %233 = vmatprep.mubr.f32.mxu0 0.0
    %234 = vmatmul.mubr.f32.gmra.mxu0 %v66
    %v235 = vpop.f32.mrf.mxu0
    %v236 = vadd.f32 %v121, %v235
    %v237 = vpop.f32.mrf.mxu0
    %v238 = vadd.f32 %v125, %v237
    %239 = vmatprep.mubr.f32.mxu0 0.0
    %240 = vmatmul.mubr.f32.gmra.mxu0 %v67
    %v241 = vpop.f32.mrf.mxu0
    %v242 = vadd.f32 %v121, %v241
    %v243 = vpop.f32.mrf.mxu0
    %v244 = vadd.f32 %v125, %v243
    %245 = vdwg.mxu0
    %246 = vmatprep.subr.mxu0 0.0
    %247 = vmatpush1.msra.mxu0 %v115
    %248 = vmatprep.subr.mxu0 0.0
    %249 = vmatpush1.msra.mxu0 %v112
    %250 = vmatprep.subr.mxu0 0.0
    %251 = vmatpush1.msra.mxu0 %v109
    %252 = vmatprep.subr.mxu0 0.0
    %253 = vmatpush1.msra.mxu0 %v106
    %254 = vmatprep.subr.mxu0 0.0
    %255 = vmatpush1.msra.mxu0 %v103
    %256 = vmatprep.subr.mxu0 0.0
    %257 = vmatpush1.msra.mxu0 %v100
    %258 = vmatprep.subr.mxu0 0.0
    %259 = vmatpush1.msra.mxu0 %v97
    %260 = vmatprep.subr.mxu0 0.0
    %261 = vmatpush1.msra.mxu0 %v94
    %262 = vmatprep.subr.mxu0 0.0
    %263 = vmatpush1.msra.mxu0 %v91
    %264 = vmatprep.subr.mxu0 0.0
    %265 = vmatpush1.msra.mxu0 %v88
    %266 = vmatprep.subr.mxu0 0.0
    %267 = vmatpush1.msra.mxu0 %v85
    %268 = vmatprep.subr.mxu0 0.0
    %269 = vmatpush1.msra.mxu0 %v82
    %270 = vmatprep.subr.mxu0 0.0
    %271 = vmatpush1.msra.mxu0 %v79
    %272 = vmatprep.subr.mxu0 0.0
    %273 = vmatpush1.msra.mxu0 %v76
    %274 = vmatprep.subr.mxu0 0.0
    %275 = vmatpush1.msra.mxu0 %v73
    %276 = vmatprep.subr.mxu0 0.0
    %277 = vmatpush1.msra.mxu0 %v70
    %278 = vmatprep.subr.mxu0 0.0
    %279 = vmatpush2.msra.mxu0 0.0
    %280 = vmatprep.subr.mxu0 0.0
    %281 = vmatpush2.msra.mxu0 0.0
    %282 = vmatprep.subr.mxu0 0.0
    %283 = vmatpush2.msra.mxu0 0.0
    %284 = vmatprep.subr.mxu0 0.0
    %285 = vmatpush2.msra.mxu0 0.0
    %286 = vmatprep.subr.mxu0 0.0
    %287 = vmatpush2.msra.mxu0 0.0
    %288 = vmatprep.subr.mxu0 0.0
    %289 = vmatpush2.msra.mxu0 0.0
    %290 = vmatprep.subr.mxu0 0.0
    %291 = vmatpush2.msra.mxu0 0.0
    %292 = vmatprep.subr.mxu0 0.0
    %293 = vmatpush2.msra.mxu0 0.0
    %294 = vmatprep.subr.mxu0 0.0
    %295 = vmatpush2.msra.mxu0 0.0
    %296 = vmatprep.subr.mxu0 0.0
    %297 = vmatpush2.msra.mxu0 0.0
    %298 = vmatprep.subr.mxu0 0.0
    %299 = vmatpush2.msra.mxu0 0.0
    %300 = vmatprep.subr.mxu0 0.0
    %301 = vmatpush2.msra.mxu0 0.0
    %302 = vmatprep.subr.mxu0 0.0
    %303 = vmatpush2.msra.mxu0 0.0
    %304 = vmatprep.subr.mxu0 0.0
    %305 = vmatpush2.msra.mxu0 0.0
    %306 = vmatprep.subr.mxu0 0.0
    %307 = vmatpush2.msra.mxu0 0.0
    %308 = vmatprep.subr.mxu0 0.0
    %309 = vmatpush2.msra.mxu0 0.0
    %310 = vmatprep.mubr.f32.mxu0 0.0
    %311 = vmatmul.mubr.f32.gmra.mxu0 %v60
    %v312 = vpop.f32.mrf.mxu0
    %v313 = vadd.f32 %v129, %v312
    %v314 = vpop.f32.mrf.mxu0
    %315 = vmatprep.mubr.f32.mxu0 0.0
    %316 = vmatmul.mubr.f32.gmra.mxu0 %v61
    %v317 = vpop.f32.mrf.mxu0
    %v318 = vadd.f32 %v129, %v317
    %v319 = vpop.f32.mrf.mxu0
    %320 = vmatprep.mubr.f32.mxu0 0.0
    %321 = vmatmul.mubr.f32.gmra.mxu0 %v62
    %v322 = vpop.f32.mrf.mxu0
    %v323 = vadd.f32 %v129, %v322
    %v324 = vpop.f32.mrf.mxu0
    %325 = vmatprep.mubr.f32.mxu0 0.0
    %326 = vmatmul.mubr.f32.gmra.mxu0 %v63
    %v327 = vpop.f32.mrf.mxu0
    %v328 = vadd.f32 %v129, %v327
    %v329 = vpop.f32.mrf.mxu0
    %330 = vmatprep.mubr.f32.mxu0 0.0
    %331 = vmatmul.mubr.f32.gmra.mxu0 %v64
    %v332 = vpop.f32.mrf.mxu0
    %v333 = vadd.f32 %v129, %v332
    %v334 = vpop.f32.mrf.mxu0
    %335 = vmatprep.mubr.f32.mxu0 0.0
    %336 = vmatmul.mubr.f32.gmra.mxu0 %v65
    %v337 = vpop.f32.mrf.mxu0
    %v338 = vadd.f32 %v129, %v337
    %v339 = vpop.f32.mrf.mxu0
    %340 = vmatprep.mubr.f32.mxu0 0.0
    %341 = vmatmul.mubr.f32.gmra.mxu0 %v66
    %v342 = vpop.f32.mrf.mxu0
    %v343 = vadd.f32 %v129, %v342
    %v344 = vpop.f32.mrf.mxu0
    %345 = vmatprep.mubr.f32.mxu0 0.0
    %346 = vmatmul.mubr.f32.gmra.mxu0 %v67
    %v347 = vpop.f32.mrf.mxu0
    %v348 = vadd.f32 %v129, %v347
    %v349 = vpop.f32.mrf.mxu0
    %350 = vdwg.mxu0
    %351 = vst [vmem:[#allocation3] sm:$0xff] %v200
    %352 = vst [vmem:[#allocation3 + $0x8] sm:$0xff] %v202
    %353 = vst [vmem:[#allocation3 + $0x10] sm:$0xff] %v313
    %354 = vst [vmem:[#allocation3 + $0x18] sm:$0xff] %v206
    %355 = vst [vmem:[#allocation3 + $0x20] sm:$0xff] %v208
    %356 = vst [vmem:[#allocation3 + $0x28] sm:$0xff] %v318
    %357 = vst [vmem:[#allocation3 + $0x30] sm:$0xff] %v212
    %358 = vst [vmem:[#allocation3 + $0x38] sm:$0xff] %v214
    %359 = vst [vmem:[#allocation3 + $0x40] sm:$0xff] %v323
    %360 = vst [vmem:[#allocation3 + $0x48] sm:$0xff] %v218
    %361 = vst [vmem:[#allocation3 + $0x50] sm:$0xff] %v220
    %362 = vst [vmem:[#allocation3 + $0x58] sm:$0xff] %v328
    %363 = vst [vmem:[#allocation3 + $0x60] sm:$0xff] %v224
    %364 = vst [vmem:[#allocation3 + $0x68] sm:$0xff] %v226
    %365 = vst [vmem:[#allocation3 + $0x70] sm:$0xff] %v333
    %366 = vst [vmem:[#allocation3 + $0x78] sm:$0xff] %v230
    %367 = vst [vmem:[#allocation3 + $0x80] sm:$0xff] %v232
    %368 = vst [vmem:[#allocation3 + $0x88] sm:$0xff] %v338
    %369 = vst [vmem:[#allocation3 + $0x90] sm:$0xff] %v236
    %370 = vst [vmem:[#allocation3 + $0x98] sm:$0xff] %v238
    %371 = vst [vmem:[#allocation3 + $0xa0] sm:$0xff] %v343
    %372 = vst [vmem:[#allocation3 + $0xa8] sm:$0xff] %v242
    %373 = vst [vmem:[#allocation3 + $0xb0] sm:$0xff] %v244
    %374 = vst [vmem:[#allocation3 + $0xb8] sm:$0xff] %v348
    %v375 = vld [vmem:[#allocation7] sm:$0xff]
    %v376 = vld [vmem:[#allocation7 + $0x8] sm:$0xff]
    %v377 = vld [vmem:[#allocation7 + $0x10] sm:$0xff]
    %v378 = vld [vmem:[#allocation7 + $0x18] sm:$0xff]
    %v379 = vld [vmem:[#allocation7 + $0x20] sm:$0xff]
    %v380 = vld [vmem:[#allocation7 + $0x28] sm:$0xff]
    %v381 = vld [vmem:[#allocation7 + $0x30] sm:$0xff]
    %v382 = vld [vmem:[#allocation7 + $0x38] sm:$0xff]
    %v383 = vld [vmem:[#allocation7 + $0x40] sm:$0xff]
    %v384 = vld [vmem:[#allocation7 + $0x48] sm:$0xff]
    %v385 = vld [vmem:[#allocation7 + $0x50] sm:$0xff]
    %v386 = vld [vmem:[#allocation7 + $0x58] sm:$0xff]
    %v387 = vld [vmem:[#allocation7 + $0x60] sm:$0xff]
    %v388 = vld [vmem:[#allocation7 + $0x68] sm:$0xff]
    %v389 = vld [vmem:[#allocation7 + $0x70] sm:$0xff]
    %v390 = vld [vmem:[#allocation7 + $0x78] sm:$0xff]
    %v391 = vld [vmem:[#allocation7 + $0x80] sm:$0xff]
    %v392 = vld [vmem:[#allocation7 + $0x88] sm:$0xff]
    %v393 = vld [vmem:[#allocation7 + $0x90] sm:$0xff]
    %v394 = vld [vmem:[#allocation7 + $0x98] sm:$0xff]
    %v395 = vld [vmem:[#allocation7 + $0xa0] sm:$0xff]
    %v396 = vld [vmem:[#allocation7 + $0xa8] sm:$0xff]
    %v397 = vld [vmem:[#allocation7 + $0xb0] sm:$0xff]
    %v398 = vld [vmem:[#allocation7 + $0xb8] sm:$0xff]
    %v399 = vld [vmem:[#allocation7 + $0xc0] sm:$0xff]
    %v400 = vld [vmem:[#allocation7 + $0xc8] sm:$0xff]
    %v401 = vld [vmem:[#allocation7 + $0xd0] sm:$0xff]
    %v402 = vld [vmem:[#allocation7 + $0xd8] sm:$0xff]
    %v403 = vld [vmem:[#allocation7 + $0xe0] sm:$0xff]
    %v404 = vld [vmem:[#allocation7 + $0xe8] sm:$0xff]
    %v405 = vld [vmem:[#allocation7 + $0xf0] sm:$0xff]
    %v406 = vld [vmem:[#allocation7 + $0xf8] sm:$0xff]
    %v407 = vld [vmem:[#allocation7 + $0x100] sm:$0xff]
    %v408 = vld [vmem:[#allocation7 + $0x108] sm:$0xff]
    %v409 = vld [vmem:[#allocation7 + $0x110] sm:$0xff]
    %v410 = vld [vmem:[#allocation7 + $0x118] sm:$0xff]
    %v411 = vld [vmem:[#allocation7 + $0x120] sm:$0xff]
    %v412 = vld [vmem:[#allocation7 + $0x128] sm:$0xff]
    %v413 = vld [vmem:[#allocation7 + $0x130] sm:$0xff]
    %v414 = vld [vmem:[#allocation7 + $0x138] sm:$0xff]
    %v415 = vld [vmem:[#allocation7 + $0x140] sm:$0xff]
    %v416 = vld [vmem:[#allocation7 + $0x148] sm:$0xff]
    %v417 = vld [vmem:[#allocation7 + $0x150] sm:$0xff]
    %v418 = vld [vmem:[#allocation7 + $0x158] sm:$0xff]
    %v419 = vld [vmem:[#allocation7 + $0x160] sm:$0xff]
    %v420 = vld [vmem:[#allocation7 + $0x168] sm:$0xff]
    %v421 = vld [vmem:[#allocation7 + $0x170] sm:$0xff]
    %v422 = vld [vmem:[#allocation7 + $0x178] sm:$0xff]
    %v423 = vld [vmem:[%s5] sm:$0x7]
    %v424 = vld [vmem:[%s6] sm:$0xff]
    %v425 = vld [vmem:[%s6 + $0x8] sm:$0xff]
    %v426 = vld [vmem:[%s6 + $0x10] sm:$0xff]
    %v427 = vld [vmem:[%s6 + $0x18] sm:$0xff]
    %v428 = vld [vmem:[%s6 + $0x20] sm:$0xff]
    %v429 = vld [vmem:[%s6 + $0x28] sm:$0xff]
    %v430 = vld [vmem:[%s6 + $0x30] sm:$0xff]
    %v431 = vld [vmem:[%s6 + $0x38] sm:$0xff]
    %v432 = vld [vmem:[%s6 + $0x40] sm:$0xff]
    %v433 = vld [vmem:[%s6 + $0x48] sm:$0xff]
    %v434 = vld [vmem:[%s6 + $0x50] sm:$0xff]
    %v435 = vld [vmem:[%s6 + $0x58] sm:$0xff]
    %v436 = vld [vmem:[%s6 + $0x60] sm:$0xff]
    %v437 = vld [vmem:[%s6 + $0x68] sm:$0xff]
    %v438 = vld [vmem:[%s6 + $0x70] sm:$0xff]
    %v439 = vld [vmem:[%s6 + $0x78] sm:$0xff]
    %v440 = vld [vmem:[%s7] sm:$0x1]
    %v441 = vld [vmem:[%s1] sm:$0xff]
    %442 = vst [vmem:[#allocation2] sm:$0xff] %v441
    %v443 = vld [vmem:[#allocation3] sm:$0xff]
    %v444 = vld [vmem:[#allocation3 + $0x8] sm:$0xff]
    %v445 = vld [vmem:[#allocation3 + $0x10] sm:$0xff]
    %v446 = vld [vmem:[#allocation2] sm:$0xff]
    %v448 = vlaneseq
    %v449 = vshrl.u32 %v448, 7
    %v450 = vsub.s32 0, %v449
    %v451 = vrot.slane %v423, %v450
    %v452 = vlaneseq
    %v453 = vshrl.u32 %v452, 7
    %v454 = vsub.s32 1, %v453
    %v455 = vrot.slane %v423, %v454
    %v456 = vlaneseq
    %v457 = vshrl.u32 %v456, 7
    %v458 = vsub.s32 2, %v457
    %v459 = vrot.slane %v423, %v458
    %463 = vmatprep.subr.mxu0 %v421
    %464 = vmatpush1.msra.mxu0 %v420
    %465 = vmatprep.subr.mxu0 %v418
    %466 = vmatpush1.msra.mxu0 %v417
    %467 = vmatprep.subr.mxu0 %v415
    %468 = vmatpush1.msra.mxu0 %v414
    %469 = vmatprep.subr.mxu0 %v412
    %470 = vmatpush1.msra.mxu0 %v411
    %471 = vmatprep.subr.mxu0 %v409
    %472 = vmatpush1.msra.mxu0 %v408
    %473 = vmatprep.subr.mxu0 %v406
    %474 = vmatpush1.msra.mxu0 %v405
    %475 = vmatprep.subr.mxu0 %v403
    %476 = vmatpush1.msra.mxu0 %v402
    %477 = vmatprep.subr.mxu0 %v400
    %478 = vmatpush1.msra.mxu0 %v399
    %479 = vmatprep.subr.mxu0 %v397
    %480 = vmatpush1.msra.mxu0 %v396
    %481 = vmatprep.subr.mxu0 %v394
    %482 = vmatpush1.msra.mxu0 %v393
    %483 = vmatprep.subr.mxu0 %v391
    %484 = vmatpush1.msra.mxu0 %v390
    %485 = vmatprep.subr.mxu0 %v388
    %486 = vmatpush1.msra.mxu0 %v387
    %487 = vmatprep.subr.mxu0 %v385
    %488 = vmatpush1.msra.mxu0 %v384
    %489 = vmatprep.subr.mxu0 %v382
    %490 = vmatpush1.msra.mxu0 %v381
    %491 = vmatprep.subr.mxu0 %v379
    %492 = vmatpush1.msra.mxu0 %v378
    %493 = vmatprep.subr.mxu0 %v376
    %494 = vmatpush1.msra.mxu0 %v375
    %495 = vmatprep.subr.mxu0 0.0
    %496 = vmatpush2.msra.mxu0 0.0
    %497 = vmatprep.subr.mxu0 0.0
    %498 = vmatpush2.msra.mxu0 0.0
    %499 = vmatprep.subr.mxu0 0.0
    %500 = vmatpush2.msra.mxu0 0.0
    %501 = vmatprep.subr.mxu0 0.0
    %502 = vmatpush2.msra.mxu0 0.0
    %503 = vmatprep.subr.mxu0 0.0
    %504 = vmatpush2.msra.mxu0 0.0
    %505 = vmatprep.subr.mxu0 0.0
    %506 = vmatpush2.msra.mxu0 0.0
    %507 = vmatprep.subr.mxu0 0.0
    %508 = vmatpush2.msra.mxu0 0.0
    %509 = vmatprep.subr.mxu0 0.0
    %510 = vmatpush2.msra.mxu0 0.0
    %511 = vmatprep.subr.mxu0 0.0
    %512 = vmatpush2.msra.mxu0 0.0
    %513 = vmatprep.subr.mxu0 0.0
    %514 = vmatpush2.msra.mxu0 0.0
    %515 = vmatprep.subr.mxu0 0.0
    %516 = vmatpush2.msra.mxu0 0.0
    %517 = vmatprep.subr.mxu0 0.0
    %518 = vmatpush2.msra.mxu0 0.0
    %519 = vmatprep.subr.mxu0 0.0
    %520 = vmatpush2.msra.mxu0 0.0
    %521 = vmatprep.subr.mxu0 0.0
    %522 = vmatpush2.msra.mxu0 0.0
    %523 = vmatprep.subr.mxu0 0.0
    %524 = vmatpush2.msra.mxu0 0.0
    %525 = vmatprep.subr.mxu0 0.0
    %526 = vmatpush2.msra.mxu0 0.0
    %527 = vmatprep.mubr.f32.mxu0 0.0
    %528 = vmatmul.mubr.f32.gmra.mxu0 %v446
    %v529 = vpop.f32.mrf.mxu0
    %v530 = vadd.f32 %v451, %v529
    %v531 = vpop.f32.mrf.mxu0
    %v532 = vadd.f32 %v455, %v531
    %533 = vdwg.mxu0
    %534 = vmatprep.subr.mxu0 0.0
    %535 = vmatpush1.msra.mxu0 %v422
    %536 = vmatprep.subr.mxu0 0.0
    %537 = vmatpush1.msra.mxu0 %v419
    %538 = vmatprep.subr.mxu0 0.0
    %539 = vmatpush1.msra.mxu0 %v416
    %540 = vmatprep.subr.mxu0 0.0
    %541 = vmatpush1.msra.mxu0 %v413
    %542 = vmatprep.subr.mxu0 0.0
    %543 = vmatpush1.msra.mxu0 %v410
    %544 = vmatprep.subr.mxu0 0.0
    %545 = vmatpush1.msra.mxu0 %v407
    %546 = vmatprep.subr.mxu0 0.0
    %547 = vmatpush1.msra.mxu0 %v404
    %548 = vmatprep.subr.mxu0 0.0
    %549 = vmatpush1.msra.mxu0 %v401
    %550 = vmatprep.subr.mxu0 0.0
    %551 = vmatpush1.msra.mxu0 %v398
    %552 = vmatprep.subr.mxu0 0.0
    %553 = vmatpush1.msra.mxu0 %v395
    %554 = vmatprep.subr.mxu0 0.0
    %555 = vmatpush1.msra.mxu0 %v392
    %556 = vmatprep.subr.mxu0 0.0
    %557 = vmatpush1.msra.mxu0 %v389
    %558 = vmatprep.subr.mxu0 0.0
    %559 = vmatpush1.msra.mxu0 %v386
    %560 = vmatprep.subr.mxu0 0.0
    %561 = vmatpush1.msra.mxu0 %v383
    %562 = vmatprep.subr.mxu0 0.0
    %563 = vmatpush1.msra.mxu0 %v380
    %564 = vmatprep.subr.mxu0 0.0
    %565 = vmatpush1.msra.mxu0 %v377
    %566 = vmatprep.subr.mxu0 0.0
    %567 = vmatpush2.msra.mxu0 0.0
    %568 = vmatprep.subr.mxu0 0.0
    %569 = vmatpush2.msra.mxu0 0.0
    %570 = vmatprep.subr.mxu0 0.0
    %571 = vmatpush2.msra.mxu0 0.0
    %572 = vmatprep.subr.mxu0 0.0
    %573 = vmatpush2.msra.mxu0 0.0
    %574 = vmatprep.subr.mxu0 0.0
    %575 = vmatpush2.msra.mxu0 0.0
    %576 = vmatprep.subr.mxu0 0.0
    %577 = vmatpush2.msra.mxu0 0.0
    %578 = vmatprep.subr.mxu0 0.0
    %579 = vmatpush2.msra.mxu0 0.0
    %580 = vmatprep.subr.mxu0 0.0
    %581 = vmatpush2.msra.mxu0 0.0
    %582 = vmatprep.subr.mxu0 0.0
    %583 = vmatpush2.msra.mxu0 0.0
    %584 = vmatprep.subr.mxu0 0.0
    %585 = vmatpush2.msra.mxu0 0.0
    %586 = vmatprep.subr.mxu0 0.0
    %587 = vmatpush2.msra.mxu0 0.0
    %588 = vmatprep.subr.mxu0 0.0
    %589 = vmatpush2.msra.mxu0 0.0
    %590 = vmatprep.subr.mxu0 0.0
    %591 = vmatpush2.msra.mxu0 0.0
    %592 = vmatprep.subr.mxu0 0.0
    %593 = vmatpush2.msra.mxu0 0.0
    %594 = vmatprep.subr.mxu0 0.0
    %595 = vmatpush2.msra.mxu0 0.0
    %596 = vmatprep.subr.mxu0 0.0
    %597 = vmatpush2.msra.mxu0 0.0
    %598 = vmatprep.mubr.f32.mxu0 0.0
    %599 = vmatmul.mubr.f32.gmra.mxu0 %v446
    %v600 = vpop.f32.mrf.mxu0
    %v601 = vadd.f32 %v459, %v600
    %v602 = vpop.f32.mrf.mxu0
    %603 = vdwg.mxu0
    %v604 = vadd.f32 %v443, %v530
    %v605 = vxor.u32 %v604, 2147483648
    %v606 = vmul.f32 %v605, 1.442695
    %v607 = vpow.pop %v606
    %v608 = vadd.f32 %v607, 1.0
    %v609 = vrcp.pop %v608
    %v610 = vmul.f32 1.0, %v609
    %v611 = vadd.f32 %v444, %v532
    %v612 = vxor.u32 %v611, 2147483648
    %v613 = vmul.f32 %v612, 1.442695
    %v614 = vpow.pop %v613
    %v615 = vadd.f32 %v614, 1.0
    %v616 = vrcp.pop %v615
    %v617 = vmul.f32 1.0, %v616
    %v618 = vmul.f32 %v610, %v601
    %v619 = vadd.f32 %v445, %v618
    %v620 = vtanh.pop %v619
    %v621 = vsub.f32 1.0, %v617
    %v622 = vmul.f32 %v621, %v620
    %v623 = vmul.f32 %v617, %v446
    %v624 = vadd.f32 %v622, %v623
    %625 = vst [vmem:[#allocation2] sm:$0xff] %v624
    %v627 = vlaneseq
    %v628 = vshrl.u32 %v627, 7
    %v629 = vsub.s32 0, %v628
    %v630 = vrot.slane %v440, %v629
    %632 = vmatprep.subr.mxu0 0.0
    %633 = vmatpush1.msra.mxu0 %v439
    %634 = vmatprep.subr.mxu0 0.0
    %635 = vmatpush1.msra.mxu0 %v438
    %636 = vmatprep.subr.mxu0 0.0
    %637 = vmatpush1.msra.mxu0 %v437
    %638 = vmatprep.subr.mxu0 0.0
    %639 = vmatpush1.msra.mxu0 %v436
    %640 = vmatprep.subr.mxu0 0.0
    %641 = vmatpush1.msra.mxu0 %v435
    %642 = vmatprep.subr.mxu0 0.0
    %643 = vmatpush1.msra.mxu0 %v434
    %644 = vmatprep.subr.mxu0 0.0
    %645 = vmatpush1.msra.mxu0 %v433
    %646 = vmatprep.subr.mxu0 0.0
    %647 = vmatpush1.msra.mxu0 %v432
    %648 = vmatprep.subr.mxu0 0.0
    %649 = vmatpush1.msra.mxu0 %v431
    %650 = vmatprep.subr.mxu0 0.0
    %651 = vmatpush1.msra.mxu0 %v430
    %652 = vmatprep.subr.mxu0 0.0
    %653 = vmatpush1.msra.mxu0 %v429
    %654 = vmatprep.subr.mxu0 0.0
    %655 = vmatpush1.msra.mxu0 %v428
    %656 = vmatprep.subr.mxu0 0.0
    %657 = vmatpush1.msra.mxu0 %v427
    %658 = vmatprep.subr.mxu0 0.0
    %659 = vmatpush1.msra.mxu0 %v426
    %660 = vmatprep.subr.mxu0 0.0
    %661 = vmatpush1.msra.mxu0 %v425
    %662 = vmatprep.subr.mxu0 0.0
    %663 = vmatpush1.msra.mxu0 %v424
    %664 = vmatprep.subr.mxu0 0.0
    %665 = vmatpush2.msra.mxu0 0.0
    %666 = vmatprep.subr.mxu0 0.0
    %667 = vmatpush2.msra.mxu0 0.0
    %668 = vmatprep.subr.mxu0 0.0
    %669 = vmatpush2.msra.mxu0 0.0
    %670 = vmatprep.subr.mxu0 0.0
    %671 = vmatpush2.msra.mxu0 0.0
    %672 = vmatprep.subr.mxu0 0.0
    %673 = vmatpush2.msra.mxu0 0.0
    %674 = vmatprep.subr.mxu0 0.0
    %675 = vmatpush2.msra.mxu0 0.0
    %676 = vmatprep.subr.mxu0 0.0
    %677 = vmatpush2.msra.mxu0 0.0
    %678 = vmatprep.subr.mxu0 0.0
    %679 = vmatpush2.msra.mxu0 0.0
    %680 = vmatprep.subr.mxu0 0.0
    %681 = vmatpush2.msra.mxu0 0.0
    %682 = vmatprep.subr.mxu0 0.0
    %683 = vmatpush2.msra.mxu0 0.0
    %684 = vmatprep.subr.mxu0 0.0
    %685 = vmatpush2.msra.mxu0 0.0
    %686 = vmatprep.subr.mxu0 0.0
    %687 = vmatpush2.msra.mxu0 0.0
    %688 = vmatprep.subr.mxu0 0.0
    %689 = vmatpush2.msra.mxu0 0.0
    %690 = vmatprep.subr.mxu0 0.0
    %691 = vmatpush2.msra.mxu0 0.0
    %692 = vmatprep.subr.mxu0 0.0
    %693 = vmatpush2.msra.mxu0 0.0
    %694 = vmatprep.subr.mxu0 0.0
    %695 = vmatpush2.msra.mxu0 0.0
    %696 = vmatprep.mubr.f32.mxu0 0.0
    %697 = vmatmul.mubr.f32.gmra.mxu0 %v624
    %v698 = vpop.f32.mrf.mxu0
    %v699 = vadd.f32 %v630, %v698
    %v700 = vpop.f32.mrf.mxu0
    %701 = vdwg.mxu0
    %702 = vmax.xlane.f32.xlu0 %v699
    %v703 = vpop.xlane.xlu0 %702
    %v704 = vsub.f32 %v699, %v703
    %v705 = vmul.f32 %v704, 1.442695
    %v706 = vpow.pop %v705
    %707 = vadd.xlane.f32.xlu0 %v706
    %v708 = vpop.xlane.xlu0 %707
    %v709 = vlog2.pop %v708
    %v710 = vmul.f32 %v709, 0.6931472
    %v711 = vsub.f32 %v704, %v710
    %712 = vst [vmem:[#allocation9] sm:$0xff] %v711
    %s713 = scalar_lea.vmem [#allocation3], 24
    %v714 = vld [vmem:[%s713] sm:$0xff]
    %v715 = vld [vmem:[%s713 + $0x8] sm:$0xff]
    %v716 = vld [vmem:[%s713 + $0x10] sm:$0xff]
    %v717 = vld [vmem:[#allocation2] sm:$0xff]
    %718 = vmatprep.subr.mxu0 %v421
    %719 = vmatpush1.msra.mxu0 %v420
    %720 = vmatprep.subr.mxu0 %v418
    %721 = vmatpush1.msra.mxu0 %v417
    %722 = vmatprep.subr.mxu0 %v415
    %723 = vmatpush1.msra.mxu0 %v414
    %724 = vmatprep.subr.mxu0 %v412
    %725 = vmatpush1.msra.mxu0 %v411
    %726 = vmatprep.subr.mxu0 %v409
    %727 = vmatpush1.msra.mxu0 %v408
    %728 = vmatprep.subr.mxu0 %v406
    %729 = vmatpush1.msra.mxu0 %v405
    %730 = vmatprep.subr.mxu0 %v403
    %731 = vmatpush1.msra.mxu0 %v402
    %732 = vmatprep.subr.mxu0 %v400
    %733 = vmatpush1.msra.mxu0 %v399
    %734 = vmatprep.subr.mxu0 %v397
    %735 = vmatpush1.msra.mxu0 %v396
    %736 = vmatprep.subr.mxu0 %v394
    %737 = vmatpush1.msra.mxu0 %v393
    %738 = vmatprep.subr.mxu0 %v391
    %739 = vmatpush1.msra.mxu0 %v390
    %740 = vmatprep.subr.mxu0 %v388
    %741 = vmatpush1.msra.mxu0 %v387
    %742 = vmatprep.subr.mxu0 %v385
    %743 = vmatpush1.msra.mxu0 %v384
    %744 = vmatprep.subr.mxu0 %v382
    %745 = vmatpush1.msra.mxu0 %v381
    %746 = vmatprep.subr.mxu0 %v379
    %747 = vmatpush1.msra.mxu0 %v378
    %748 = vmatprep.subr.mxu0 %v376
    %749 = vmatpush1.msra.mxu0 %v375
    %750 = vmatprep.subr.mxu0 0.0
    %751 = vmatpush2.msra.mxu0 0.0
    %752 = vmatprep.subr.mxu0 0.0
    %753 = vmatpush2.msra.mxu0 0.0
    %754 = vmatprep.subr.mxu0 0.0
    %755 = vmatpush2.msra.mxu0 0.0
    %756 = vmatprep.subr.mxu0 0.0
    %757 = vmatpush2.msra.mxu0 0.0
    %758 = vmatprep.subr.mxu0 0.0
    %759 = vmatpush2.msra.mxu0 0.0
    %760 = vmatprep.subr.mxu0 0.0
    %761 = vmatpush2.msra.mxu0 0.0
    %762 = vmatprep.subr.mxu0 0.0
    %763 = vmatpush2.msra.mxu0 0.0
    %764 = vmatprep.subr.mxu0 0.0
    %765 = vmatpush2.msra.mxu0 0.0
    %766 = vmatprep.subr.mxu0 0.0
    %767 = vmatpush2.msra.mxu0 0.0
    %768 = vmatprep.subr.mxu0 0.0
    %769 = vmatpush2.msra.mxu0 0.0
    %770 = vmatprep.subr.mxu0 0.0
    %771 = vmatpush2.msra.mxu0 0.0
    %772 = vmatprep.subr.mxu0 0.0
    %773 = vmatpush2.msra.mxu0 0.0
    %774 = vmatprep.subr.mxu0 0.0
    %775 = vmatpush2.msra.mxu0 0.0
    %776 = vmatprep.subr.mxu0 0.0
    %777 = vmatpush2.msra.mxu0 0.0
    %778 = vmatprep.subr.mxu0 0.0
    %779 = vmatpush2.msra.mxu0 0.0
    %780 = vmatprep.subr.mxu0 0.0
    %781 = vmatpush2.msra.mxu0 0.0
    %782 = vmatprep.mubr.f32.mxu0 0.0
    %783 = vmatmul.mubr.f32.gmra.mxu0 %v717
    %v784 = vpop.f32.mrf.mxu0
    %v785 = vadd.f32 %v451, %v784
    %v786 = vpop.f32.mrf.mxu0
    %v787 = vadd.f32 %v455, %v786
    %788 = vdwg.mxu0
    %789 = vmatprep.subr.mxu0 0.0
    %790 = vmatpush1.msra.mxu0 %v422
    %791 = vmatprep.subr.mxu0 0.0
    %792 = vmatpush1.msra.mxu0 %v419
    %793 = vmatprep.subr.mxu0 0.0
    %794 = vmatpush1.msra.mxu0 %v416
    %795 = vmatprep.subr.mxu0 0.0
    %796 = vmatpush1.msra.mxu0 %v413
    %797 = vmatprep.subr.mxu0 0.0
    %798 = vmatpush1.msra.mxu0 %v410
    %799 = vmatprep.subr.mxu0 0.0
    %800 = vmatpush1.msra.mxu0 %v407
    %801 = vmatprep.subr.mxu0 0.0
    %802 = vmatpush1.msra.mxu0 %v404
    %803 = vmatprep.subr.mxu0 0.0
    %804 = vmatpush1.msra.mxu0 %v401
    %805 = vmatprep.subr.mxu0 0.0
    %806 = vmatpush1.msra.mxu0 %v398
    %807 = vmatprep.subr.mxu0 0.0
    %808 = vmatpush1.msra.mxu0 %v395
    %809 = vmatprep.subr.mxu0 0.0
    %810 = vmatpush1.msra.mxu0 %v392
    %811 = vmatprep.subr.mxu0 0.0
    %812 = vmatpush1.msra.mxu0 %v389
    %813 = vmatprep.subr.mxu0 0.0
    %814 = vmatpush1.msra.mxu0 %v386
    %815 = vmatprep.subr.mxu0 0.0
    %816 = vmatpush1.msra.mxu0 %v383
    %817 = vmatprep.subr.mxu0 0.0
    %818 = vmatpush1.msra.mxu0 %v380
    %819 = vmatprep.subr.mxu0 0.0
    %820 = vmatpush1.msra.mxu0 %v377
    %821 = vmatprep.subr.mxu0 0.0
    %822 = vmatpush2.msra.mxu0 0.0
    %823 = vmatprep.subr.mxu0 0.0
    %824 = vmatpush2.msra.mxu0 0.0
    %825 = vmatprep.subr.mxu0 0.0
    %826 = vmatpush2.msra.mxu0 0.0
    %827 = vmatprep.subr.mxu0 0.0
    %828 = vmatpush2.msra.mxu0 0.0
    %829 = vmatprep.subr.mxu0 0.0
    %830 = vmatpush2.msra.mxu0 0.0
    %831 = vmatprep.subr.mxu0 0.0
    %832 = vmatpush2.msra.mxu0 0.0
    %833 = vmatprep.subr.mxu0 0.0
    %834 = vmatpush2.msra.mxu0 0.0
    %835 = vmatprep.subr.mxu0 0.0
    %836 = vmatpush2.msra.mxu0 0.0
    %837 = vmatprep.subr.mxu0 0.0
    %838 = vmatpush2.msra.mxu0 0.0
    %839 = vmatprep.subr.mxu0 0.0
    %840 = vmatpush2.msra.mxu0 0.0
    %841 = vmatprep.subr.mxu0 0.0
    %842 = vmatpush2.msra.mxu0 0.0
    %843 = vmatprep.subr.mxu0 0.0
    %844 = vmatpush2.msra.mxu0 0.0
    %845 = vmatprep.subr.mxu0 0.0
    %846 = vmatpush2.msra.mxu0 0.0
    %847 = vmatprep.subr.mxu0 0.0
    %848 = vmatpush2.msra.mxu0 0.0
    %849 = vmatprep.subr.mxu0 0.0
    %850 = vmatpush2.msra.mxu0 0.0
    %851 = vmatprep.subr.mxu0 0.0
    %852 = vmatpush2.msra.mxu0 0.0
    %853 = vmatprep.mubr.f32.mxu0 0.0
    %854 = vmatmul.mubr.f32.gmra.mxu0 %v717
    %v855 = vpop.f32.mrf.mxu0
    %v856 = vadd.f32 %v459, %v855
    %v857 = vpop.f32.mrf.mxu0
    %858 = vdwg.mxu0
    %v859 = vadd.f32 %v714, %v785
    %v860 = vxor.u32 %v859, 2147483648
    %v861 = vmul.f32 %v860, 1.442695
    %v862 = vpow.pop %v861
    %v863 = vadd.f32 %v862, 1.0
    %v864 = vrcp.pop %v863
    %v865 = vmul.f32 1.0, %v864
    %v866 = vadd.f32 %v715, %v787
    %v867 = vxor.u32 %v866, 2147483648
    %v868 = vmul.f32 %v867, 1.442695
    %v869 = vpow.pop %v868
    %v870 = vadd.f32 %v869, 1.0
    %v871 = vrcp.pop %v870
    %v872 = vmul.f32 1.0, %v871
    %v873 = vmul.f32 %v865, %v856
    %v874 = vadd.f32 %v716, %v873
    %v875 = vtanh.pop %v874
    %v876 = vsub.f32 1.0, %v872
    %v877 = vmul.f32 %v876, %v875
    %v878 = vmul.f32 %v872, %v717
    %v879 = vadd.f32 %v877, %v878
    %880 = vst [vmem:[#allocation2] sm:$0xff] %v879
    %881 = vmatprep.subr.mxu0 0.0
    %882 = vmatpush1.msra.mxu0 %v439
    %883 = vmatprep.subr.mxu0 0.0
    %884 = vmatpush1.msra.mxu0 %v438
    %885 = vmatprep.subr.mxu0 0.0
    %886 = vmatpush1.msra.mxu0 %v437
    %887 = vmatprep.subr.mxu0 0.0
    %888 = vmatpush1.msra.mxu0 %v436
    %889 = vmatprep.subr.mxu0 0.0
    %890 = vmatpush1.msra.mxu0 %v435
    %891 = vmatprep.subr.mxu0 0.0
    %892 = vmatpush1.msra.mxu0 %v434
    %893 = vmatprep.subr.mxu0 0.0
    %894 = vmatpush1.msra.mxu0 %v433
    %895 = vmatprep.subr.mxu0 0.0
    %896 = vmatpush1.msra.mxu0 %v432
    %897 = vmatprep.subr.mxu0 0.0
    %898 = vmatpush1.msra.mxu0 %v431
    %899 = vmatprep.subr.mxu0 0.0
    %900 = vmatpush1.msra.mxu0 %v430
    %901 = vmatprep.subr.mxu0 0.0
    %902 = vmatpush1.msra.mxu0 %v429
    %903 = vmatprep.subr.mxu0 0.0
    %904 = vmatpush1.msra.mxu0 %v428
    %905 = vmatprep.subr.mxu0 0.0
    %906 = vmatpush1.msra.mxu0 %v427
    %907 = vmatprep.subr.mxu0 0.0
    %908 = vmatpush1.msra.mxu0 %v426
    %909 = vmatprep.subr.mxu0 0.0
    %910 = vmatpush1.msra.mxu0 %v425
    %911 = vmatprep.subr.mxu0 0.0
    %912 = vmatpush1.msra.mxu0 %v424
    %913 = vmatprep.subr.mxu0 0.0
    %914 = vmatpush2.msra.mxu0 0.0
    %915 = vmatprep.subr.mxu0 0.0
    %916 = vmatpush2.msra.mxu0 0.0
    %917 = vmatprep.subr.mxu0 0.0
    %918 = vmatpush2.msra.mxu0 0.0
    %919 = vmatprep.subr.mxu0 0.0
    %920 = vmatpush2.msra.mxu0 0.0
    %921 = vmatprep.subr.mxu0 0.0
    %922 = vmatpush2.msra.mxu0 0.0
    %923 = vmatprep.subr.mxu0 0.0
    %924 = vmatpush2.msra.mxu0 0.0
    %925 = vmatprep.subr.mxu0 0.0
    %926 = vmatpush2.msra.mxu0 0.0
    %927 = vmatprep.subr.mxu0 0.0
    %928 = vmatpush2.msra.mxu0 0.0
    %929 = vmatprep.subr.mxu0 0.0
    %930 = vmatpush2.msra.mxu0 0.0
    %931 = vmatprep.subr.mxu0 0.0
    %932 = vmatpush2.msra.mxu0 0.0
    %933 = vmatprep.subr.mxu0 0.0
    %934 = vmatpush2.msra.mxu0 0.0
    %935 = vmatprep.subr.mxu0 0.0
    %936 = vmatpush2.msra.mxu0 0.0
    %937 = vmatprep.subr.mxu0 0.0
    %938 = vmatpush2.msra.mxu0 0.0
    %939 = vmatprep.subr.mxu0 0.0
    %940 = vmatpush2.msra.mxu0 0.0
    %941 = vmatprep.subr.mxu0 0.0
    %942 = vmatpush2.msra.mxu0 0.0
    %943 = vmatprep.subr.mxu0 0.0
    %944 = vmatpush2.msra.mxu0 0.0
    %945 = vmatprep.mubr.f32.mxu0 0.0
    %946 = vmatmul.mubr.f32.gmra.mxu0 %v879
    %v947 = vpop.f32.mrf.mxu0
    %v948 = vadd.f32 %v630, %v947
    %v949 = vpop.f32.mrf.mxu0
    %950 = vdwg.mxu0
    %951 = vmax.xlane.f32.xlu0 %v948
    %v952 = vpop.xlane.xlu0 %951
    %v953 = vsub.f32 %v948, %v952
    %v954 = vmul.f32 %v953, 1.442695
    %v955 = vpow.pop %v954
    %956 = vadd.xlane.f32.xlu0 %v955
    %v957 = vpop.xlane.xlu0 %956
    %v958 = vlog2.pop %v957
    %v959 = vmul.f32 %v958, 0.6931472
    %v960 = vsub.f32 %v953, %v959
    %s961 = scalar_lea.vmem [#allocation9], 8
    %962 = vst [vmem:[%s961] sm:$0xff] %v960
    %s963 = scalar_lea.vmem [#allocation3], 48
    %v964 = vld [vmem:[%s963] sm:$0xff]
    %v965 = vld [vmem:[%s963 + $0x8] sm:$0xff]
    %v966 = vld [vmem:[%s963 + $0x10] sm:$0xff]
    %v967 = vld [vmem:[#allocation2] sm:$0xff]
    %968 = vmatprep.subr.mxu0 %v421
    %969 = vmatpush1.msra.mxu0 %v420
    %970 = vmatprep.subr.mxu0 %v418
    %971 = vmatpush1.msra.mxu0 %v417
    %972 = vmatprep.subr.mxu0 %v415
    %973 = vmatpush1.msra.mxu0 %v414
    %974 = vmatprep.subr.mxu0 %v412
    %975 = vmatpush1.msra.mxu0 %v411
    %976 = vmatprep.subr.mxu0 %v409
    %977 = vmatpush1.msra.mxu0 %v408
    %978 = vmatprep.subr.mxu0 %v406
    %979 = vmatpush1.msra.mxu0 %v405
    %980 = vmatprep.subr.mxu0 %v403
    %981 = vmatpush1.msra.mxu0 %v402
    %982 = vmatprep.subr.mxu0 %v400
    %983 = vmatpush1.msra.mxu0 %v399
    %984 = vmatprep.subr.mxu0 %v397
    %985 = vmatpush1.msra.mxu0 %v396
    %986 = vmatprep.subr.mxu0 %v394
    %987 = vmatpush1.msra.mxu0 %v393
    %988 = vmatprep.subr.mxu0 %v391
    %989 = vmatpush1.msra.mxu0 %v390
    %990 = vmatprep.subr.mxu0 %v388
    %991 = vmatpush1.msra.mxu0 %v387
    %992 = vmatprep.subr.mxu0 %v385
    %993 = vmatpush1.msra.mxu0 %v384
    %994 = vmatprep.subr.mxu0 %v382
    %995 = vmatpush1.msra.mxu0 %v381
    %996 = vmatprep.subr.mxu0 %v379
    %997 = vmatpush1.msra.mxu0 %v378
    %998 = vmatprep.subr.mxu0 %v376
    %999 = vmatpush1.msra.mxu0 %v375
    %1000 = vmatprep.subr.mxu0 0.0
    %1001 = vmatpush2.msra.mxu0 0.0
    %1002 = vmatprep.subr.mxu0 0.0
    %1003 = vmatpush2.msra.mxu0 0.0
    %1004 = vmatprep.subr.mxu0 0.0
    %1005 = vmatpush2.msra.mxu0 0.0
    %1006 = vmatprep.subr.mxu0 0.0
    %1007 = vmatpush2.msra.mxu0 0.0
    %1008 = vmatprep.subr.mxu0 0.0
    %1009 = vmatpush2.msra.mxu0 0.0
    %1010 = vmatprep.subr.mxu0 0.0
    %1011 = vmatpush2.msra.mxu0 0.0
    %1012 = vmatprep.subr.mxu0 0.0
    %1013 = vmatpush2.msra.mxu0 0.0
    %1014 = vmatprep.subr.mxu0 0.0
    %1015 = vmatpush2.msra.mxu0 0.0
    %1016 = vmatprep.subr.mxu0 0.0
    %1017 = vmatpush2.msra.mxu0 0.0
    %1018 = vmatprep.subr.mxu0 0.0
    %1019 = vmatpush2.msra.mxu0 0.0
    %1020 = vmatprep.subr.mxu0 0.0
    %1021 = vmatpush2.msra.mxu0 0.0
    %1022 = vmatprep.subr.mxu0 0.0
    %1023 = vmatpush2.msra.mxu0 0.0
    %1024 = vmatprep.subr.mxu0 0.0
    %1025 = vmatpush2.msra.mxu0 0.0
    %1026 = vmatprep.subr.mxu0 0.0
    %1027 = vmatpush2.msra.mxu0 0.0
    %1028 = vmatprep.subr.mxu0 0.0
    %1029 = vmatpush2.msra.mxu0 0.0
    %1030 = vmatprep.subr.mxu0 0.0
    %1031 = vmatpush2.msra.mxu0 0.0
    %1032 = vmatprep.mubr.f32.mxu0 0.0
    %1033 = vmatmul.mubr.f32.gmra.mxu0 %v967
    %v1034 = vpop.f32.mrf.mxu0
    %v1035 = vadd.f32 %v451, %v1034
    %v1036 = vpop.f32.mrf.mxu0
    %v1037 = vadd.f32 %v455, %v1036
    %1038 = vdwg.mxu0
    %1039 = vmatprep.subr.mxu0 0.0
    %1040 = vmatpush1.msra.mxu0 %v422
    %1041 = vmatprep.subr.mxu0 0.0
    %1042 = vmatpush1.msra.mxu0 %v419
    %1043 = vmatprep.subr.mxu0 0.0
    %1044 = vmatpush1.msra.mxu0 %v416
    %1045 = vmatprep.subr.mxu0 0.0
    %1046 = vmatpush1.msra.mxu0 %v413
    %1047 = vmatprep.subr.mxu0 0.0
    %1048 = vmatpush1.msra.mxu0 %v410
    %1049 = vmatprep.subr.mxu0 0.0
    %1050 = vmatpush1.msra.mxu0 %v407
    %1051 = vmatprep.subr.mxu0 0.0
    %1052 = vmatpush1.msra.mxu0 %v404
    %1053 = vmatprep.subr.mxu0 0.0
    %1054 = vmatpush1.msra.mxu0 %v401
    %1055 = vmatprep.subr.mxu0 0.0
    %1056 = vmatpush1.msra.mxu0 %v398
    %1057 = vmatprep.subr.mxu0 0.0
    %1058 = vmatpush1.msra.mxu0 %v395
    %1059 = vmatprep.subr.mxu0 0.0
    %1060 = vmatpush1.msra.mxu0 %v392
    %1061 = vmatprep.subr.mxu0 0.0
    %1062 = vmatpush1.msra.mxu0 %v389
    %1063 = vmatprep.subr.mxu0 0.0
    %1064 = vmatpush1.msra.mxu0 %v386
    %1065 = vmatprep.subr.mxu0 0.0
    %1066 = vmatpush1.msra.mxu0 %v383
    %1067 = vmatprep.subr.mxu0 0.0
    %1068 = vmatpush1.msra.mxu0 %v380
    %1069 = vmatprep.subr.mxu0 0.0
    %1070 = vmatpush1.msra.mxu0 %v377
    %1071 = vmatprep.subr.mxu0 0.0
    %1072 = vmatpush2.msra.mxu0 0.0
    %1073 = vmatprep.subr.mxu0 0.0
    %1074 = vmatpush2.msra.mxu0 0.0
    %1075 = vmatprep.subr.mxu0 0.0
    %1076 = vmatpush2.msra.mxu0 0.0
    %1077 = vmatprep.subr.mxu0 0.0
    %1078 = vmatpush2.msra.mxu0 0.0
    %1079 = vmatprep.subr.mxu0 0.0
    %1080 = vmatpush2.msra.mxu0 0.0
    %1081 = vmatprep.subr.mxu0 0.0
    %1082 = vmatpush2.msra.mxu0 0.0
    %1083 = vmatprep.subr.mxu0 0.0
    %1084 = vmatpush2.msra.mxu0 0.0
    %1085 = vmatprep.subr.mxu0 0.0
    %1086 = vmatpush2.msra.mxu0 0.0
    %1087 = vmatprep.subr.mxu0 0.0
    %1088 = vmatpush2.msra.mxu0 0.0
    %1089 = vmatprep.subr.mxu0 0.0
    %1090 = vmatpush2.msra.mxu0 0.0
    %1091 = vmatprep.subr.mxu0 0.0
    %1092 = vmatpush2.msra.mxu0 0.0
    %1093 = vmatprep.subr.mxu0 0.0
    %1094 = vmatpush2.msra.mxu0 0.0
    %1095 = vmatprep.subr.mxu0 0.0
    %1096 = vmatpush2.msra.mxu0 0.0
    %1097 = vmatprep.subr.mxu0 0.0
    %1098 = vmatpush2.msra.mxu0 0.0
    %1099 = vmatprep.subr.mxu0 0.0
    %1100 = vmatpush2.msra.mxu0 0.0
    %1101 = vmatprep.subr.mxu0 0.0
    %1102 = vmatpush2.msra.mxu0 0.0
    %1103 = vmatprep.mubr.f32.mxu0 0.0
    %1104 = vmatmul.mubr.f32.gmra.mxu0 %v967
    %v1105 = vpop.f32.mrf.mxu0
    %v1106 = vadd.f32 %v459, %v1105
    %v1107 = vpop.f32.mrf.mxu0
    %1108 = vdwg.mxu0
    %v1109 = vadd.f32 %v964, %v1035
    %v1110 = vxor.u32 %v1109, 2147483648
    %v1111 = vmul.f32 %v1110, 1.442695
    %v1112 = vpow.pop %v1111
    %v1113 = vadd.f32 %v1112, 1.0
    %v1114 = vrcp.pop %v1113
    %v1115 = vmul.f32 1.0, %v1114
    %v1116 = vadd.f32 %v965, %v1037
    %v1117 = vxor.u32 %v1116, 2147483648
    %v1118 = vmul.f32 %v1117, 1.442695
    %v1119 = vpow.pop %v1118
    %v1120 = vadd.f32 %v1119, 1.0
    %v1121 = vrcp.pop %v1120
    %v1122 = vmul.f32 1.0, %v1121
    %v1123 = vmul.f32 %v1115, %v1106
    %v1124 = vadd.f32 %v966, %v1123
    %v1125 = vtanh.pop %v1124
    %v1126 = vsub.f32 1.0, %v1122
    %v1127 = vmul.f32 %v1126, %v1125
    %v1128 = vmul.f32 %v1122, %v967
    %v1129 = vadd.f32 %v1127, %v1128
    %1130 = vst [vmem:[#allocation2] sm:$0xff] %v1129
    %1131 = vmatprep.subr.mxu0 0.0
    %1132 = vmatpush1.msra.mxu0 %v439
    %1133 = vmatprep.subr.mxu0 0.0
    %1134 = vmatpush1.msra.mxu0 %v438
    %1135 = vmatprep.subr.mxu0 0.0
    %1136 = vmatpush1.msra.mxu0 %v437
    %1137 = vmatprep.subr.mxu0 0.0
    %1138 = vmatpush1.msra.mxu0 %v436
    %1139 = vmatprep.subr.mxu0 0.0
    %1140 = vmatpush1.msra.mxu0 %v435
    %1141 = vmatprep.subr.mxu0 0.0
    %1142 = vmatpush1.msra.mxu0 %v434
    %1143 = vmatprep.subr.mxu0 0.0
    %1144 = vmatpush1.msra.mxu0 %v433
    %1145 = vmatprep.subr.mxu0 0.0
    %1146 = vmatpush1.msra.mxu0 %v432
    %1147 = vmatprep.subr.mxu0 0.0
    %1148 = vmatpush1.msra.mxu0 %v431
    %1149 = vmatprep.subr.mxu0 0.0
    %1150 = vmatpush1.msra.mxu0 %v430
    %1151 = vmatprep.subr.mxu0 0.0
    %1152 = vmatpush1.msra.mxu0 %v429
    %1153 = vmatprep.subr.mxu0 0.0
    %1154 = vmatpush1.msra.mxu0 %v428
    %1155 = vmatprep.subr.mxu0 0.0
    %1156 = vmatpush1.msra.mxu0 %v427
    %1157 = vmatprep.subr.mxu0 0.0
    %1158 = vmatpush1.msra.mxu0 %v426
    %1159 = vmatprep.subr.mxu0 0.0
    %1160 = vmatpush1.msra.mxu0 %v425
    %1161 = vmatprep.subr.mxu0 0.0
    %1162 = vmatpush1.msra.mxu0 %v424
    %1163 = vmatprep.subr.mxu0 0.0
    %1164 = vmatpush2.msra.mxu0 0.0
    %1165 = vmatprep.subr.mxu0 0.0
    %1166 = vmatpush2.msra.mxu0 0.0
    %1167 = vmatprep.subr.mxu0 0.0
    %1168 = vmatpush2.msra.mxu0 0.0
    %1169 = vmatprep.subr.mxu0 0.0
    %1170 = vmatpush2.msra.mxu0 0.0
    %1171 = vmatprep.subr.mxu0 0.0
    %1172 = vmatpush2.msra.mxu0 0.0
    %1173 = vmatprep.subr.mxu0 0.0
    %1174 = vmatpush2.msra.mxu0 0.0
    %1175 = vmatprep.subr.mxu0 0.0
    %1176 = vmatpush2.msra.mxu0 0.0
    %1177 = vmatprep.subr.mxu0 0.0
    %1178 = vmatpush2.msra.mxu0 0.0
    %1179 = vmatprep.subr.mxu0 0.0
    %1180 = vmatpush2.msra.mxu0 0.0
    %1181 = vmatprep.subr.mxu0 0.0
    %1182 = vmatpush2.msra.mxu0 0.0
    %1183 = vmatprep.subr.mxu0 0.0
    %1184 = vmatpush2.msra.mxu0 0.0
    %1185 = vmatprep.subr.mxu0 0.0
    %1186 = vmatpush2.msra.mxu0 0.0
    %1187 = vmatprep.subr.mxu0 0.0
    %1188 = vmatpush2.msra.mxu0 0.0
    %1189 = vmatprep.subr.mxu0 0.0
    %1190 = vmatpush2.msra.mxu0 0.0
    %1191 = vmatprep.subr.mxu0 0.0
    %1192 = vmatpush2.msra.mxu0 0.0
    %1193 = vmatprep.subr.mxu0 0.0
    %1194 = vmatpush2.msra.mxu0 0.0
    %1195 = vmatprep.mubr.f32.mxu0 0.0
    %1196 = vmatmul.mubr.f32.gmra.mxu0 %v1129
    %v1197 = vpop.f32.mrf.mxu0
    %v1198 = vadd.f32 %v630, %v1197
    %v1199 = vpop.f32.mrf.mxu0
    %1200 = vdwg.mxu0
    %1201 = vmax.xlane.f32.xlu0 %v1198
    %v1202 = vpop.xlane.xlu0 %1201
    %v1203 = vsub.f32 %v1198, %v1202
    %v1204 = vmul.f32 %v1203, 1.442695
    %v1205 = vpow.pop %v1204
    %1206 = vadd.xlane.f32.xlu0 %v1205
    %v1207 = vpop.xlane.xlu0 %1206
    %v1208 = vlog2.pop %v1207
    %v1209 = vmul.f32 %v1208, 0.6931472
    %v1210 = vsub.f32 %v1203, %v1209
    %s1211 = scalar_lea.vmem [#allocation9], 16
    %1212 = vst [vmem:[%s1211] sm:$0xff] %v1210
    %s1213 = scalar_lea.vmem [#allocation3], 72
    %v1214 = vld [vmem:[%s1213] sm:$0xff]
    %v1215 = vld [vmem:[%s1213 + $0x8] sm:$0xff]
    %v1216 = vld [vmem:[%s1213 + $0x10] sm:$0xff]
    %v1217 = vld [vmem:[#allocation2] sm:$0xff]
    %1218 = vmatprep.subr.mxu0 %v421
    %1219 = vmatpush1.msra.mxu0 %v420
    %1220 = vmatprep.subr.mxu0 %v418
    %1221 = vmatpush1.msra.mxu0 %v417
    %1222 = vmatprep.subr.mxu0 %v415
    %1223 = vmatpush1.msra.mxu0 %v414
    %1224 = vmatprep.subr.mxu0 %v412
    %1225 = vmatpush1.msra.mxu0 %v411
    %1226 = vmatprep.subr.mxu0 %v409
    %1227 = vmatpush1.msra.mxu0 %v408
    %1228 = vmatprep.subr.mxu0 %v406
    %1229 = vmatpush1.msra.mxu0 %v405
    %1230 = vmatprep.subr.mxu0 %v403
    %1231 = vmatpush1.msra.mxu0 %v402
    %1232 = vmatprep.subr.mxu0 %v400
    %1233 = vmatpush1.msra.mxu0 %v399
    %1234 = vmatprep.subr.mxu0 %v397
    %1235 = vmatpush1.msra.mxu0 %v396
    %1236 = vmatprep.subr.mxu0 %v394
    %1237 = vmatpush1.msra.mxu0 %v393
    %1238 = vmatprep.subr.mxu0 %v391
    %1239 = vmatpush1.msra.mxu0 %v390
    %1240 = vmatprep.subr.mxu0 %v388
    %1241 = vmatpush1.msra.mxu0 %v387
    %1242 = vmatprep.subr.mxu0 %v385
    %1243 = vmatpush1.msra.mxu0 %v384
    %1244 = vmatprep.subr.mxu0 %v382
    %1245 = vmatpush1.msra.mxu0 %v381
    %1246 = vmatprep.subr.mxu0 %v379
    %1247 = vmatpush1.msra.mxu0 %v378
    %1248 = vmatprep.subr.mxu0 %v376
    %1249 = vmatpush1.msra.mxu0 %v375
    %1250 = vmatprep.subr.mxu0 0.0
    %1251 = vmatpush2.msra.mxu0 0.0
    %1252 = vmatprep.subr.mxu0 0.0
    %1253 = vmatpush2.msra.mxu0 0.0
    %1254 = vmatprep.subr.mxu0 0.0
    %1255 = vmatpush2.msra.mxu0 0.0
    %1256 = vmatprep.subr.mxu0 0.0
    %1257 = vmatpush2.msra.mxu0 0.0
    %1258 = vmatprep.subr.mxu0 0.0
    %1259 = vmatpush2.msra.mxu0 0.0
    %1260 = vmatprep.subr.mxu0 0.0
    %1261 = vmatpush2.msra.mxu0 0.0
    %1262 = vmatprep.subr.mxu0 0.0
    %1263 = vmatpush2.msra.mxu0 0.0
    %1264 = vmatprep.subr.mxu0 0.0
    %1265 = vmatpush2.msra.mxu0 0.0
    %1266 = vmatprep.subr.mxu0 0.0
    %1267 = vmatpush2.msra.mxu0 0.0
    %1268 = vmatprep.subr.mxu0 0.0
    %1269 = vmatpush2.msra.mxu0 0.0
    %1270 = vmatprep.subr.mxu0 0.0
    %1271 = vmatpush2.msra.mxu0 0.0
    %1272 = vmatprep.subr.mxu0 0.0
    %1273 = vmatpush2.msra.mxu0 0.0
    %1274 = vmatprep.subr.mxu0 0.0
    %1275 = vmatpush2.msra.mxu0 0.0
    %1276 = vmatprep.subr.mxu0 0.0
    %1277 = vmatpush2.msra.mxu0 0.0
    %1278 = vmatprep.subr.mxu0 0.0
    %1279 = vmatpush2.msra.mxu0 0.0
    %1280 = vmatprep.subr.mxu0 0.0
    %1281 = vmatpush2.msra.mxu0 0.0
    %1282 = vmatprep.mubr.f32.mxu0 0.0
    %1283 = vmatmul.mubr.f32.gmra.mxu0 %v1217
    %v1284 = vpop.f32.mrf.mxu0
    %v1285 = vadd.f32 %v451, %v1284
    %v1286 = vpop.f32.mrf.mxu0
    %v1287 = vadd.f32 %v455, %v1286
    %1288 = vdwg.mxu0
    %1289 = vmatprep.subr.mxu0 0.0
    %1290 = vmatpush1.msra.mxu0 %v422
    %1291 = vmatprep.subr.mxu0 0.0
    %1292 = vmatpush1.msra.mxu0 %v419
    %1293 = vmatprep.subr.mxu0 0.0
    %1294 = vmatpush1.msra.mxu0 %v416
    %1295 = vmatprep.subr.mxu0 0.0
    %1296 = vmatpush1.msra.mxu0 %v413
    %1297 = vmatprep.subr.mxu0 0.0
    %1298 = vmatpush1.msra.mxu0 %v410
    %1299 = vmatprep.subr.mxu0 0.0
    %1300 = vmatpush1.msra.mxu0 %v407
    %1301 = vmatprep.subr.mxu0 0.0
    %1302 = vmatpush1.msra.mxu0 %v404
    %1303 = vmatprep.subr.mxu0 0.0
    %1304 = vmatpush1.msra.mxu0 %v401
    %1305 = vmatprep.subr.mxu0 0.0
    %1306 = vmatpush1.msra.mxu0 %v398
    %1307 = vmatprep.subr.mxu0 0.0
    %1308 = vmatpush1.msra.mxu0 %v395
    %1309 = vmatprep.subr.mxu0 0.0
    %1310 = vmatpush1.msra.mxu0 %v392
    %1311 = vmatprep.subr.mxu0 0.0
    %1312 = vmatpush1.msra.mxu0 %v389
    %1313 = vmatprep.subr.mxu0 0.0
    %1314 = vmatpush1.msra.mxu0 %v386
    %1315 = vmatprep.subr.mxu0 0.0
    %1316 = vmatpush1.msra.mxu0 %v383
    %1317 = vmatprep.subr.mxu0 0.0
    %1318 = vmatpush1.msra.mxu0 %v380
    %1319 = vmatprep.subr.mxu0 0.0
    %1320 = vmatpush1.msra.mxu0 %v377
    %1321 = vmatprep.subr.mxu0 0.0
    %1322 = vmatpush2.msra.mxu0 0.0
    %1323 = vmatprep.subr.mxu0 0.0
    %1324 = vmatpush2.msra.mxu0 0.0
    %1325 = vmatprep.subr.mxu0 0.0
    %1326 = vmatpush2.msra.mxu0 0.0
    %1327 = vmatprep.subr.mxu0 0.0
    %1328 = vmatpush2.msra.mxu0 0.0
    %1329 = vmatprep.subr.mxu0 0.0
    %1330 = vmatpush2.msra.mxu0 0.0
    %1331 = vmatprep.subr.mxu0 0.0
    %1332 = vmatpush2.msra.mxu0 0.0
    %1333 = vmatprep.subr.mxu0 0.0
    %1334 = vmatpush2.msra.mxu0 0.0
    %1335 = vmatprep.subr.mxu0 0.0
    %1336 = vmatpush2.msra.mxu0 0.0
    %1337 = vmatprep.subr.mxu0 0.0
    %1338 = vmatpush2.msra.mxu0 0.0
    %1339 = vmatprep.subr.mxu0 0.0
    %1340 = vmatpush2.msra.mxu0 0.0
    %1341 = vmatprep.subr.mxu0 0.0
    %1342 = vmatpush2.msra.mxu0 0.0
    %1343 = vmatprep.subr.mxu0 0.0
    %1344 = vmatpush2.msra.mxu0 0.0
    %1345 = vmatprep.subr.mxu0 0.0
    %1346 = vmatpush2.msra.mxu0 0.0
    %1347 = vmatprep.subr.mxu0 0.0
    %1348 = vmatpush2.msra.mxu0 0.0
    %1349 = vmatprep.subr.mxu0 0.0
    %1350 = vmatpush2.msra.mxu0 0.0
    %1351 = vmatprep.subr.mxu0 0.0
    %1352 = vmatpush2.msra.mxu0 0.0
    %1353 = vmatprep.mubr.f32.mxu0 0.0
    %1354 = vmatmul.mubr.f32.gmra.mxu0 %v1217
    %v1355 = vpop.f32.mrf.mxu0
    %v1356 = vadd.f32 %v459, %v1355
    %v1357 = vpop.f32.mrf.mxu0
    %1358 = vdwg.mxu0
    %v1359 = vadd.f32 %v1214, %v1285
    %v1360 = vxor.u32 %v1359, 2147483648
    %v1361 = vmul.f32 %v1360, 1.442695
    %v1362 = vpow.pop %v1361
    %v1363 = vadd.f32 %v1362, 1.0
    %v1364 = vrcp.pop %v1363
    %v1365 = vmul.f32 1.0, %v1364
    %v1366 = vadd.f32 %v1215, %v1287
    %v1367 = vxor.u32 %v1366, 2147483648
    %v1368 = vmul.f32 %v1367, 1.442695
    %v1369 = vpow.pop %v1368
    %v1370 = vadd.f32 %v1369, 1.0
    %v1371 = vrcp.pop %v1370
    %v1372 = vmul.f32 1.0, %v1371
    %v1373 = vmul.f32 %v1365, %v1356
    %v1374 = vadd.f32 %v1216, %v1373
    %v1375 = vtanh.pop %v1374
    %v1376 = vsub.f32 1.0, %v1372
    %v1377 = vmul.f32 %v1376, %v1375
    %v1378 = vmul.f32 %v1372, %v1217
    %v1379 = vadd.f32 %v1377, %v1378
    %1380 = vst [vmem:[#allocation2] sm:$0xff] %v1379
    %1381 = vmatprep.subr.mxu0 0.0
    %1382 = vmatpush1.msra.mxu0 %v439
    %1383 = vmatprep.subr.mxu0 0.0
    %1384 = vmatpush1.msra.mxu0 %v438
    %1385 = vmatprep.subr.mxu0 0.0
    %1386 = vmatpush1.msra.mxu0 %v437
    %1387 = vmatprep.subr.mxu0 0.0
    %1388 = vmatpush1.msra.mxu0 %v436
    %1389 = vmatprep.subr.mxu0 0.0
    %1390 = vmatpush1.msra.mxu0 %v435
    %1391 = vmatprep.subr.mxu0 0.0
    %1392 = vmatpush1.msra.mxu0 %v434
    %1393 = vmatprep.subr.mxu0 0.0
    %1394 = vmatpush1.msra.mxu0 %v433
    %1395 = vmatprep.subr.mxu0 0.0
    %1396 = vmatpush1.msra.mxu0 %v432
    %1397 = vmatprep.subr.mxu0 0.0
    %1398 = vmatpush1.msra.mxu0 %v431
    %1399 = vmatprep.subr.mxu0 0.0
    %1400 = vmatpush1.msra.mxu0 %v430
    %1401 = vmatprep.subr.mxu0 0.0
    %1402 = vmatpush1.msra.mxu0 %v429
    %1403 = vmatprep.subr.mxu0 0.0
    %1404 = vmatpush1.msra.mxu0 %v428
    %1405 = vmatprep.subr.mxu0 0.0
    %1406 = vmatpush1.msra.mxu0 %v427
    %1407 = vmatprep.subr.mxu0 0.0
    %1408 = vmatpush1.msra.mxu0 %v426
    %1409 = vmatprep.subr.mxu0 0.0
    %1410 = vmatpush1.msra.mxu0 %v425
    %1411 = vmatprep.subr.mxu0 0.0
    %1412 = vmatpush1.msra.mxu0 %v424
    %1413 = vmatprep.subr.mxu0 0.0
    %1414 = vmatpush2.msra.mxu0 0.0
    %1415 = vmatprep.subr.mxu0 0.0
    %1416 = vmatpush2.msra.mxu0 0.0
    %1417 = vmatprep.subr.mxu0 0.0
    %1418 = vmatpush2.msra.mxu0 0.0
    %1419 = vmatprep.subr.mxu0 0.0
    %1420 = vmatpush2.msra.mxu0 0.0
    %1421 = vmatprep.subr.mxu0 0.0
    %1422 = vmatpush2.msra.mxu0 0.0
    %1423 = vmatprep.subr.mxu0 0.0
    %1424 = vmatpush2.msra.mxu0 0.0
    %1425 = vmatprep.subr.mxu0 0.0
    %1426 = vmatpush2.msra.mxu0 0.0
    %1427 = vmatprep.subr.mxu0 0.0
    %1428 = vmatpush2.msra.mxu0 0.0
    %1429 = vmatprep.subr.mxu0 0.0
    %1430 = vmatpush2.msra.mxu0 0.0
    %1431 = vmatprep.subr.mxu0 0.0
    %1432 = vmatpush2.msra.mxu0 0.0
    %1433 = vmatprep.subr.mxu0 0.0
    %1434 = vmatpush2.msra.mxu0 0.0
    %1435 = vmatprep.subr.mxu0 0.0
    %1436 = vmatpush2.msra.mxu0 0.0
    %1437 = vmatprep.subr.mxu0 0.0
    %1438 = vmatpush2.msra.mxu0 0.0
    %1439 = vmatprep.subr.mxu0 0.0
    %1440 = vmatpush2.msra.mxu0 0.0
    %1441 = vmatprep.subr.mxu0 0.0
    %1442 = vmatpush2.msra.mxu0 0.0
    %1443 = vmatprep.subr.mxu0 0.0
    %1444 = vmatpush2.msra.mxu0 0.0
    %1445 = vmatprep.mubr.f32.mxu0 0.0
    %1446 = vmatmul.mubr.f32.gmra.mxu0 %v1379
    %v1447 = vpop.f32.mrf.mxu0
    %v1448 = vadd.f32 %v630, %v1447
    %v1449 = vpop.f32.mrf.mxu0
    %1450 = vdwg.mxu0
    %1451 = vmax.xlane.f32.xlu0 %v1448
    %v1452 = vpop.xlane.xlu0 %1451
    %v1453 = vsub.f32 %v1448, %v1452
    %v1454 = vmul.f32 %v1453, 1.442695
    %v1455 = vpow.pop %v1454
    %1456 = vadd.xlane.f32.xlu0 %v1455
    %v1457 = vpop.xlane.xlu0 %1456
    %v1458 = vlog2.pop %v1457
    %v1459 = vmul.f32 %v1458, 0.6931472
    %v1460 = vsub.f32 %v1453, %v1459
    %s1461 = scalar_lea.vmem [#allocation9], 24
    %1462 = vst [vmem:[%s1461] sm:$0xff] %v1460
    %s1463 = scalar_lea.vmem [#allocation3], 96
    %v1464 = vld [vmem:[%s1463] sm:$0xff]
    %v1465 = vld [vmem:[%s1463 + $0x8] sm:$0xff]
    %v1466 = vld [vmem:[%s1463 + $0x10] sm:$0xff]
    %v1467 = vld [vmem:[#allocation2] sm:$0xff]
    %1468 = vmatprep.subr.mxu0 %v421
    %1469 = vmatpush1.msra.mxu0 %v420
    %1470 = vmatprep.subr.mxu0 %v418
    %1471 = vmatpush1.msra.mxu0 %v417
    %1472 = vmatprep.subr.mxu0 %v415
    %1473 = vmatpush1.msra.mxu0 %v414
    %1474 = vmatprep.subr.mxu0 %v412
    %1475 = vmatpush1.msra.mxu0 %v411
    %1476 = vmatprep.subr.mxu0 %v409
    %1477 = vmatpush1.msra.mxu0 %v408
    %1478 = vmatprep.subr.mxu0 %v406
    %1479 = vmatpush1.msra.mxu0 %v405
    %1480 = vmatprep.subr.mxu0 %v403
    %1481 = vmatpush1.msra.mxu0 %v402
    %1482 = vmatprep.subr.mxu0 %v400
    %1483 = vmatpush1.msra.mxu0 %v399
    %1484 = vmatprep.subr.mxu0 %v397
    %1485 = vmatpush1.msra.mxu0 %v396
    %1486 = vmatprep.subr.mxu0 %v394
    %1487 = vmatpush1.msra.mxu0 %v393
    %1488 = vmatprep.subr.mxu0 %v391
    %1489 = vmatpush1.msra.mxu0 %v390
    %1490 = vmatprep.subr.mxu0 %v388
    %1491 = vmatpush1.msra.mxu0 %v387
    %1492 = vmatprep.subr.mxu0 %v385
    %1493 = vmatpush1.msra.mxu0 %v384
    %1494 = vmatprep.subr.mxu0 %v382
    %1495 = vmatpush1.msra.mxu0 %v381
    %1496 = vmatprep.subr.mxu0 %v379
    %1497 = vmatpush1.msra.mxu0 %v378
    %1498 = vmatprep.subr.mxu0 %v376
    %1499 = vmatpush1.msra.mxu0 %v375
    %1500 = vmatprep.subr.mxu0 0.0
    %1501 = vmatpush2.msra.mxu0 0.0
    %1502 = vmatprep.subr.mxu0 0.0
    %1503 = vmatpush2.msra.mxu0 0.0
    %1504 = vmatprep.subr.mxu0 0.0
    %1505 = vmatpush2.msra.mxu0 0.0
    %1506 = vmatprep.subr.mxu0 0.0
    %1507 = vmatpush2.msra.mxu0 0.0
    %1508 = vmatprep.subr.mxu0 0.0
    %1509 = vmatpush2.msra.mxu0 0.0
    %1510 = vmatprep.subr.mxu0 0.0
    %1511 = vmatpush2.msra.mxu0 0.0
    %1512 = vmatprep.subr.mxu0 0.0
    %1513 = vmatpush2.msra.mxu0 0.0
    %1514 = vmatprep.subr.mxu0 0.0
    %1515 = vmatpush2.msra.mxu0 0.0
    %1516 = vmatprep.subr.mxu0 0.0
    %1517 = vmatpush2.msra.mxu0 0.0
    %1518 = vmatprep.subr.mxu0 0.0
    %1519 = vmatpush2.msra.mxu0 0.0
    %1520 = vmatprep.subr.mxu0 0.0
    %1521 = vmatpush2.msra.mxu0 0.0
    %1522 = vmatprep.subr.mxu0 0.0
    %1523 = vmatpush2.msra.mxu0 0.0
    %1524 = vmatprep.subr.mxu0 0.0
    %1525 = vmatpush2.msra.mxu0 0.0
    %1526 = vmatprep.subr.mxu0 0.0
    %1527 = vmatpush2.msra.mxu0 0.0
    %1528 = vmatprep.subr.mxu0 0.0
    %1529 = vmatpush2.msra.mxu0 0.0
    %1530 = vmatprep.subr.mxu0 0.0
    %1531 = vmatpush2.msra.mxu0 0.0
    %1532 = vmatprep.mubr.f32.mxu0 0.0
    %1533 = vmatmul.mubr.f32.gmra.mxu0 %v1467
    %v1534 = vpop.f32.mrf.mxu0
    %v1535 = vadd.f32 %v451, %v1534
    %v1536 = vpop.f32.mrf.mxu0
    %v1537 = vadd.f32 %v455, %v1536
    %1538 = vdwg.mxu0
    %1539 = vmatprep.subr.mxu0 0.0
    %1540 = vmatpush1.msra.mxu0 %v422
    %1541 = vmatprep.subr.mxu0 0.0
    %1542 = vmatpush1.msra.mxu0 %v419
    %1543 = vmatprep.subr.mxu0 0.0
    %1544 = vmatpush1.msra.mxu0 %v416
    %1545 = vmatprep.subr.mxu0 0.0
    %1546 = vmatpush1.msra.mxu0 %v413
    %1547 = vmatprep.subr.mxu0 0.0
    %1548 = vmatpush1.msra.mxu0 %v410
    %1549 = vmatprep.subr.mxu0 0.0
    %1550 = vmatpush1.msra.mxu0 %v407
    %1551 = vmatprep.subr.mxu0 0.0
    %1552 = vmatpush1.msra.mxu0 %v404
    %1553 = vmatprep.subr.mxu0 0.0
    %1554 = vmatpush1.msra.mxu0 %v401
    %1555 = vmatprep.subr.mxu0 0.0
    %1556 = vmatpush1.msra.mxu0 %v398
    %1557 = vmatprep.subr.mxu0 0.0
    %1558 = vmatpush1.msra.mxu0 %v395
    %1559 = vmatprep.subr.mxu0 0.0
    %1560 = vmatpush1.msra.mxu0 %v392
    %1561 = vmatprep.subr.mxu0 0.0
    %1562 = vmatpush1.msra.mxu0 %v389
    %1563 = vmatprep.subr.mxu0 0.0
    %1564 = vmatpush1.msra.mxu0 %v386
    %1565 = vmatprep.subr.mxu0 0.0
    %1566 = vmatpush1.msra.mxu0 %v383
    %1567 = vmatprep.subr.mxu0 0.0
    %1568 = vmatpush1.msra.mxu0 %v380
    %1569 = vmatprep.subr.mxu0 0.0
    %1570 = vmatpush1.msra.mxu0 %v377
    %1571 = vmatprep.subr.mxu0 0.0
    %1572 = vmatpush2.msra.mxu0 0.0
    %1573 = vmatprep.subr.mxu0 0.0
    %1574 = vmatpush2.msra.mxu0 0.0
    %1575 = vmatprep.subr.mxu0 0.0
    %1576 = vmatpush2.msra.mxu0 0.0
    %1577 = vmatprep.subr.mxu0 0.0
    %1578 = vmatpush2.msra.mxu0 0.0
    %1579 = vmatprep.subr.mxu0 0.0
    %1580 = vmatpush2.msra.mxu0 0.0
    %1581 = vmatprep.subr.mxu0 0.0
    %1582 = vmatpush2.msra.mxu0 0.0
    %1583 = vmatprep.subr.mxu0 0.0
    %1584 = vmatpush2.msra.mxu0 0.0
    %1585 = vmatprep.subr.mxu0 0.0
    %1586 = vmatpush2.msra.mxu0 0.0
    %1587 = vmatprep.subr.mxu0 0.0
    %1588 = vmatpush2.msra.mxu0 0.0
    %1589 = vmatprep.subr.mxu0 0.0
    %1590 = vmatpush2.msra.mxu0 0.0
    %1591 = vmatprep.subr.mxu0 0.0
    %1592 = vmatpush2.msra.mxu0 0.0
    %1593 = vmatprep.subr.mxu0 0.0
    %1594 = vmatpush2.msra.mxu0 0.0
    %1595 = vmatprep.subr.mxu0 0.0
    %1596 = vmatpush2.msra.mxu0 0.0
    %1597 = vmatprep.subr.mxu0 0.0
    %1598 = vmatpush2.msra.mxu0 0.0
    %1599 = vmatprep.subr.mxu0 0.0
    %1600 = vmatpush2.msra.mxu0 0.0
    %1601 = vmatprep.subr.mxu0 0.0
    %1602 = vmatpush2.msra.mxu0 0.0
    %1603 = vmatprep.mubr.f32.mxu0 0.0
    %1604 = vmatmul.mubr.f32.gmra.mxu0 %v1467
    %v1605 = vpop.f32.mrf.mxu0
    %v1606 = vadd.f32 %v459, %v1605
    %v1607 = vpop.f32.mrf.mxu0
    %1608 = vdwg.mxu0
    %v1609 = vadd.f32 %v1464, %v1535
    %v1610 = vxor.u32 %v1609, 2147483648
    %v1611 = vmul.f32 %v1610, 1.442695
    %v1612 = vpow.pop %v1611
    %v1613 = vadd.f32 %v1612, 1.0
    %v1614 = vrcp.pop %v1613
    %v1615 = vmul.f32 1.0, %v1614
    %v1616 = vadd.f32 %v1465, %v1537
    %v1617 = vxor.u32 %v1616, 2147483648
    %v1618 = vmul.f32 %v1617, 1.442695
    %v1619 = vpow.pop %v1618
    %v1620 = vadd.f32 %v1619, 1.0
    %v1621 = vrcp.pop %v1620
    %v1622 = vmul.f32 1.0, %v1621
    %v1623 = vmul.f32 %v1615, %v1606
    %v1624 = vadd.f32 %v1466, %v1623
    %v1625 = vtanh.pop %v1624
    %v1626 = vsub.f32 1.0, %v1622
    %v1627 = vmul.f32 %v1626, %v1625
    %v1628 = vmul.f32 %v1622, %v1467
    %v1629 = vadd.f32 %v1627, %v1628
    %1630 = vst [vmem:[#allocation2] sm:$0xff] %v1629
    %1631 = vmatprep.subr.mxu0 0.0
    %1632 = vmatpush1.msra.mxu0 %v439
    %1633 = vmatprep.subr.mxu0 0.0
    %1634 = vmatpush1.msra.mxu0 %v438
    %1635 = vmatprep.subr.mxu0 0.0
    %1636 = vmatpush1.msra.mxu0 %v437
    %1637 = vmatprep.subr.mxu0 0.0
    %1638 = vmatpush1.msra.mxu0 %v436
    %1639 = vmatprep.subr.mxu0 0.0
    %1640 = vmatpush1.msra.mxu0 %v435
    %1641 = vmatprep.subr.mxu0 0.0
    %1642 = vmatpush1.msra.mxu0 %v434
    %1643 = vmatprep.subr.mxu0 0.0
    %1644 = vmatpush1.msra.mxu0 %v433
    %1645 = vmatprep.subr.mxu0 0.0
    %1646 = vmatpush1.msra.mxu0 %v432
    %1647 = vmatprep.subr.mxu0 0.0
    %1648 = vmatpush1.msra.mxu0 %v431
    %1649 = vmatprep.subr.mxu0 0.0
    %1650 = vmatpush1.msra.mxu0 %v430
    %1651 = vmatprep.subr.mxu0 0.0
    %1652 = vmatpush1.msra.mxu0 %v429
    %1653 = vmatprep.subr.mxu0 0.0
    %1654 = vmatpush1.msra.mxu0 %v428
    %1655 = vmatprep.subr.mxu0 0.0
    %1656 = vmatpush1.msra.mxu0 %v427
    %1657 = vmatprep.subr.mxu0 0.0
    %1658 = vmatpush1.msra.mxu0 %v426
    %1659 = vmatprep.subr.mxu0 0.0
    %1660 = vmatpush1.msra.mxu0 %v425
    %1661 = vmatprep.subr.mxu0 0.0
    %1662 = vmatpush1.msra.mxu0 %v424
    %1663 = vmatprep.subr.mxu0 0.0
    %1664 = vmatpush2.msra.mxu0 0.0
    %1665 = vmatprep.subr.mxu0 0.0
    %1666 = vmatpush2.msra.mxu0 0.0
    %1667 = vmatprep.subr.mxu0 0.0
    %1668 = vmatpush2.msra.mxu0 0.0
    %1669 = vmatprep.subr.mxu0 0.0
    %1670 = vmatpush2.msra.mxu0 0.0
    %1671 = vmatprep.subr.mxu0 0.0
    %1672 = vmatpush2.msra.mxu0 0.0
    %1673 = vmatprep.subr.mxu0 0.0
    %1674 = vmatpush2.msra.mxu0 0.0
    %1675 = vmatprep.subr.mxu0 0.0
    %1676 = vmatpush2.msra.mxu0 0.0
    %1677 = vmatprep.subr.mxu0 0.0
    %1678 = vmatpush2.msra.mxu0 0.0
    %1679 = vmatprep.subr.mxu0 0.0
    %1680 = vmatpush2.msra.mxu0 0.0
    %1681 = vmatprep.subr.mxu0 0.0
    %1682 = vmatpush2.msra.mxu0 0.0
    %1683 = vmatprep.subr.mxu0 0.0
    %1684 = vmatpush2.msra.mxu0 0.0
    %1685 = vmatprep.subr.mxu0 0.0
    %1686 = vmatpush2.msra.mxu0 0.0
    %1687 = vmatprep.subr.mxu0 0.0
    %1688 = vmatpush2.msra.mxu0 0.0
    %1689 = vmatprep.subr.mxu0 0.0
    %1690 = vmatpush2.msra.mxu0 0.0
    %1691 = vmatprep.subr.mxu0 0.0
    %1692 = vmatpush2.msra.mxu0 0.0
    %1693 = vmatprep.subr.mxu0 0.0
    %1694 = vmatpush2.msra.mxu0 0.0
    %1695 = vmatprep.mubr.f32.mxu0 0.0
    %1696 = vmatmul.mubr.f32.gmra.mxu0 %v1629
    %v1697 = vpop.f32.mrf.mxu0
    %v1698 = vadd.f32 %v630, %v1697
    %v1699 = vpop.f32.mrf.mxu0
    %1700 = vdwg.mxu0
    %1701 = vmax.xlane.f32.xlu0 %v1698
    %v1702 = vpop.xlane.xlu0 %1701
    %v1703 = vsub.f32 %v1698, %v1702
    %v1704 = vmul.f32 %v1703, 1.442695
    %v1705 = vpow.pop %v1704
    %1706 = vadd.xlane.f32.xlu0 %v1705
    %v1707 = vpop.xlane.xlu0 %1706
    %v1708 = vlog2.pop %v1707
    %v1709 = vmul.f32 %v1708, 0.6931472
    %v1710 = vsub.f32 %v1703, %v1709
    %s1711 = scalar_lea.vmem [#allocation9], 32
    %1712 = vst [vmem:[%s1711] sm:$0xff] %v1710
    %s1713 = scalar_lea.vmem [#allocation3], 120
    %v1714 = vld [vmem:[%s1713] sm:$0xff]
    %v1715 = vld [vmem:[%s1713 + $0x8] sm:$0xff]
    %v1716 = vld [vmem:[%s1713 + $0x10] sm:$0xff]
    %v1717 = vld [vmem:[#allocation2] sm:$0xff]
    %1718 = vmatprep.subr.mxu0 %v421
    %1719 = vmatpush1.msra.mxu0 %v420
    %1720 = vmatprep.subr.mxu0 %v418
    %1721 = vmatpush1.msra.mxu0 %v417
    %1722 = vmatprep.subr.mxu0 %v415
    %1723 = vmatpush1.msra.mxu0 %v414
    %1724 = vmatprep.subr.mxu0 %v412
    %1725 = vmatpush1.msra.mxu0 %v411
    %1726 = vmatprep.subr.mxu0 %v409
    %1727 = vmatpush1.msra.mxu0 %v408
    %1728 = vmatprep.subr.mxu0 %v406
    %1729 = vmatpush1.msra.mxu0 %v405
    %1730 = vmatprep.subr.mxu0 %v403
    %1731 = vmatpush1.msra.mxu0 %v402
    %1732 = vmatprep.subr.mxu0 %v400
    %1733 = vmatpush1.msra.mxu0 %v399
    %1734 = vmatprep.subr.mxu0 %v397
    %1735 = vmatpush1.msra.mxu0 %v396
    %1736 = vmatprep.subr.mxu0 %v394
    %1737 = vmatpush1.msra.mxu0 %v393
    %1738 = vmatprep.subr.mxu0 %v391
    %1739 = vmatpush1.msra.mxu0 %v390
    %1740 = vmatprep.subr.mxu0 %v388
    %1741 = vmatpush1.msra.mxu0 %v387
    %1742 = vmatprep.subr.mxu0 %v385
    %1743 = vmatpush1.msra.mxu0 %v384
    %1744 = vmatprep.subr.mxu0 %v382
    %1745 = vmatpush1.msra.mxu0 %v381
    %1746 = vmatprep.subr.mxu0 %v379
    %1747 = vmatpush1.msra.mxu0 %v378
    %1748 = vmatprep.subr.mxu0 %v376
    %1749 = vmatpush1.msra.mxu0 %v375
    %1750 = vmatprep.subr.mxu0 0.0
    %1751 = vmatpush2.msra.mxu0 0.0
    %1752 = vmatprep.subr.mxu0 0.0
    %1753 = vmatpush2.msra.mxu0 0.0
    %1754 = vmatprep.subr.mxu0 0.0
    %1755 = vmatpush2.msra.mxu0 0.0
    %1756 = vmatprep.subr.mxu0 0.0
    %1757 = vmatpush2.msra.mxu0 0.0
    %1758 = vmatprep.subr.mxu0 0.0
    %1759 = vmatpush2.msra.mxu0 0.0
    %1760 = vmatprep.subr.mxu0 0.0
    %1761 = vmatpush2.msra.mxu0 0.0
    %1762 = vmatprep.subr.mxu0 0.0
    %1763 = vmatpush2.msra.mxu0 0.0
    %1764 = vmatprep.subr.mxu0 0.0
    %1765 = vmatpush2.msra.mxu0 0.0
    %1766 = vmatprep.subr.mxu0 0.0
    %1767 = vmatpush2.msra.mxu0 0.0
    %1768 = vmatprep.subr.mxu0 0.0
    %1769 = vmatpush2.msra.mxu0 0.0
    %1770 = vmatprep.subr.mxu0 0.0
    %1771 = vmatpush2.msra.mxu0 0.0
    %1772 = vmatprep.subr.mxu0 0.0
    %1773 = vmatpush2.msra.mxu0 0.0
    %1774 = vmatprep.subr.mxu0 0.0
    %1775 = vmatpush2.msra.mxu0 0.0
    %1776 = vmatprep.subr.mxu0 0.0
    %1777 = vmatpush2.msra.mxu0 0.0
    %1778 = vmatprep.subr.mxu0 0.0
    %1779 = vmatpush2.msra.mxu0 0.0
    %1780 = vmatprep.subr.mxu0 0.0
    %1781 = vmatpush2.msra.mxu0 0.0
    %1782 = vmatprep.mubr.f32.mxu0 0.0
    %1783 = vmatmul.mubr.f32.gmra.mxu0 %v1717
    %v1784 = vpop.f32.mrf.mxu0
    %v1785 = vadd.f32 %v451, %v1784
    %v1786 = vpop.f32.mrf.mxu0
    %v1787 = vadd.f32 %v455, %v1786
    %1788 = vdwg.mxu0
    %1789 = vmatprep.subr.mxu0 0.0
    %1790 = vmatpush1.msra.mxu0 %v422
    %1791 = vmatprep.subr.mxu0 0.0
    %1792 = vmatpush1.msra.mxu0 %v419
    %1793 = vmatprep.subr.mxu0 0.0
    %1794 = vmatpush1.msra.mxu0 %v416
    %1795 = vmatprep.subr.mxu0 0.0
    %1796 = vmatpush1.msra.mxu0 %v413
    %1797 = vmatprep.subr.mxu0 0.0
    %1798 = vmatpush1.msra.mxu0 %v410
    %1799 = vmatprep.subr.mxu0 0.0
    %1800 = vmatpush1.msra.mxu0 %v407
    %1801 = vmatprep.subr.mxu0 0.0
    %1802 = vmatpush1.msra.mxu0 %v404
    %1803 = vmatprep.subr.mxu0 0.0
    %1804 = vmatpush1.msra.mxu0 %v401
    %1805 = vmatprep.subr.mxu0 0.0
    %1806 = vmatpush1.msra.mxu0 %v398
    %1807 = vmatprep.subr.mxu0 0.0
    %1808 = vmatpush1.msra.mxu0 %v395
    %1809 = vmatprep.subr.mxu0 0.0
    %1810 = vmatpush1.msra.mxu0 %v392
    %1811 = vmatprep.subr.mxu0 0.0
    %1812 = vmatpush1.msra.mxu0 %v389
    %1813 = vmatprep.subr.mxu0 0.0
    %1814 = vmatpush1.msra.mxu0 %v386
    %1815 = vmatprep.subr.mxu0 0.0
    %1816 = vmatpush1.msra.mxu0 %v383
    %1817 = vmatprep.subr.mxu0 0.0
    %1818 = vmatpush1.msra.mxu0 %v380
    %1819 = vmatprep.subr.mxu0 0.0
    %1820 = vmatpush1.msra.mxu0 %v377
    %1821 = vmatprep.subr.mxu0 0.0
    %1822 = vmatpush2.msra.mxu0 0.0
    %1823 = vmatprep.subr.mxu0 0.0
    %1824 = vmatpush2.msra.mxu0 0.0
    %1825 = vmatprep.subr.mxu0 0.0
    %1826 = vmatpush2.msra.mxu0 0.0
    %1827 = vmatprep.subr.mxu0 0.0
    %1828 = vmatpush2.msra.mxu0 0.0
    %1829 = vmatprep.subr.mxu0 0.0
    %1830 = vmatpush2.msra.mxu0 0.0
    %1831 = vmatprep.subr.mxu0 0.0
    %1832 = vmatpush2.msra.mxu0 0.0
    %1833 = vmatprep.subr.mxu0 0.0
    %1834 = vmatpush2.msra.mxu0 0.0
    %1835 = vmatprep.subr.mxu0 0.0
    %1836 = vmatpush2.msra.mxu0 0.0
    %1837 = vmatprep.subr.mxu0 0.0
    %1838 = vmatpush2.msra.mxu0 0.0
    %1839 = vmatprep.subr.mxu0 0.0
    %1840 = vmatpush2.msra.mxu0 0.0
    %1841 = vmatprep.subr.mxu0 0.0
    %1842 = vmatpush2.msra.mxu0 0.0
    %1843 = vmatprep.subr.mxu0 0.0
    %1844 = vmatpush2.msra.mxu0 0.0
    %1845 = vmatprep.subr.mxu0 0.0
    %1846 = vmatpush2.msra.mxu0 0.0
    %1847 = vmatprep.subr.mxu0 0.0
    %1848 = vmatpush2.msra.mxu0 0.0
    %1849 = vmatprep.subr.mxu0 0.0
    %1850 = vmatpush2.msra.mxu0 0.0
    %1851 = vmatprep.subr.mxu0 0.0
    %1852 = vmatpush2.msra.mxu0 0.0
    %1853 = vmatprep.mubr.f32.mxu0 0.0
    %1854 = vmatmul.mubr.f32.gmra.mxu0 %v1717
    %v1855 = vpop.f32.mrf.mxu0
    %v1856 = vadd.f32 %v459, %v1855
    %v1857 = vpop.f32.mrf.mxu0
    %1858 = vdwg.mxu0
    %v1859 = vadd.f32 %v1714, %v1785
    %v1860 = vxor.u32 %v1859, 2147483648
    %v1861 = vmul.f32 %v1860, 1.442695
    %v1862 = vpow.pop %v1861
    %v1863 = vadd.f32 %v1862, 1.0
    %v1864 = vrcp.pop %v1863
    %v1865 = vmul.f32 1.0, %v1864
    %v1866 = vadd.f32 %v1715, %v1787
    %v1867 = vxor.u32 %v1866, 2147483648
    %v1868 = vmul.f32 %v1867, 1.442695
    %v1869 = vpow.pop %v1868
    %v1870 = vadd.f32 %v1869, 1.0
    %v1871 = vrcp.pop %v1870
    %v1872 = vmul.f32 1.0, %v1871
    %v1873 = vmul.f32 %v1865, %v1856
    %v1874 = vadd.f32 %v1716, %v1873
    %v1875 = vtanh.pop %v1874
    %v1876 = vsub.f32 1.0, %v1872
    %v1877 = vmul.f32 %v1876, %v1875
    %v1878 = vmul.f32 %v1872, %v1717
    %v1879 = vadd.f32 %v1877, %v1878
    %1880 = vst [vmem:[#allocation2] sm:$0xff] %v1879
    %1881 = vmatprep.subr.mxu0 0.0
    %1882 = vmatpush1.msra.mxu0 %v439
    %1883 = vmatprep.subr.mxu0 0.0
    %1884 = vmatpush1.msra.mxu0 %v438
    %1885 = vmatprep.subr.mxu0 0.0
    %1886 = vmatpush1.msra.mxu0 %v437
    %1887 = vmatprep.subr.mxu0 0.0
    %1888 = vmatpush1.msra.mxu0 %v436
    %1889 = vmatprep.subr.mxu0 0.0
    %1890 = vmatpush1.msra.mxu0 %v435
    %1891 = vmatprep.subr.mxu0 0.0
    %1892 = vmatpush1.msra.mxu0 %v434
    %1893 = vmatprep.subr.mxu0 0.0
    %1894 = vmatpush1.msra.mxu0 %v433
    %1895 = vmatprep.subr.mxu0 0.0
    %1896 = vmatpush1.msra.mxu0 %v432
    %1897 = vmatprep.subr.mxu0 0.0
    %1898 = vmatpush1.msra.mxu0 %v431
    %1899 = vmatprep.subr.mxu0 0.0
    %1900 = vmatpush1.msra.mxu0 %v430
    %1901 = vmatprep.subr.mxu0 0.0
    %1902 = vmatpush1.msra.mxu0 %v429
    %1903 = vmatprep.subr.mxu0 0.0
    %1904 = vmatpush1.msra.mxu0 %v428
    %1905 = vmatprep.subr.mxu0 0.0
    %1906 = vmatpush1.msra.mxu0 %v427
    %1907 = vmatprep.subr.mxu0 0.0
    %1908 = vmatpush1.msra.mxu0 %v426
    %1909 = vmatprep.subr.mxu0 0.0
    %1910 = vmatpush1.msra.mxu0 %v425
    %1911 = vmatprep.subr.mxu0 0.0
    %1912 = vmatpush1.msra.mxu0 %v424
    %1913 = vmatprep.subr.mxu0 0.0
    %1914 = vmatpush2.msra.mxu0 0.0
    %1915 = vmatprep.subr.mxu0 0.0
    %1916 = vmatpush2.msra.mxu0 0.0
    %1917 = vmatprep.subr.mxu0 0.0
    %1918 = vmatpush2.msra.mxu0 0.0
    %1919 = vmatprep.subr.mxu0 0.0
    %1920 = vmatpush2.msra.mxu0 0.0
    %1921 = vmatprep.subr.mxu0 0.0
    %1922 = vmatpush2.msra.mxu0 0.0
    %1923 = vmatprep.subr.mxu0 0.0
    %1924 = vmatpush2.msra.mxu0 0.0
    %1925 = vmatprep.subr.mxu0 0.0
    %1926 = vmatpush2.msra.mxu0 0.0
    %1927 = vmatprep.subr.mxu0 0.0
    %1928 = vmatpush2.msra.mxu0 0.0
    %1929 = vmatprep.subr.mxu0 0.0
    %1930 = vmatpush2.msra.mxu0 0.0
    %1931 = vmatprep.subr.mxu0 0.0
    %1932 = vmatpush2.msra.mxu0 0.0
    %1933 = vmatprep.subr.mxu0 0.0
    %1934 = vmatpush2.msra.mxu0 0.0
    %1935 = vmatprep.subr.mxu0 0.0
    %1936 = vmatpush2.msra.mxu0 0.0
    %1937 = vmatprep.subr.mxu0 0.0
    %1938 = vmatpush2.msra.mxu0 0.0
    %1939 = vmatprep.subr.mxu0 0.0
    %1940 = vmatpush2.msra.mxu0 0.0
    %1941 = vmatprep.subr.mxu0 0.0
    %1942 = vmatpush2.msra.mxu0 0.0
    %1943 = vmatprep.subr.mxu0 0.0
    %1944 = vmatpush2.msra.mxu0 0.0
    %1945 = vmatprep.mubr.f32.mxu0 0.0
    %1946 = vmatmul.mubr.f32.gmra.mxu0 %v1879
    %v1947 = vpop.f32.mrf.mxu0
    %v1948 = vadd.f32 %v630, %v1947
    %v1949 = vpop.f32.mrf.mxu0
    %1950 = vdwg.mxu0
    %1951 = vmax.xlane.f32.xlu0 %v1948
    %v1952 = vpop.xlane.xlu0 %1951
    %v1953 = vsub.f32 %v1948, %v1952
    %v1954 = vmul.f32 %v1953, 1.442695
    %v1955 = vpow.pop %v1954
    %1956 = vadd.xlane.f32.xlu0 %v1955
    %v1957 = vpop.xlane.xlu0 %1956
    %v1958 = vlog2.pop %v1957
    %v1959 = vmul.f32 %v1958, 0.6931472
    %v1960 = vsub.f32 %v1953, %v1959
    %s1961 = scalar_lea.vmem [#allocation9], 40
    %1962 = vst [vmem:[%s1961] sm:$0xff] %v1960
    %s1963 = scalar_lea.vmem [#allocation3], 144
    %v1964 = vld [vmem:[%s1963] sm:$0xff]
    %v1965 = vld [vmem:[%s1963 + $0x8] sm:$0xff]
    %v1966 = vld [vmem:[%s1963 + $0x10] sm:$0xff]
    %v1967 = vld [vmem:[#allocation2] sm:$0xff]
    %1968 = vmatprep.subr.mxu0 %v421
    %1969 = vmatpush1.msra.mxu0 %v420
    %1970 = vmatprep.subr.mxu0 %v418
    %1971 = vmatpush1.msra.mxu0 %v417
    %1972 = vmatprep.subr.mxu0 %v415
    %1973 = vmatpush1.msra.mxu0 %v414
    %1974 = vmatprep.subr.mxu0 %v412
    %1975 = vmatpush1.msra.mxu0 %v411
    %1976 = vmatprep.subr.mxu0 %v409
    %1977 = vmatpush1.msra.mxu0 %v408
    %1978 = vmatprep.subr.mxu0 %v406
    %1979 = vmatpush1.msra.mxu0 %v405
    %1980 = vmatprep.subr.mxu0 %v403
    %1981 = vmatpush1.msra.mxu0 %v402
    %1982 = vmatprep.subr.mxu0 %v400
    %1983 = vmatpush1.msra.mxu0 %v399
    %1984 = vmatprep.subr.mxu0 %v397
    %1985 = vmatpush1.msra.mxu0 %v396
    %1986 = vmatprep.subr.mxu0 %v394
    %1987 = vmatpush1.msra.mxu0 %v393
    %1988 = vmatprep.subr.mxu0 %v391
    %1989 = vmatpush1.msra.mxu0 %v390
    %1990 = vmatprep.subr.mxu0 %v388
    %1991 = vmatpush1.msra.mxu0 %v387
    %1992 = vmatprep.subr.mxu0 %v385
    %1993 = vmatpush1.msra.mxu0 %v384
    %1994 = vmatprep.subr.mxu0 %v382
    %1995 = vmatpush1.msra.mxu0 %v381
    %1996 = vmatprep.subr.mxu0 %v379
    %1997 = vmatpush1.msra.mxu0 %v378
    %1998 = vmatprep.subr.mxu0 %v376
    %1999 = vmatpush1.msra.mxu0 %v375
    %2000 = vmatprep.subr.mxu0 0.0
    %2001 = vmatpush2.msra.mxu0 0.0
    %2002 = vmatprep.subr.mxu0 0.0
    %2003 = vmatpush2.msra.mxu0 0.0
    %2004 = vmatprep.subr.mxu0 0.0
    %2005 = vmatpush2.msra.mxu0 0.0
    %2006 = vmatprep.subr.mxu0 0.0
    %2007 = vmatpush2.msra.mxu0 0.0
    %2008 = vmatprep.subr.mxu0 0.0
    %2009 = vmatpush2.msra.mxu0 0.0
    %2010 = vmatprep.subr.mxu0 0.0
    %2011 = vmatpush2.msra.mxu0 0.0
    %2012 = vmatprep.subr.mxu0 0.0
    %2013 = vmatpush2.msra.mxu0 0.0
    %2014 = vmatprep.subr.mxu0 0.0
    %2015 = vmatpush2.msra.mxu0 0.0
    %2016 = vmatprep.subr.mxu0 0.0
    %2017 = vmatpush2.msra.mxu0 0.0
    %2018 = vmatprep.subr.mxu0 0.0
    %2019 = vmatpush2.msra.mxu0 0.0
    %2020 = vmatprep.subr.mxu0 0.0
    %2021 = vmatpush2.msra.mxu0 0.0
    %2022 = vmatprep.subr.mxu0 0.0
    %2023 = vmatpush2.msra.mxu0 0.0
    %2024 = vmatprep.subr.mxu0 0.0
    %2025 = vmatpush2.msra.mxu0 0.0
    %2026 = vmatprep.subr.mxu0 0.0
    %2027 = vmatpush2.msra.mxu0 0.0
    %2028 = vmatprep.subr.mxu0 0.0
    %2029 = vmatpush2.msra.mxu0 0.0
    %2030 = vmatprep.subr.mxu0 0.0
    %2031 = vmatpush2.msra.mxu0 0.0
    %2032 = vmatprep.mubr.f32.mxu0 0.0
    %2033 = vmatmul.mubr.f32.gmra.mxu0 %v1967
    %v2034 = vpop.f32.mrf.mxu0
    %v2035 = vadd.f32 %v451, %v2034
    %v2036 = vpop.f32.mrf.mxu0
    %v2037 = vadd.f32 %v455, %v2036
    %2038 = vdwg.mxu0
    %2039 = vmatprep.subr.mxu0 0.0
    %2040 = vmatpush1.msra.mxu0 %v422
    %2041 = vmatprep.subr.mxu0 0.0
    %2042 = vmatpush1.msra.mxu0 %v419
    %2043 = vmatprep.subr.mxu0 0.0
    %2044 = vmatpush1.msra.mxu0 %v416
    %2045 = vmatprep.subr.mxu0 0.0
    %2046 = vmatpush1.msra.mxu0 %v413
    %2047 = vmatprep.subr.mxu0 0.0
    %2048 = vmatpush1.msra.mxu0 %v410
    %2049 = vmatprep.subr.mxu0 0.0
    %2050 = vmatpush1.msra.mxu0 %v407
    %2051 = vmatprep.subr.mxu0 0.0
    %2052 = vmatpush1.msra.mxu0 %v404
    %2053 = vmatprep.subr.mxu0 0.0
    %2054 = vmatpush1.msra.mxu0 %v401
    %2055 = vmatprep.subr.mxu0 0.0
    %2056 = vmatpush1.msra.mxu0 %v398
    %2057 = vmatprep.subr.mxu0 0.0
    %2058 = vmatpush1.msra.mxu0 %v395
    %2059 = vmatprep.subr.mxu0 0.0
    %2060 = vmatpush1.msra.mxu0 %v392
    %2061 = vmatprep.subr.mxu0 0.0
    %2062 = vmatpush1.msra.mxu0 %v389
    %2063 = vmatprep.subr.mxu0 0.0
    %2064 = vmatpush1.msra.mxu0 %v386
    %2065 = vmatprep.subr.mxu0 0.0
    %2066 = vmatpush1.msra.mxu0 %v383
    %2067 = vmatprep.subr.mxu0 0.0
    %2068 = vmatpush1.msra.mxu0 %v380
    %2069 = vmatprep.subr.mxu0 0.0
    %2070 = vmatpush1.msra.mxu0 %v377
    %2071 = vmatprep.subr.mxu0 0.0
    %2072 = vmatpush2.msra.mxu0 0.0
    %2073 = vmatprep.subr.mxu0 0.0
    %2074 = vmatpush2.msra.mxu0 0.0
    %2075 = vmatprep.subr.mxu0 0.0
    %2076 = vmatpush2.msra.mxu0 0.0
    %2077 = vmatprep.subr.mxu0 0.0
    %2078 = vmatpush2.msra.mxu0 0.0
    %2079 = vmatprep.subr.mxu0 0.0
    %2080 = vmatpush2.msra.mxu0 0.0
    %2081 = vmatprep.subr.mxu0 0.0
    %2082 = vmatpush2.msra.mxu0 0.0
    %2083 = vmatprep.subr.mxu0 0.0
    %2084 = vmatpush2.msra.mxu0 0.0
    %2085 = vmatprep.subr.mxu0 0.0
    %2086 = vmatpush2.msra.mxu0 0.0
    %2087 = vmatprep.subr.mxu0 0.0
    %2088 = vmatpush2.msra.mxu0 0.0
    %2089 = vmatprep.subr.mxu0 0.0
    %2090 = vmatpush2.msra.mxu0 0.0
    %2091 = vmatprep.subr.mxu0 0.0
    %2092 = vmatpush2.msra.mxu0 0.0
    %2093 = vmatprep.subr.mxu0 0.0
    %2094 = vmatpush2.msra.mxu0 0.0
    %2095 = vmatprep.subr.mxu0 0.0
    %2096 = vmatpush2.msra.mxu0 0.0
    %2097 = vmatprep.subr.mxu0 0.0
    %2098 = vmatpush2.msra.mxu0 0.0
    %2099 = vmatprep.subr.mxu0 0.0
    %2100 = vmatpush2.msra.mxu0 0.0
    %2101 = vmatprep.subr.mxu0 0.0
    %2102 = vmatpush2.msra.mxu0 0.0
    %2103 = vmatprep.mubr.f32.mxu0 0.0
    %2104 = vmatmul.mubr.f32.gmra.mxu0 %v1967
    %v2105 = vpop.f32.mrf.mxu0
    %v2106 = vadd.f32 %v459, %v2105
    %v2107 = vpop.f32.mrf.mxu0
    %2108 = vdwg.mxu0
    %v2109 = vadd.f32 %v1964, %v2035
    %v2110 = vxor.u32 %v2109, 2147483648
    %v2111 = vmul.f32 %v2110, 1.442695
    %v2112 = vpow.pop %v2111
    %v2113 = vadd.f32 %v2112, 1.0
    %v2114 = vrcp.pop %v2113
    %v2115 = vmul.f32 1.0, %v2114
    %v2116 = vadd.f32 %v1965, %v2037
    %v2117 = vxor.u32 %v2116, 2147483648
    %v2118 = vmul.f32 %v2117, 1.442695
    %v2119 = vpow.pop %v2118
    %v2120 = vadd.f32 %v2119, 1.0
    %v2121 = vrcp.pop %v2120
    %v2122 = vmul.f32 1.0, %v2121
    %v2123 = vmul.f32 %v2115, %v2106
    %v2124 = vadd.f32 %v1966, %v2123
    %v2125 = vtanh.pop %v2124
    %v2126 = vsub.f32 1.0, %v2122
    %v2127 = vmul.f32 %v2126, %v2125
    %v2128 = vmul.f32 %v2122, %v1967
    %v2129 = vadd.f32 %v2127, %v2128
    %2130 = vst [vmem:[#allocation2] sm:$0xff] %v2129
    %2131 = vmatprep.subr.mxu0 0.0
    %2132 = vmatpush1.msra.mxu0 %v439
    %2133 = vmatprep.subr.mxu0 0.0
    %2134 = vmatpush1.msra.mxu0 %v438
    %2135 = vmatprep.subr.mxu0 0.0
    %2136 = vmatpush1.msra.mxu0 %v437
    %2137 = vmatprep.subr.mxu0 0.0
    %2138 = vmatpush1.msra.mxu0 %v436
    %2139 = vmatprep.subr.mxu0 0.0
    %2140 = vmatpush1.msra.mxu0 %v435
    %2141 = vmatprep.subr.mxu0 0.0
    %2142 = vmatpush1.msra.mxu0 %v434
    %2143 = vmatprep.subr.mxu0 0.0
    %2144 = vmatpush1.msra.mxu0 %v433
    %2145 = vmatprep.subr.mxu0 0.0
    %2146 = vmatpush1.msra.mxu0 %v432
    %2147 = vmatprep.subr.mxu0 0.0
    %2148 = vmatpush1.msra.mxu0 %v431
    %2149 = vmatprep.subr.mxu0 0.0
    %2150 = vmatpush1.msra.mxu0 %v430
    %2151 = vmatprep.subr.mxu0 0.0
    %2152 = vmatpush1.msra.mxu0 %v429
    %2153 = vmatprep.subr.mxu0 0.0
    %2154 = vmatpush1.msra.mxu0 %v428
    %2155 = vmatprep.subr.mxu0 0.0
    %2156 = vmatpush1.msra.mxu0 %v427
    %2157 = vmatprep.subr.mxu0 0.0
    %2158 = vmatpush1.msra.mxu0 %v426
    %2159 = vmatprep.subr.mxu0 0.0
    %2160 = vmatpush1.msra.mxu0 %v425
    %2161 = vmatprep.subr.mxu0 0.0
    %2162 = vmatpush1.msra.mxu0 %v424
    %2163 = vmatprep.subr.mxu0 0.0
    %2164 = vmatpush2.msra.mxu0 0.0
    %2165 = vmatprep.subr.mxu0 0.0
    %2166 = vmatpush2.msra.mxu0 0.0
    %2167 = vmatprep.subr.mxu0 0.0
    %2168 = vmatpush2.msra.mxu0 0.0
    %2169 = vmatprep.subr.mxu0 0.0
    %2170 = vmatpush2.msra.mxu0 0.0
    %2171 = vmatprep.subr.mxu0 0.0
    %2172 = vmatpush2.msra.mxu0 0.0
    %2173 = vmatprep.subr.mxu0 0.0
    %2174 = vmatpush2.msra.mxu0 0.0
    %2175 = vmatprep.subr.mxu0 0.0
    %2176 = vmatpush2.msra.mxu0 0.0
    %2177 = vmatprep.subr.mxu0 0.0
    %2178 = vmatpush2.msra.mxu0 0.0
    %2179 = vmatprep.subr.mxu0 0.0
    %2180 = vmatpush2.msra.mxu0 0.0
    %2181 = vmatprep.subr.mxu0 0.0
    %2182 = vmatpush2.msra.mxu0 0.0
    %2183 = vmatprep.subr.mxu0 0.0
    %2184 = vmatpush2.msra.mxu0 0.0
    %2185 = vmatprep.subr.mxu0 0.0
    %2186 = vmatpush2.msra.mxu0 0.0
    %2187 = vmatprep.subr.mxu0 0.0
    %2188 = vmatpush2.msra.mxu0 0.0
    %2189 = vmatprep.subr.mxu0 0.0
    %2190 = vmatpush2.msra.mxu0 0.0
    %2191 = vmatprep.subr.mxu0 0.0
    %2192 = vmatpush2.msra.mxu0 0.0
    %2193 = vmatprep.subr.mxu0 0.0
    %2194 = vmatpush2.msra.mxu0 0.0
    %2195 = vmatprep.mubr.f32.mxu0 0.0
    %2196 = vmatmul.mubr.f32.gmra.mxu0 %v2129
    %v2197 = vpop.f32.mrf.mxu0
    %v2198 = vadd.f32 %v630, %v2197
    %v2199 = vpop.f32.mrf.mxu0
    %2200 = vdwg.mxu0
    %2201 = vmax.xlane.f32.xlu0 %v2198
    %v2202 = vpop.xlane.xlu0 %2201
    %v2203 = vsub.f32 %v2198, %v2202
    %v2204 = vmul.f32 %v2203, 1.442695
    %v2205 = vpow.pop %v2204
    %2206 = vadd.xlane.f32.xlu0 %v2205
    %v2207 = vpop.xlane.xlu0 %2206
    %v2208 = vlog2.pop %v2207
    %v2209 = vmul.f32 %v2208, 0.6931472
    %v2210 = vsub.f32 %v2203, %v2209
    %s2211 = scalar_lea.vmem [#allocation9], 48
    %2212 = vst [vmem:[%s2211] sm:$0xff] %v2210
    %s2213 = scalar_lea.vmem [#allocation3], 168
    %v2214 = vld [vmem:[%s2213] sm:$0xff]
    %v2215 = vld [vmem:[%s2213 + $0x8] sm:$0xff]
    %v2216 = vld [vmem:[%s2213 + $0x10] sm:$0xff]
    %v2217 = vld [vmem:[#allocation2] sm:$0xff]
    %2218 = vmatprep.subr.mxu0 %v421
    %2219 = vmatpush1.msra.mxu0 %v420
    %2220 = vmatprep.subr.mxu0 %v418
    %2221 = vmatpush1.msra.mxu0 %v417
    %2222 = vmatprep.subr.mxu0 %v415
    %2223 = vmatpush1.msra.mxu0 %v414
    %2224 = vmatprep.subr.mxu0 %v412
    %2225 = vmatpush1.msra.mxu0 %v411
    %2226 = vmatprep.subr.mxu0 %v409
    %2227 = vmatpush1.msra.mxu0 %v408
    %2228 = vmatprep.subr.mxu0 %v406
    %2229 = vmatpush1.msra.mxu0 %v405
    %2230 = vmatprep.subr.mxu0 %v403
    %2231 = vmatpush1.msra.mxu0 %v402
    %2232 = vmatprep.subr.mxu0 %v400
    %2233 = vmatpush1.msra.mxu0 %v399
    %2234 = vmatprep.subr.mxu0 %v397
    %2235 = vmatpush1.msra.mxu0 %v396
    %2236 = vmatprep.subr.mxu0 %v394
    %2237 = vmatpush1.msra.mxu0 %v393
    %2238 = vmatprep.subr.mxu0 %v391
    %2239 = vmatpush1.msra.mxu0 %v390
    %2240 = vmatprep.subr.mxu0 %v388
    %2241 = vmatpush1.msra.mxu0 %v387
    %2242 = vmatprep.subr.mxu0 %v385
    %2243 = vmatpush1.msra.mxu0 %v384
    %2244 = vmatprep.subr.mxu0 %v382
    %2245 = vmatpush1.msra.mxu0 %v381
    %2246 = vmatprep.subr.mxu0 %v379
    %2247 = vmatpush1.msra.mxu0 %v378
    %2248 = vmatprep.subr.mxu0 %v376
    %2249 = vmatpush1.msra.mxu0 %v375
    %2250 = vmatprep.subr.mxu0 0.0
    %2251 = vmatpush2.msra.mxu0 0.0
    %2252 = vmatprep.subr.mxu0 0.0
    %2253 = vmatpush2.msra.mxu0 0.0
    %2254 = vmatprep.subr.mxu0 0.0
    %2255 = vmatpush2.msra.mxu0 0.0
    %2256 = vmatprep.subr.mxu0 0.0
    %2257 = vmatpush2.msra.mxu0 0.0
    %2258 = vmatprep.subr.mxu0 0.0
    %2259 = vmatpush2.msra.mxu0 0.0
    %2260 = vmatprep.subr.mxu0 0.0
    %2261 = vmatpush2.msra.mxu0 0.0
    %2262 = vmatprep.subr.mxu0 0.0
    %2263 = vmatpush2.msra.mxu0 0.0
    %2264 = vmatprep.subr.mxu0 0.0
    %2265 = vmatpush2.msra.mxu0 0.0
    %2266 = vmatprep.subr.mxu0 0.0
    %2267 = vmatpush2.msra.mxu0 0.0
    %2268 = vmatprep.subr.mxu0 0.0
    %2269 = vmatpush2.msra.mxu0 0.0
    %2270 = vmatprep.subr.mxu0 0.0
    %2271 = vmatpush2.msra.mxu0 0.0
    %2272 = vmatprep.subr.mxu0 0.0
    %2273 = vmatpush2.msra.mxu0 0.0
    %2274 = vmatprep.subr.mxu0 0.0
    %2275 = vmatpush2.msra.mxu0 0.0
    %2276 = vmatprep.subr.mxu0 0.0
    %2277 = vmatpush2.msra.mxu0 0.0
    %2278 = vmatprep.subr.mxu0 0.0
    %2279 = vmatpush2.msra.mxu0 0.0
    %2280 = vmatprep.subr.mxu0 0.0
    %2281 = vmatpush2.msra.mxu0 0.0
    %2282 = vmatprep.mubr.f32.mxu0 0.0
    %2283 = vmatmul.mubr.f32.gmra.mxu0 %v2217
    %v2284 = vpop.f32.mrf.mxu0
    %v2285 = vadd.f32 %v451, %v2284
    %v2286 = vpop.f32.mrf.mxu0
    %v2287 = vadd.f32 %v455, %v2286
    %2288 = vdwg.mxu0
    %2289 = vmatprep.subr.mxu0 0.0
    %2290 = vmatpush1.msra.mxu0 %v422
    %2291 = vmatprep.subr.mxu0 0.0
    %2292 = vmatpush1.msra.mxu0 %v419
    %2293 = vmatprep.subr.mxu0 0.0
    %2294 = vmatpush1.msra.mxu0 %v416
    %2295 = vmatprep.subr.mxu0 0.0
    %2296 = vmatpush1.msra.mxu0 %v413
    %2297 = vmatprep.subr.mxu0 0.0
    %2298 = vmatpush1.msra.mxu0 %v410
    %2299 = vmatprep.subr.mxu0 0.0
    %2300 = vmatpush1.msra.mxu0 %v407
    %2301 = vmatprep.subr.mxu0 0.0
    %2302 = vmatpush1.msra.mxu0 %v404
    %2303 = vmatprep.subr.mxu0 0.0
    %2304 = vmatpush1.msra.mxu0 %v401
    %2305 = vmatprep.subr.mxu0 0.0
    %2306 = vmatpush1.msra.mxu0 %v398
    %2307 = vmatprep.subr.mxu0 0.0
    %2308 = vmatpush1.msra.mxu0 %v395
    %2309 = vmatprep.subr.mxu0 0.0
    %2310 = vmatpush1.msra.mxu0 %v392
    %2311 = vmatprep.subr.mxu0 0.0
    %2312 = vmatpush1.msra.mxu0 %v389
    %2313 = vmatprep.subr.mxu0 0.0
    %2314 = vmatpush1.msra.mxu0 %v386
    %2315 = vmatprep.subr.mxu0 0.0
    %2316 = vmatpush1.msra.mxu0 %v383
    %2317 = vmatprep.subr.mxu0 0.0
    %2318 = vmatpush1.msra.mxu0 %v380
    %2319 = vmatprep.subr.mxu0 0.0
    %2320 = vmatpush1.msra.mxu0 %v377
    %2321 = vmatprep.subr.mxu0 0.0
    %2322 = vmatpush2.msra.mxu0 0.0
    %2323 = vmatprep.subr.mxu0 0.0
    %2324 = vmatpush2.msra.mxu0 0.0
    %2325 = vmatprep.subr.mxu0 0.0
    %2326 = vmatpush2.msra.mxu0 0.0
    %2327 = vmatprep.subr.mxu0 0.0
    %2328 = vmatpush2.msra.mxu0 0.0
    %2329 = vmatprep.subr.mxu0 0.0
    %2330 = vmatpush2.msra.mxu0 0.0
    %2331 = vmatprep.subr.mxu0 0.0
    %2332 = vmatpush2.msra.mxu0 0.0
    %2333 = vmatprep.subr.mxu0 0.0
    %2334 = vmatpush2.msra.mxu0 0.0
    %2335 = vmatprep.subr.mxu0 0.0
    %2336 = vmatpush2.msra.mxu0 0.0
    %2337 = vmatprep.subr.mxu0 0.0
    %2338 = vmatpush2.msra.mxu0 0.0
    %2339 = vmatprep.subr.mxu0 0.0
    %2340 = vmatpush2.msra.mxu0 0.0
    %2341 = vmatprep.subr.mxu0 0.0
    %2342 = vmatpush2.msra.mxu0 0.0
    %2343 = vmatprep.subr.mxu0 0.0
    %2344 = vmatpush2.msra.mxu0 0.0
    %2345 = vmatprep.subr.mxu0 0.0
    %2346 = vmatpush2.msra.mxu0 0.0
    %2347 = vmatprep.subr.mxu0 0.0
    %2348 = vmatpush2.msra.mxu0 0.0
    %2349 = vmatprep.subr.mxu0 0.0
    %2350 = vmatpush2.msra.mxu0 0.0
    %2351 = vmatprep.subr.mxu0 0.0
    %2352 = vmatpush2.msra.mxu0 0.0
    %2353 = vmatprep.mubr.f32.mxu0 0.0
    %2354 = vmatmul.mubr.f32.gmra.mxu0 %v2217
    %v2355 = vpop.f32.mrf.mxu0
    %v2356 = vadd.f32 %v459, %v2355
    %v2357 = vpop.f32.mrf.mxu0
    %2358 = vdwg.mxu0
    %v2359 = vadd.f32 %v2214, %v2285
    %v2360 = vxor.u32 %v2359, 2147483648
    %v2361 = vmul.f32 %v2360, 1.442695
    %v2362 = vpow.pop %v2361
    %v2363 = vadd.f32 %v2362, 1.0
    %v2364 = vrcp.pop %v2363
    %v2365 = vmul.f32 1.0, %v2364
    %v2366 = vadd.f32 %v2215, %v2287
    %v2367 = vxor.u32 %v2366, 2147483648
    %v2368 = vmul.f32 %v2367, 1.442695
    %v2369 = vpow.pop %v2368
    %v2370 = vadd.f32 %v2369, 1.0
    %v2371 = vrcp.pop %v2370
    %v2372 = vmul.f32 1.0, %v2371
    %v2373 = vmul.f32 %v2365, %v2356
    %v2374 = vadd.f32 %v2216, %v2373
    %v2375 = vtanh.pop %v2374
    %v2376 = vsub.f32 1.0, %v2372
    %v2377 = vmul.f32 %v2376, %v2375
    %v2378 = vmul.f32 %v2372, %v2217
    %v2379 = vadd.f32 %v2377, %v2378
    %2380 = vst [vmem:[#allocation2] sm:$0xff] %v2379
    %2381 = vmatprep.subr.mxu0 0.0
    %2382 = vmatpush1.msra.mxu0 %v439
    %2383 = vmatprep.subr.mxu0 0.0
    %2384 = vmatpush1.msra.mxu0 %v438
    %2385 = vmatprep.subr.mxu0 0.0
    %2386 = vmatpush1.msra.mxu0 %v437
    %2387 = vmatprep.subr.mxu0 0.0
    %2388 = vmatpush1.msra.mxu0 %v436
    %2389 = vmatprep.subr.mxu0 0.0
    %2390 = vmatpush1.msra.mxu0 %v435
    %2391 = vmatprep.subr.mxu0 0.0
    %2392 = vmatpush1.msra.mxu0 %v434
    %2393 = vmatprep.subr.mxu0 0.0
    %2394 = vmatpush1.msra.mxu0 %v433
    %2395 = vmatprep.subr.mxu0 0.0
    %2396 = vmatpush1.msra.mxu0 %v432
    %2397 = vmatprep.subr.mxu0 0.0
    %2398 = vmatpush1.msra.mxu0 %v431
    %2399 = vmatprep.subr.mxu0 0.0
    %2400 = vmatpush1.msra.mxu0 %v430
    %2401 = vmatprep.subr.mxu0 0.0
    %2402 = vmatpush1.msra.mxu0 %v429
    %2403 = vmatprep.subr.mxu0 0.0
    %2404 = vmatpush1.msra.mxu0 %v428
    %2405 = vmatprep.subr.mxu0 0.0
    %2406 = vmatpush1.msra.mxu0 %v427
    %2407 = vmatprep.subr.mxu0 0.0
    %2408 = vmatpush1.msra.mxu0 %v426
    %2409 = vmatprep.subr.mxu0 0.0
    %2410 = vmatpush1.msra.mxu0 %v425
    %2411 = vmatprep.subr.mxu0 0.0
    %2412 = vmatpush1.msra.mxu0 %v424
    %2413 = vmatprep.subr.mxu0 0.0
    %2414 = vmatpush2.msra.mxu0 0.0
    %2415 = vmatprep.subr.mxu0 0.0
    %2416 = vmatpush2.msra.mxu0 0.0
    %2417 = vmatprep.subr.mxu0 0.0
    %2418 = vmatpush2.msra.mxu0 0.0
    %2419 = vmatprep.subr.mxu0 0.0
    %2420 = vmatpush2.msra.mxu0 0.0
    %2421 = vmatprep.subr.mxu0 0.0
    %2422 = vmatpush2.msra.mxu0 0.0
    %2423 = vmatprep.subr.mxu0 0.0
    %2424 = vmatpush2.msra.mxu0 0.0
    %2425 = vmatprep.subr.mxu0 0.0
    %2426 = vmatpush2.msra.mxu0 0.0
    %2427 = vmatprep.subr.mxu0 0.0
    %2428 = vmatpush2.msra.mxu0 0.0
    %2429 = vmatprep.subr.mxu0 0.0
    %2430 = vmatpush2.msra.mxu0 0.0
    %2431 = vmatprep.subr.mxu0 0.0
    %2432 = vmatpush2.msra.mxu0 0.0
    %2433 = vmatprep.subr.mxu0 0.0
    %2434 = vmatpush2.msra.mxu0 0.0
    %2435 = vmatprep.subr.mxu0 0.0
    %2436 = vmatpush2.msra.mxu0 0.0
    %2437 = vmatprep.subr.mxu0 0.0
    %2438 = vmatpush2.msra.mxu0 0.0
    %2439 = vmatprep.subr.mxu0 0.0
    %2440 = vmatpush2.msra.mxu0 0.0
    %2441 = vmatprep.subr.mxu0 0.0
    %2442 = vmatpush2.msra.mxu0 0.0
    %2443 = vmatprep.subr.mxu0 0.0
    %2444 = vmatpush2.msra.mxu0 0.0
    %2445 = vmatprep.mubr.f32.mxu0 0.0
    %2446 = vmatmul.mubr.f32.gmra.mxu0 %v2379
    %v2447 = vpop.f32.mrf.mxu0
    %v2448 = vadd.f32 %v630, %v2447
    %v2449 = vpop.f32.mrf.mxu0
    %2450 = vdwg.mxu0
    %2451 = vmax.xlane.f32.xlu0 %v2448
    %v2452 = vpop.xlane.xlu0 %2451
    %v2453 = vsub.f32 %v2448, %v2452
    %v2454 = vmul.f32 %v2453, 1.442695
    %v2455 = vpow.pop %v2454
    %2456 = vadd.xlane.f32.xlu0 %v2455
    %v2457 = vpop.xlane.xlu0 %2456
    %v2458 = vlog2.pop %v2457
    %v2459 = vmul.f32 %v2458, 0.6931472
    %v2460 = vsub.f32 %v2453, %v2459
    %s2461 = scalar_lea.vmem [#allocation9], 56
    %2462 = vst [vmem:[%s2461] sm:$0xff] %v2460
    %v2463 = vld [vmem:[#allocation2] sm:$0xff]
    %2464 = vst [vmem:[%s9] sm:$0xff] %v2463
    // Predicated region
    $region42: #{gru_forward.1} parent=1 // pred_check
      _
    $region43: #{gru_forward.1} parent=1 // pred_check_branch
      %2466 = sbr.rel (0) target = $region45
    $region44: #{gru_forward.1} parent=1 // pred_region
      %s2468 = ssub.s32 1024, 1024
      %2469 = vsyncadd [#allocation6], %s2468
      %s2470 = sshll.u32 [#allocation9], 4
      %s2471 = int_to_ptr.vmem [resolvable:$true] %s2470
      %2476 = dma.vmem_to_hbm [thread:$0]  %s2471, 1024, %s8, [#allocation6], 128, 128, 8
    $region45: #{gru_forward.1} parent=1 // pred_fallthru
      _
    // Predicated region
    $region46: #{gru_forward.1} parent=1 // pred_check
      _
    $region47: #{gru_forward.1} parent=1 // pred_check_branch
      %2478 = sbr.rel (0) target = $region49
    $region48: #{gru_forward.1} parent=1 // pred_region
      _
    $region49: #{gru_forward.1} parent=1 // pred_fallthru
      _
    // Predicated region
    $region50: #{gru_forward.1} parent=1 // pred_check
      _
    $region51: #{gru_forward.1} parent=1 // pred_check_branch
      %2480 = sbr.rel (0) target = $region53
    $region52: #{gru_forward.1} parent=1 // pred_region
      %2481 = dma.done [#allocation6], 1024
    $region53: #{gru_forward.1} parent=1 // pred_fallthru
      _
    // Predicated region
    $region54: #{gru_forward.1} parent=1 // pred_check
      _
    $region55: #{gru_forward.1} parent=1 // pred_check_branch
      %2483 = sbr.rel (0) target = $region57
    $region56: #{gru_forward.1} parent=1 // pred_region
      _
    $region57: #{gru_forward.1} parent=1 // pred_fallthru
      _
    %2484 = vsyncpa [#allocation5], 1
    %2485 = vsyncpa [#allocation8], 1
    %2486 = vsyncpa [#allocation6], 1

</llo_original>
